<compile_context>
chip_gen: v7x
topology: tpu7x:2x2x1
jax: 0.10.0
libtpu: 0.0.40
codegen_flags: <defaults>
</compile_context>

<pallas_src>
import math

import jax
import jax.numpy as jnp
import numpy as np
from jax.experimental import pallas as pl
from jax.experimental.pallas import tpu as pltpu  # noqa: F401  (TPU backend assumed)

# ---------------- configuration (args.*) ----------------
LOOKBACK = 4          # args.lookback
NUM_NODES = 16        # args.num_nodes
INPUT_DIM = 4         # args.input_dim
HID_DIM = 32          # args.hid_dim
FEATURE_DIM = 8       # args.feature_dim
DIFF_STEP = 2         # args.max_diffusion_step
K_TOP = math.ceil(math.log(NUM_NODES))   # self.K = ceil(ln(num_nodes)) = 3
LN_EPS = 1e-5         # torch.nn.LayerNorm default


# ---------------- Pallas kernel (single invocation, all L steps) ----------------
def decouple_kernel(graph_ref, propI_ref, wfc_ref, qkvp_ref, esoft_ref, wg_ref,
                    out_ref):
    N, H, L, D, Kd = NUM_NODES, HID_DIM, LOOKBACK, DIFF_STEP, K_TOP
    inv_sqrt_n = 1.0 / math.sqrt(N)

    # ---- fc + neighbor propagation for all L steps in one (L*N, .) slab ----
    graph = graph_ref[...]                                       # (L*N, N+1), last col = 1
    ne0 = jnp.dot(graph, wfc_ref[...],
                  preferred_element_type=jnp.float32)            # (L*N, Kd) = fc(graph)+b
    ne = jnp.dot(propI_ref[...], ne0,
                 preferred_element_type=jnp.float32)             # (P + I) @ ne0

    # ---- fused q/k/v linear: depth-3 contraction done on the VPU ----
    qkvp = qkvp_ref[...]                                         # (Kd+3, 3H)
    w_qkv = qkvp[0:Kd, :]                                        # (Kd, 3H)
    b_qkv = qkvp[Kd:Kd + 1, :]                                   # (1, 3H)
    gamma = qkvp[Kd + 1:Kd + 2, :]                               # (1, 3H)
    beta = qkvp[Kd + 2:Kd + 3, :]                                # (1, 3H)

    qkv = b_qkv + ne[:, 0:1] * w_qkv[0:1, :]
    for kk in range(1, Kd):
        qkv = qkv + ne[:, kk:kk + 1] * w_qkv[kk:kk + 1, :]       # (L*N, 3H)

    def layernorm(x, g, b):
        mu = jnp.mean(x, axis=-1, keepdims=True)
        var = jnp.mean(jnp.square(x - mu), axis=-1, keepdims=True)
        return (x - mu) * jax.lax.rsqrt(var + LN_EPS) * g + b

    q_all = layernorm(qkv[:, 0:H], gamma[:, 0:H], beta[:, 0:H])              # (L*N, H)
    k_all = layernorm(qkv[:, H:2 * H], gamma[:, H:2 * H], beta[:, H:2 * H])  # (L*N, H)
    v_all = layernorm(qkv[:, 2 * H:3 * H], gamma[:, 2 * H:3 * H],
                      beta[:, 2 * H:3 * H])                                  # (L*N, H)
    vs_all = v_all * esoft_ref[...]      # softmax(E1@E2) pre-tiled over L in the wrapper

    # ---- per-step attention + Chebyshev diffusion (tiny, fully unrolled) ----
    def diffuse(m, value):
        xs = [value]
        x1 = jnp.dot(m, value, preferred_element_type=jnp.float32)
        xs.append(x1)
        x0 = value
        for _ in range(1, D):
            x2 = 2.0 * jnp.dot(m, x1, preferred_element_type=jnp.float32) - x0
            xs.append(x2)
            x1, x0 = x2, x1
        return xs                                   # (D+1) arrays of (N, H)

    xs_var, xs_inv = [], []
    for l in range(L):
        r0, r1 = l * N, (l + 1) * N
        q, k = q_all[r0:r1, :], k_all[r0:r1, :]
        v, vs = v_all[r0:r1, :], vs_all[r0:r1, :]

        logits = jnp.dot(q, k.T, preferred_element_type=jnp.float32) * inv_sqrt_n
        # shared exponentials: m_I = softmax(logits), m_V = softmax(-logits)
        e = jnp.exp(logits - jnp.max(logits, axis=-1, keepdims=True))
        r = pl.reciprocal(e, approx=True)
        m_i = e / jnp.sum(e, axis=-1, keepdims=True)
        m_v = r / jnp.sum(r, axis=-1, keepdims=True)

        xs_inv.append(diffuse(m_i, v))              # invariant: aggregate(m_I, v)
        xs_var.append(diffuse(m_v, vs))             # variant:   aggregate(m_V, v*esoft)

    # ---- Gconv over all 2*L aggregates at once (M = 2*L*N = 128 rows) ----
    all_xs = xs_var + xs_inv                        # order: L variant, then L invariant
    wg = wg_ref[...]                                # ((D+1)*H + 1, N); last row = bias
    z_all = wg[(D + 1) * H:, :]                     # (1, N) bias -> broadcasts on add
    for kk in range(D + 1):
        Xk = jnp.concatenate([xs[kk] for xs in all_xs], axis=0)       # (2*L*N, H)
        z_all = z_all + jnp.dot(Xk, wg[kk * H:(kk + 1) * H, :],
                                preferred_element_type=jnp.float32)   # (2*L*N, N)

    # ---- lane-dense (N, 2*L*N) = (16, 128) output slab ----
    for j in range(2 * L):
        out_ref[:, j * N:(j + 1) * N] = z_all[j * N:(j + 1) * N, :]


# ---------------- wrapper (glue in plain JAX) ----------------
def relational_ml_forward(params, x):
    # graph_learner(x) is an external callable in RelationalML.forward; modeled
    # here as a simple linear graph learner -> (L, N, N).
    graph_list = jnp.einsum("lni,io->lno", x, params["w_gl"])
    L, N, _ = graph_list.shape
    H, Kd, D = HID_DIM, K_TOP, DIFF_STEP

    # collect_negborhoods: softmax + top_k, then the propagation matrix
    # P[i, n] = sum_k point[i, k] * [neighbor[i, k] == n]
    # TODO(synk): top_k has no Pallas TPU primitive; done in plain-JAX glue.
    graph_soft = jax.nn.softmax(graph_list, axis=-1)
    vals, idxs = jax.lax.top_k(graph_soft, Kd)                       # (L, N, Kd)
    onehot = jax.nn.one_hot(idxs, N, dtype=jnp.float32)              # (L, N, Kd, N)
    prop = jnp.einsum("lnk,lnkm->lnm", vals, onehot)                 # (L, N, N)

    # block-diagonal (P + I) so all L steps propagate in one (L*N, L*N) matmul
    eye_l = jnp.eye(L, dtype=jnp.float32)
    prop_bd = jnp.einsum("ab,aij->aibj", eye_l, prop).reshape(L * N, L * N)
    propI = prop_bd + jnp.eye(L * N, dtype=jnp.float32)

    # fc bias folded in via an augmented ones column
    graph_flat = graph_list.reshape(L * N, N)
    graph_aug = jnp.concatenate(
        [graph_flat, jnp.ones((L * N, 1), jnp.float32)], axis=-1)    # (L*N, N+1)
    wfc_aug = jnp.concatenate([params["w_fc"], params["b_fc"]], axis=0)  # (N+1, Kd)

    # fused q/k/v parameter slab: rows [0:Kd]=W, Kd=b, Kd+1=gamma, Kd+2=beta
    w_qkv = jnp.concatenate([params["w_q"], params["w_k"], params["w_v"]], axis=-1)
    b_qkv = jnp.concatenate([params["b_q"], params["b_k"], params["b_v"]], axis=-1)
    g_qkv = jnp.concatenate([params["g1"], params["g2"], params["g3"]], axis=-1)
    be_qkv = jnp.concatenate([params["be1"], params["be2"], params["be3"]], axis=-1)
    qkv_params = jnp.concatenate([w_qkv, b_qkv, g_qkv, be_qkv], axis=0)  # (Kd+3, 3H)

    # softmax(E1 @ E2), pre-tiled over L so the kernel scales v_all in one mul
    esoft = jax.nn.softmax(params["E1"] @ params["E2"], axis=-1)     # (N, H)
    esoft_tiled = jnp.tile(esoft, (L, 1))                            # (L*N, H)

    # Gconv weight regrouped so concat([x0|x1|..|xD], -1) @ wg_perm matches
    # permute(1,2,0).reshape(N,-1) @ w_g ; bias packed as the last row.
    wg_perm = params["w_g"].reshape(H, D + 1, N).transpose(1, 0, 2).reshape((D + 1) * H, N)
    wg_packed = jnp.concatenate([wg_perm, params["b_g"]], axis=0)    # ((D+1)*H + 1, N)

    slab = pl.pallas_call(
        decouple_kernel,
        out_shape=jax.ShapeDtypeStruct((N, 2 * L * N), jnp.float32),
    )(graph_aug, propI, wfc_aug, qkv_params, esoft_tiled, wg_packed)

    # unpack the lane-dense slab: column block j is z_V[j] for j<L, z_I[j-L] otherwise
    z = slab.reshape(N, 2 * L, N).transpose(1, 0, 2)                 # (2L, N, N)
    variant_pattern, invariant_pattern = z[:L], z[L:]
    # Note: the original RelationalML binds Decouple's (variant, invariant)
    # return to the names (inv_pattern, var_pattern); we preserve the VALUE
    # order of the PyTorch module: (variant, invariant).
    return variant_pattern, invariant_pattern


# ---------------- pure-JAX reference (for validation) ----------------
def reference_forward(params, x):
    graph_list = jnp.einsum("lni,io->lno", x, params["w_gl"])
    L, N, _ = graph_list.shape
    graph_soft = jax.nn.softmax(graph_list, axis=-1)
    vals, idxs = jax.lax.top_k(graph_soft, K_TOP)

    ne = jnp.einsum("lnm,mk->lnk", graph_list, params["w_fc"]) + params["b_fc"]

    def prop_one(e, idx, val):
        gathered = e[idx]                                   # (N, K, K)
        return jnp.sum(gathered * val[..., None], axis=1) + e

    ne = jax.vmap(prop_one)(ne, idxs, vals)
    esoft = jax.nn.softmax(params["E1"] @ params["E2"], axis=-1)

    def ln(xx, g, b):
        mu = xx.mean(-1, keepdims=True)
        var = ((xx - mu) ** 2).mean(-1, keepdims=True)
        return (xx - mu) / jnp.sqrt(var + LN_EPS) * g + b

    def per_idx(e):
        q = ln(e @ params["w_q"] + params["b_q"], params["g1"], params["be1"])
        k = ln(e @ params["w_k"] + params["b_k"], params["g2"], params["be2"])
        v = ln(e @ params["w_v"] + params["b_v"], params["g3"], params["be3"])
        logits = q @ k.T / math.sqrt(N)
        m_i = jax.nn.softmax(logits, axis=-1)
        m_v = jax.nn.softmax(-logits, axis=-1)

        def agg(m, value):
            x1 = m @ value
            x0 = value
            xs = [value, x1]
            for _ in range(1, DIFF_STEP):
                x2 = 2.0 * (m @ x1) - x0
                xs.append(x2)
                x1, x0 = x2, x1
            xc = jnp.stack(xs, 0)                           # (D+1, N, H)
            xc = jnp.transpose(xc, (1, 2, 0)).reshape(N, -1)
            return xc @ params["w_g"] + params["b_g"]

        return agg(m_v, v * esoft), agg(m_i, v)

    z_var, z_inv = jax.vmap(per_idx)(ne)
    return z_var, z_inv


# ---------------- deterministic parameter init ----------------
def init_params(key):
    ks = jax.random.split(key, 16)
    f32 = jnp.float32
    H, N, Kd, F = HID_DIM, NUM_NODES, K_TOP, FEATURE_DIM
    return {
        "w_gl": jax.random.normal(ks[0], (INPUT_DIM, N), f32) * 0.5,
        "w_fc": jax.random.normal(ks[1], (N, Kd), f32) * 0.2,
        "b_fc": jax.random.normal(ks[2], (1, Kd), f32) * 0.1,
        "w_q": jax.random.normal(ks[3], (Kd, H), f32) * 0.3,
        "b_q": jax.random.normal(ks[4], (1, H), f32) * 0.1,
        "w_k": jax.random.normal(ks[5], (Kd, H), f32) * 0.3,
        "b_k": jax.random.normal(ks[6], (1, H), f32) * 0.1,
        "w_v": jax.random.normal(ks[7], (Kd, H), f32) * 0.3,
        "b_v": jax.random.normal(ks[8], (1, H), f32) * 0.1,
        "g1": 1.0 + 0.1 * jax.random.normal(ks[9], (1, H), f32),
        "be1": 0.1 * jax.random.normal(ks[10], (1, H), f32),
        "g2": 1.0 + 0.1 * jax.random.normal(ks[11], (1, H), f32),
        "be2": 0.1 * jax.random.normal(ks[12], (1, H), f32),
        "g3": 1.0 + 0.1 * jax.random.normal(ks[13], (1, H), f32),
        "be3": 0.1 * jax.random.normal(ks[14], (1, H), f32),
        "E1": jax.random.uniform(ks[15], (N, F), f32),
        "E2": jax.random.uniform(jax.random.fold_in(key, 100), (F, H), f32),
        "w_g": jax.random.normal(jax.random.fold_in(key, 101),
                                 (H * (DIFF_STEP + 1), N), f32) * 0.1,
        "b_g": jax.random.normal(jax.random.fold_in(key, 102), (1, N), f32) * 0.1,
    }


if __name__ == "__main__":
    key = jax.random.PRNGKey(0)
    params = init_params(key)
    x = jax.random.normal(jax.random.fold_in(key, 999),
                          (LOOKBACK, NUM_NODES, INPUT_DIM), jnp.float32)

    fwd = jax.jit(relational_ml_forward)
    out_variant, out_invariant = fwd(params, x)
    out_variant = jax.block_until_ready(out_variant)
    out_invariant = jax.block_until_ready(out_invariant)

    ref_var, ref_inv = reference_forward(params, x)
    np.testing.assert_allclose(np.asarray(out_variant), np.asarray(ref_var),
                               rtol=1e-2, atol=1e-2)
    np.testing.assert_allclose(np.asarray(out_invariant), np.asarray(ref_inv),
                               rtol=1e-2, atol=1e-2)

    print("KERNEL_OK")
</pallas_src>

<mosaic_0001>
module attributes {stable_mosaic.version = 11 : i64} {
  func.func @decouple_kernel(%arg0: memref<64x17xf32, #tpu.memory_space<vmem>>, %arg1: memref<64x64xf32, #tpu.memory_space<vmem>>, %arg2: memref<17x3xf32, #tpu.memory_space<vmem>>, %arg3: memref<6x96xf32, #tpu.memory_space<vmem>>, %arg4: memref<64x32xf32, #tpu.memory_space<vmem>>, %arg5: memref<97x16xf32, #tpu.memory_space<vmem>>, %arg6: memref<16x128xf32, #tpu.memory_space<vmem>>) attributes {dimension_semantics = [], scalar_prefetch = 0 : i64, scratch_operands = 0 : i64, tpu.core_type = #tpu.core_type<tc>} {
    %c0 = arith.constant 0 : index
    %c0_0 = arith.constant 0 : index
    %0 = vector.load %arg0[%c0, %c0_0] : memref<64x17xf32, #tpu.memory_space<vmem>>, vector<64x17xf32>
    %c0_1 = arith.constant 0 : index
    %c0_2 = arith.constant 0 : index
    %1 = vector.load %arg2[%c0_1, %c0_2] : memref<17x3xf32, #tpu.memory_space<vmem>>, vector<17x3xf32>
    %cst = arith.constant dense<0.000000e+00> : vector<64x3xf32>
    %2 = tpu.matmul %0, %1, %cst {dimension_numbers = #tpu.dot_dimension_numbers<[1], [0], [0], [1], [0, 0, 1, 1], [], []>} : vector<64x17xf32>, vector<17x3xf32>, vector<64x3xf32> -> vector<64x3xf32>
    %c0_3 = arith.constant 0 : index
    %c0_4 = arith.constant 0 : index
    %3 = vector.load %arg1[%c0_3, %c0_4] : memref<64x64xf32, #tpu.memory_space<vmem>>, vector<64x64xf32>
    %cst_5 = arith.constant dense<0.000000e+00> : vector<64x3xf32>
    %4 = tpu.matmul %3, %2, %cst_5 {dimension_numbers = #tpu.dot_dimension_numbers<[1], [0], [0], [1], [0, 0, 1, 1], [], []>} : vector<64x64xf32>, vector<64x3xf32>, vector<64x3xf32> -> vector<64x3xf32>
    %c0_6 = arith.constant 0 : index
    %c0_7 = arith.constant 0 : index
    %5 = vector.load %arg3[%c0_6, %c0_7] : memref<6x96xf32, #tpu.memory_space<vmem>>, vector<6x96xf32>
    %6 = vector.extract_strided_slice %5 {offsets = [0, 0], sizes = [3, 96], strides = [1, 1]} : vector<6x96xf32> to vector<3x96xf32>
    %7 = vector.extract_strided_slice %5 {offsets = [3, 0], sizes = [1, 96], strides = [1, 1]} : vector<6x96xf32> to vector<1x96xf32>
    %8 = vector.extract_strided_slice %5 {offsets = [4, 0], sizes = [1, 96], strides = [1, 1]} : vector<6x96xf32> to vector<1x96xf32>
    %9 = vector.extract_strided_slice %5 {offsets = [5, 0], sizes = [1, 96], strides = [1, 1]} : vector<6x96xf32> to vector<1x96xf32>
    %10 = vector.extract_strided_slice %4 {offsets = [0, 0], sizes = [64, 1], strides = [1, 1]} : vector<64x3xf32> to vector<64x1xf32>
    %11 = vector.extract_strided_slice %6 {offsets = [0, 0], sizes = [1, 96], strides = [1, 1]} : vector<3x96xf32> to vector<1x96xf32>
    %12 = vector.broadcast %10 : vector<64x1xf32> to vector<64x96xf32>
    %13 = vector.broadcast %11 : vector<1x96xf32> to vector<64x96xf32>
    %14 = arith.mulf %12, %13 : vector<64x96xf32>
    %15 = vector.broadcast %7 : vector<1x96xf32> to vector<64x96xf32>
    %16 = arith.addf %15, %14 : vector<64x96xf32>
    %17 = vector.extract_strided_slice %4 {offsets = [0, 1], sizes = [64, 1], strides = [1, 1]} : vector<64x3xf32> to vector<64x1xf32>
    %18 = vector.extract_strided_slice %6 {offsets = [1, 0], sizes = [1, 96], strides = [1, 1]} : vector<3x96xf32> to vector<1x96xf32>
    %19 = vector.broadcast %17 : vector<64x1xf32> to vector<64x96xf32>
    %20 = vector.broadcast %18 : vector<1x96xf32> to vector<64x96xf32>
    %21 = arith.mulf %19, %20 : vector<64x96xf32>
    %22 = arith.addf %16, %21 : vector<64x96xf32>
    %23 = vector.extract_strided_slice %4 {offsets = [0, 2], sizes = [64, 1], strides = [1, 1]} : vector<64x3xf32> to vector<64x1xf32>
    %24 = vector.extract_strided_slice %6 {offsets = [2, 0], sizes = [1, 96], strides = [1, 1]} : vector<3x96xf32> to vector<1x96xf32>
    %25 = vector.broadcast %23 : vector<64x1xf32> to vector<64x96xf32>
    %26 = vector.broadcast %24 : vector<1x96xf32> to vector<64x96xf32>
    %27 = arith.mulf %25, %26 : vector<64x96xf32>
    %28 = arith.addf %22, %27 : vector<64x96xf32>
    %29 = vector.extract_strided_slice %28 {offsets = [0, 0], sizes = [64, 32], strides = [1, 1]} : vector<64x96xf32> to vector<64x32xf32>
    %30 = vector.extract_strided_slice %8 {offsets = [0, 0], sizes = [1, 32], strides = [1, 1]} : vector<1x96xf32> to vector<1x32xf32>
    %31 = vector.extract_strided_slice %9 {offsets = [0, 0], sizes = [1, 32], strides = [1, 1]} : vector<1x96xf32> to vector<1x32xf32>
    %cst_8 = arith.constant dense<0.000000e+00> : vector<64xf32>
    %32 = vector.multi_reduction <add>, %29, %cst_8 [1] : vector<64x32xf32> to vector<64xf32>
    %33 = vector.shape_cast %32 : vector<64xf32> to vector<64x1xf32>
    %cst_9 = arith.constant 3.200000e+01 : f32
    %34 = vector.broadcast %cst_9 : f32 to vector<64x1xf32>
    %35 = arith.divf %33, %34 : vector<64x1xf32>
    %36 = vector.broadcast %35 : vector<64x1xf32> to vector<64x32xf32>
    %37 = arith.subf %29, %36 : vector<64x32xf32>
    %38 = arith.mulf %37, %37 : vector<64x32xf32>
    %cst_10 = arith.constant dense<0.000000e+00> : vector<64xf32>
    %39 = vector.multi_reduction <add>, %38, %cst_10 [1] : vector<64x32xf32> to vector<64xf32>
    %40 = vector.shape_cast %39 : vector<64xf32> to vector<64x1xf32>
    %cst_11 = arith.constant 3.200000e+01 : f32
    %41 = vector.broadcast %cst_11 : f32 to vector<64x1xf32>
    %42 = arith.divf %40, %41 : vector<64x1xf32>
    %43 = vector.broadcast %35 : vector<64x1xf32> to vector<64x32xf32>
    %44 = arith.subf %29, %43 : vector<64x32xf32>
    %cst_12 = arith.constant 9.99999974E-6 : f32
    %45 = vector.broadcast %cst_12 : f32 to vector<64x1xf32>
    %46 = arith.addf %42, %45 : vector<64x1xf32>
    %47 = math.rsqrt %46 : vector<64x1xf32>
    %48 = vector.broadcast %47 : vector<64x1xf32> to vector<64x32xf32>
    %49 = arith.mulf %44, %48 : vector<64x32xf32>
    %50 = vector.broadcast %30 : vector<1x32xf32> to vector<64x32xf32>
    %51 = arith.mulf %49, %50 : vector<64x32xf32>
    %52 = vector.broadcast %31 : vector<1x32xf32> to vector<64x32xf32>
    %53 = arith.addf %51, %52 : vector<64x32xf32>
    %54 = vector.extract_strided_slice %28 {offsets = [0, 32], sizes = [64, 32], strides = [1, 1]} : vector<64x96xf32> to vector<64x32xf32>
    %55 = vector.extract_strided_slice %8 {offsets = [0, 32], sizes = [1, 32], strides = [1, 1]} : vector<1x96xf32> to vector<1x32xf32>
    %56 = vector.extract_strided_slice %9 {offsets = [0, 32], sizes = [1, 32], strides = [1, 1]} : vector<1x96xf32> to vector<1x32xf32>
    %cst_13 = arith.constant dense<0.000000e+00> : vector<64xf32>
    %57 = vector.multi_reduction <add>, %54, %cst_13 [1] : vector<64x32xf32> to vector<64xf32>
    %58 = vector.shape_cast %57 : vector<64xf32> to vector<64x1xf32>
    %cst_14 = arith.constant 3.200000e+01 : f32
    %59 = vector.broadcast %cst_14 : f32 to vector<64x1xf32>
    %60 = arith.divf %58, %59 : vector<64x1xf32>
    %61 = vector.broadcast %60 : vector<64x1xf32> to vector<64x32xf32>
    %62 = arith.subf %54, %61 : vector<64x32xf32>
    %63 = arith.mulf %62, %62 : vector<64x32xf32>
    %cst_15 = arith.constant dense<0.000000e+00> : vector<64xf32>
    %64 = vector.multi_reduction <add>, %63, %cst_15 [1] : vector<64x32xf32> to vector<64xf32>
    %65 = vector.shape_cast %64 : vector<64xf32> to vector<64x1xf32>
    %cst_16 = arith.constant 3.200000e+01 : f32
    %66 = vector.broadcast %cst_16 : f32 to vector<64x1xf32>
    %67 = arith.divf %65, %66 : vector<64x1xf32>
    %68 = vector.broadcast %60 : vector<64x1xf32> to vector<64x32xf32>
    %69 = arith.subf %54, %68 : vector<64x32xf32>
    %cst_17 = arith.constant 9.99999974E-6 : f32
    %70 = vector.broadcast %cst_17 : f32 to vector<64x1xf32>
    %71 = arith.addf %67, %70 : vector<64x1xf32>
    %72 = math.rsqrt %71 : vector<64x1xf32>
    %73 = vector.broadcast %72 : vector<64x1xf32> to vector<64x32xf32>
    %74 = arith.mulf %69, %73 : vector<64x32xf32>
    %75 = vector.broadcast %55 : vector<1x32xf32> to vector<64x32xf32>
    %76 = arith.mulf %74, %75 : vector<64x32xf32>
    %77 = vector.broadcast %56 : vector<1x32xf32> to vector<64x32xf32>
    %78 = arith.addf %76, %77 : vector<64x32xf32>
    %79 = vector.extract_strided_slice %28 {offsets = [0, 64], sizes = [64, 32], strides = [1, 1]} : vector<64x96xf32> to vector<64x32xf32>
    %80 = vector.extract_strided_slice %8 {offsets = [0, 64], sizes = [1, 32], strides = [1, 1]} : vector<1x96xf32> to vector<1x32xf32>
    %81 = vector.extract_strided_slice %9 {offsets = [0, 64], sizes = [1, 32], strides = [1, 1]} : vector<1x96xf32> to vector<1x32xf32>
    %cst_18 = arith.constant dense<0.000000e+00> : vector<64xf32>
    %82 = vector.multi_reduction <add>, %79, %cst_18 [1] : vector<64x32xf32> to vector<64xf32>
    %83 = vector.shape_cast %82 : vector<64xf32> to vector<64x1xf32>
    %cst_19 = arith.constant 3.200000e+01 : f32
    %84 = vector.broadcast %cst_19 : f32 to vector<64x1xf32>
    %85 = arith.divf %83, %84 : vector<64x1xf32>
    %86 = vector.broadcast %85 : vector<64x1xf32> to vector<64x32xf32>
    %87 = arith.subf %79, %86 : vector<64x32xf32>
    %88 = arith.mulf %87, %87 : vector<64x32xf32>
    %cst_20 = arith.constant dense<0.000000e+00> : vector<64xf32>
    %89 = vector.multi_reduction <add>, %88, %cst_20 [1] : vector<64x32xf32> to vector<64xf32>
    %90 = vector.shape_cast %89 : vector<64xf32> to vector<64x1xf32>
    %cst_21 = arith.constant 3.200000e+01 : f32
    %91 = vector.broadcast %cst_21 : f32 to vector<64x1xf32>
    %92 = arith.divf %90, %91 : vector<64x1xf32>
    %93 = vector.broadcast %85 : vector<64x1xf32> to vector<64x32xf32>
    %94 = arith.subf %79, %93 : vector<64x32xf32>
    %cst_22 = arith.constant 9.99999974E-6 : f32
    %95 = vector.broadcast %cst_22 : f32 to vector<64x1xf32>
    %96 = arith.addf %92, %95 : vector<64x1xf32>
    %97 = math.rsqrt %96 : vector<64x1xf32>
    %98 = vector.broadcast %97 : vector<64x1xf32> to vector<64x32xf32>
    %99 = arith.mulf %94, %98 : vector<64x32xf32>
    %100 = vector.broadcast %80 : vector<1x32xf32> to vector<64x32xf32>
    %101 = arith.mulf %99, %100 : vector<64x32xf32>
    %102 = vector.broadcast %81 : vector<1x32xf32> to vector<64x32xf32>
    %103 = arith.addf %101, %102 : vector<64x32xf32>
    %c0_23 = arith.constant 0 : index
    %c0_24 = arith.constant 0 : index
    %104 = vector.load %arg4[%c0_23, %c0_24] : memref<64x32xf32, #tpu.memory_space<vmem>>, vector<64x32xf32>
    %105 = arith.mulf %103, %104 : vector<64x32xf32>
    %106 = vector.extract_strided_slice %53 {offsets = [0, 0], sizes = [16, 32], strides = [1, 1]} : vector<64x32xf32> to vector<16x32xf32>
    %107 = vector.extract_strided_slice %78 {offsets = [0, 0], sizes = [16, 32], strides = [1, 1]} : vector<64x32xf32> to vector<16x32xf32>
    %108 = vector.extract_strided_slice %103 {offsets = [0, 0], sizes = [16, 32], strides = [1, 1]} : vector<64x32xf32> to vector<16x32xf32>
    %109 = vector.extract_strided_slice %105 {offsets = [0, 0], sizes = [16, 32], strides = [1, 1]} : vector<64x32xf32> to vector<16x32xf32>
    %110 = tpu.transpose %107, [1, 0] : vector<16x32xf32> -> vector<32x16xf32>
    %cst_25 = arith.constant dense<0.000000e+00> : vector<16x16xf32>
    %111 = tpu.matmul %106, %110, %cst_25 {dimension_numbers = #tpu.dot_dimension_numbers<[1], [0], [0], [1], [0, 0, 1, 1], [], []>} : vector<16x32xf32>, vector<32x16xf32>, vector<16x16xf32> -> vector<16x16xf32>
    %cst_26 = arith.constant 2.500000e-01 : f32
    %112 = vector.broadcast %cst_26 : f32 to vector<16x16xf32>
    %113 = arith.mulf %111, %112 : vector<16x16xf32>
    %cst_27 = arith.constant dense<0xFF800000> : vector<16xf32>
    %114 = vector.multi_reduction <maximumf>, %113, %cst_27 [1] : vector<16x16xf32> to vector<16xf32>
    %115 = vector.shape_cast %114 : vector<16xf32> to vector<16x1xf32>
    %116 = vector.broadcast %115 : vector<16x1xf32> to vector<16x16xf32>
    %117 = arith.subf %113, %116 : vector<16x16xf32>
    %118 = math.exp %117 : vector<16x16xf32>
    %119 = tpu.reciprocal %118 {approx = true} : vector<16x16xf32> -> vector<16x16xf32>
    %cst_28 = arith.constant dense<0.000000e+00> : vector<16xf32>
    %120 = vector.multi_reduction <add>, %118, %cst_28 [1] : vector<16x16xf32> to vector<16xf32>
    %121 = vector.shape_cast %120 : vector<16xf32> to vector<16x1xf32>
    %122 = vector.broadcast %121 : vector<16x1xf32> to vector<16x16xf32>
    %123 = arith.divf %118, %122 : vector<16x16xf32>
    %cst_29 = arith.constant dense<0.000000e+00> : vector<16xf32>
    %124 = vector.multi_reduction <add>, %119, %cst_29 [1] : vector<16x16xf32> to vector<16xf32>
    %125 = vector.shape_cast %124 : vector<16xf32> to vector<16x1xf32>
    %126 = vector.broadcast %125 : vector<16x1xf32> to vector<16x16xf32>
    %127 = arith.divf %119, %126 : vector<16x16xf32>
    %cst_30 = arith.constant dense<0.000000e+00> : vector<16x32xf32>
    %128 = tpu.matmul %123, %108, %cst_30 {dimension_numbers = #tpu.dot_dimension_numbers<[1], [0], [0], [1], [0, 0, 1, 1], [], []>} : vector<16x16xf32>, vector<16x32xf32>, vector<16x32xf32> -> vector<16x32xf32>
    %cst_31 = arith.constant dense<0.000000e+00> : vector<16x32xf32>
    %129 = tpu.matmul %123, %128, %cst_31 {dimension_numbers = #tpu.dot_dimension_numbers<[1], [0], [0], [1], [0, 0, 1, 1], [], []>} : vector<16x16xf32>, vector<16x32xf32>, vector<16x32xf32> -> vector<16x32xf32>
    %cst_32 = arith.constant 2.000000e+00 : f32
    %130 = vector.broadcast %cst_32 : f32 to vector<16x32xf32>
    %131 = arith.mulf %130, %129 : vector<16x32xf32>
    %132 = arith.subf %131, %108 : vector<16x32xf32>
    %cst_33 = arith.constant dense<0.000000e+00> : vector<16x32xf32>
    %133 = tpu.matmul %127, %109, %cst_33 {dimension_numbers = #tpu.dot_dimension_numbers<[1], [0], [0], [1], [0, 0, 1, 1], [], []>} : vector<16x16xf32>, vector<16x32xf32>, vector<16x32xf32> -> vector<16x32xf32>
    %cst_34 = arith.constant dense<0.000000e+00> : vector<16x32xf32>
    %134 = tpu.matmul %127, %133, %cst_34 {dimension_numbers = #tpu.dot_dimension_numbers<[1], [0], [0], [1], [0, 0, 1, 1], [], []>} : vector<16x16xf32>, vector<16x32xf32>, vector<16x32xf32> -> vector<16x32xf32>
    %cst_35 = arith.constant 2.000000e+00 : f32
    %135 = vector.broadcast %cst_35 : f32 to vector<16x32xf32>
    %136 = arith.mulf %135, %134 : vector<16x32xf32>
    %137 = arith.subf %136, %109 : vector<16x32xf32>
    %138 = vector.extract_strided_slice %53 {offsets = [16, 0], sizes = [16, 32], strides = [1, 1]} : vector<64x32xf32> to vector<16x32xf32>
    %139 = vector.extract_strided_slice %78 {offsets = [16, 0], sizes = [16, 32], strides = [1, 1]} : vector<64x32xf32> to vector<16x32xf32>
    %140 = vector.extract_strided_slice %103 {offsets = [16, 0], sizes = [16, 32], strides = [1, 1]} : vector<64x32xf32> to vector<16x32xf32>
    %141 = vector.extract_strided_slice %105 {offsets = [16, 0], sizes = [16, 32], strides = [1, 1]} : vector<64x32xf32> to vector<16x32xf32>
    %142 = tpu.transpose %139, [1, 0] : vector<16x32xf32> -> vector<32x16xf32>
    %cst_36 = arith.constant dense<0.000000e+00> : vector<16x16xf32>
    %143 = tpu.matmul %138, %142, %cst_36 {dimension_numbers = #tpu.dot_dimension_numbers<[1], [0], [0], [1], [0, 0, 1, 1], [], []>} : vector<16x32xf32>, vector<32x16xf32>, vector<16x16xf32> -> vector<16x16xf32>
    %cst_37 = arith.constant 2.500000e-01 : f32
    %144 = vector.broadcast %cst_37 : f32 to vector<16x16xf32>
    %145 = arith.mulf %143, %144 : vector<16x16xf32>
    %cst_38 = arith.constant dense<0xFF800000> : vector<16xf32>
    %146 = vector.multi_reduction <maximumf>, %145, %cst_38 [1] : vector<16x16xf32> to vector<16xf32>
    %147 = vector.shape_cast %146 : vector<16xf32> to vector<16x1xf32>
    %148 = vector.broadcast %147 : vector<16x1xf32> to vector<16x16xf32>
    %149 = arith.subf %145, %148 : vector<16x16xf32>
    %150 = math.exp %149 : vector<16x16xf32>
    %151 = tpu.reciprocal %150 {approx = true} : vector<16x16xf32> -> vector<16x16xf32>
    %cst_39 = arith.constant dense<0.000000e+00> : vector<16xf32>
    %152 = vector.multi_reduction <add>, %150, %cst_39 [1] : vector<16x16xf32> to vector<16xf32>
    %153 = vector.shape_cast %152 : vector<16xf32> to vector<16x1xf32>
    %154 = vector.broadcast %153 : vector<16x1xf32> to vector<16x16xf32>
    %155 = arith.divf %150, %154 : vector<16x16xf32>
    %cst_40 = arith.constant dense<0.000000e+00> : vector<16xf32>
    %156 = vector.multi_reduction <add>, %151, %cst_40 [1] : vector<16x16xf32> to vector<16xf32>
    %157 = vector.shape_cast %156 : vector<16xf32> to vector<16x1xf32>
    %158 = vector.broadcast %157 : vector<16x1xf32> to vector<16x16xf32>
    %159 = arith.divf %151, %158 : vector<16x16xf32>
    %cst_41 = arith.constant dense<0.000000e+00> : vector<16x32xf32>
    %160 = tpu.matmul %155, %140, %cst_41 {dimension_numbers = #tpu.dot_dimension_numbers<[1], [0], [0], [1], [0, 0, 1, 1], [], []>} : vector<16x16xf32>, vector<16x32xf32>, vector<16x32xf32> -> vector<16x32xf32>
    %cst_42 = arith.constant dense<0.000000e+00> : vector<16x32xf32>
    %161 = tpu.matmul %155, %160, %cst_42 {dimension_numbers = #tpu.dot_dimension_numbers<[1], [0], [0], [1], [0, 0, 1, 1], [], []>} : vector<16x16xf32>, vector<16x32xf32>, vector<16x32xf32> -> vector<16x32xf32>
    %cst_43 = arith.constant 2.000000e+00 : f32
    %162 = vector.broadcast %cst_43 : f32 to vector<16x32xf32>
    %163 = arith.mulf %162, %161 : vector<16x32xf32>
    %164 = arith.subf %163, %140 : vector<16x32xf32>
    %cst_44 = arith.constant dense<0.000000e+00> : vector<16x32xf32>
    %165 = tpu.matmul %159, %141, %cst_44 {dimension_numbers = #tpu.dot_dimension_numbers<[1], [0], [0], [1], [0, 0, 1, 1], [], []>} : vector<16x16xf32>, vector<16x32xf32>, vector<16x32xf32> -> vector<16x32xf32>
    %cst_45 = arith.constant dense<0.000000e+00> : vector<16x32xf32>
    %166 = tpu.matmul %159, %165, %cst_45 {dimension_numbers = #tpu.dot_dimension_numbers<[1], [0], [0], [1], [0, 0, 1, 1], [], []>} : vector<16x16xf32>, vector<16x32xf32>, vector<16x32xf32> -> vector<16x32xf32>
    %cst_46 = arith.constant 2.000000e+00 : f32
    %167 = vector.broadcast %cst_46 : f32 to vector<16x32xf32>
    %168 = arith.mulf %167, %166 : vector<16x32xf32>
    %169 = arith.subf %168, %141 : vector<16x32xf32>
    %170 = vector.extract_strided_slice %53 {offsets = [32, 0], sizes = [16, 32], strides = [1, 1]} : vector<64x32xf32> to vector<16x32xf32>
    %171 = vector.extract_strided_slice %78 {offsets = [32, 0], sizes = [16, 32], strides = [1, 1]} : vector<64x32xf32> to vector<16x32xf32>
    %172 = vector.extract_strided_slice %103 {offsets = [32, 0], sizes = [16, 32], strides = [1, 1]} : vector<64x32xf32> to vector<16x32xf32>
    %173 = vector.extract_strided_slice %105 {offsets = [32, 0], sizes = [16, 32], strides = [1, 1]} : vector<64x32xf32> to vector<16x32xf32>
    %174 = tpu.transpose %171, [1, 0] : vector<16x32xf32> -> vector<32x16xf32>
    %cst_47 = arith.constant dense<0.000000e+00> : vector<16x16xf32>
    %175 = tpu.matmul %170, %174, %cst_47 {dimension_numbers = #tpu.dot_dimension_numbers<[1], [0], [0], [1], [0, 0, 1, 1], [], []>} : vector<16x32xf32>, vector<32x16xf32>, vector<16x16xf32> -> vector<16x16xf32>
    %cst_48 = arith.constant 2.500000e-01 : f32
    %176 = vector.broadcast %cst_48 : f32 to vector<16x16xf32>
    %177 = arith.mulf %175, %176 : vector<16x16xf32>
    %cst_49 = arith.constant dense<0xFF800000> : vector<16xf32>
    %178 = vector.multi_reduction <maximumf>, %177, %cst_49 [1] : vector<16x16xf32> to vector<16xf32>
    %179 = vector.shape_cast %178 : vector<16xf32> to vector<16x1xf32>
    %180 = vector.broadcast %179 : vector<16x1xf32> to vector<16x16xf32>
    %181 = arith.subf %177, %180 : vector<16x16xf32>
    %182 = math.exp %181 : vector<16x16xf32>
    %183 = tpu.reciprocal %182 {approx = true} : vector<16x16xf32> -> vector<16x16xf32>
    %cst_50 = arith.constant dense<0.000000e+00> : vector<16xf32>
    %184 = vector.multi_reduction <add>, %182, %cst_50 [1] : vector<16x16xf32> to vector<16xf32>
    %185 = vector.shape_cast %184 : vector<16xf32> to vector<16x1xf32>
    %186 = vector.broadcast %185 : vector<16x1xf32> to vector<16x16xf32>
    %187 = arith.divf %182, %186 : vector<16x16xf32>
    %cst_51 = arith.constant dense<0.000000e+00> : vector<16xf32>
    %188 = vector.multi_reduction <add>, %183, %cst_51 [1] : vector<16x16xf32> to vector<16xf32>
    %189 = vector.shape_cast %188 : vector<16xf32> to vector<16x1xf32>
    %190 = vector.broadcast %189 : vector<16x1xf32> to vector<16x16xf32>
    %191 = arith.divf %183, %190 : vector<16x16xf32>
    %cst_52 = arith.constant dense<0.000000e+00> : vector<16x32xf32>
    %192 = tpu.matmul %187, %172, %cst_52 {dimension_numbers = #tpu.dot_dimension_numbers<[1], [0], [0], [1], [0, 0, 1, 1], [], []>} : vector<16x16xf32>, vector<16x32xf32>, vector<16x32xf32> -> vector<16x32xf32>
    %cst_53 = arith.constant dense<0.000000e+00> : vector<16x32xf32>
    %193 = tpu.matmul %187, %192, %cst_53 {dimension_numbers = #tpu.dot_dimension_numbers<[1], [0], [0], [1], [0, 0, 1, 1], [], []>} : vector<16x16xf32>, vector<16x32xf32>, vector<16x32xf32> -> vector<16x32xf32>
    %cst_54 = arith.constant 2.000000e+00 : f32
    %194 = vector.broadcast %cst_54 : f32 to vector<16x32xf32>
    %195 = arith.mulf %194, %193 : vector<16x32xf32>
    %196 = arith.subf %195, %172 : vector<16x32xf32>
    %cst_55 = arith.constant dense<0.000000e+00> : vector<16x32xf32>
    %197 = tpu.matmul %191, %173, %cst_55 {dimension_numbers = #tpu.dot_dimension_numbers<[1], [0], [0], [1], [0, 0, 1, 1], [], []>} : vector<16x16xf32>, vector<16x32xf32>, vector<16x32xf32> -> vector<16x32xf32>
    %cst_56 = arith.constant dense<0.000000e+00> : vector<16x32xf32>
    %198 = tpu.matmul %191, %197, %cst_56 {dimension_numbers = #tpu.dot_dimension_numbers<[1], [0], [0], [1], [0, 0, 1, 1], [], []>} : vector<16x16xf32>, vector<16x32xf32>, vector<16x32xf32> -> vector<16x32xf32>
    %cst_57 = arith.constant 2.000000e+00 : f32
    %199 = vector.broadcast %cst_57 : f32 to vector<16x32xf32>
    %200 = arith.mulf %199, %198 : vector<16x32xf32>
    %201 = arith.subf %200, %173 : vector<16x32xf32>
    %202 = vector.extract_strided_slice %53 {offsets = [48, 0], sizes = [16, 32], strides = [1, 1]} : vector<64x32xf32> to vector<16x32xf32>
    %203 = vector.extract_strided_slice %78 {offsets = [48, 0], sizes = [16, 32], strides = [1, 1]} : vector<64x32xf32> to vector<16x32xf32>
    %204 = vector.extract_strided_slice %103 {offsets = [48, 0], sizes = [16, 32], strides = [1, 1]} : vector<64x32xf32> to vector<16x32xf32>
    %205 = vector.extract_strided_slice %105 {offsets = [48, 0], sizes = [16, 32], strides = [1, 1]} : vector<64x32xf32> to vector<16x32xf32>
    %206 = tpu.transpose %203, [1, 0] : vector<16x32xf32> -> vector<32x16xf32>
    %cst_58 = arith.constant dense<0.000000e+00> : vector<16x16xf32>
    %207 = tpu.matmul %202, %206, %cst_58 {dimension_numbers = #tpu.dot_dimension_numbers<[1], [0], [0], [1], [0, 0, 1, 1], [], []>} : vector<16x32xf32>, vector<32x16xf32>, vector<16x16xf32> -> vector<16x16xf32>
    %cst_59 = arith.constant 2.500000e-01 : f32
    %208 = vector.broadcast %cst_59 : f32 to vector<16x16xf32>
    %209 = arith.mulf %207, %208 : vector<16x16xf32>
    %cst_60 = arith.constant dense<0xFF800000> : vector<16xf32>
    %210 = vector.multi_reduction <maximumf>, %209, %cst_60 [1] : vector<16x16xf32> to vector<16xf32>
    %211 = vector.shape_cast %210 : vector<16xf32> to vector<16x1xf32>
    %212 = vector.broadcast %211 : vector<16x1xf32> to vector<16x16xf32>
    %213 = arith.subf %209, %212 : vector<16x16xf32>
    %214 = math.exp %213 : vector<16x16xf32>
    %215 = tpu.reciprocal %214 {approx = true} : vector<16x16xf32> -> vector<16x16xf32>
    %cst_61 = arith.constant dense<0.000000e+00> : vector<16xf32>
    %216 = vector.multi_reduction <add>, %214, %cst_61 [1] : vector<16x16xf32> to vector<16xf32>
    %217 = vector.shape_cast %216 : vector<16xf32> to vector<16x1xf32>
    %218 = vector.broadcast %217 : vector<16x1xf32> to vector<16x16xf32>
    %219 = arith.divf %214, %218 : vector<16x16xf32>
    %cst_62 = arith.constant dense<0.000000e+00> : vector<16xf32>
    %220 = vector.multi_reduction <add>, %215, %cst_62 [1] : vector<16x16xf32> to vector<16xf32>
    %221 = vector.shape_cast %220 : vector<16xf32> to vector<16x1xf32>
    %222 = vector.broadcast %221 : vector<16x1xf32> to vector<16x16xf32>
    %223 = arith.divf %215, %222 : vector<16x16xf32>
    %cst_63 = arith.constant dense<0.000000e+00> : vector<16x32xf32>
    %224 = tpu.matmul %219, %204, %cst_63 {dimension_numbers = #tpu.dot_dimension_numbers<[1], [0], [0], [1], [0, 0, 1, 1], [], []>} : vector<16x16xf32>, vector<16x32xf32>, vector<16x32xf32> -> vector<16x32xf32>
    %cst_64 = arith.constant dense<0.000000e+00> : vector<16x32xf32>
    %225 = tpu.matmul %219, %224, %cst_64 {dimension_numbers = #tpu.dot_dimension_numbers<[1], [0], [0], [1], [0, 0, 1, 1], [], []>} : vector<16x16xf32>, vector<16x32xf32>, vector<16x32xf32> -> vector<16x32xf32>
    %cst_65 = arith.constant 2.000000e+00 : f32
    %226 = vector.broadcast %cst_65 : f32 to vector<16x32xf32>
    %227 = arith.mulf %226, %225 : vector<16x32xf32>
    %228 = arith.subf %227, %204 : vector<16x32xf32>
    %cst_66 = arith.constant dense<0.000000e+00> : vector<16x32xf32>
    %229 = tpu.matmul %223, %205, %cst_66 {dimension_numbers = #tpu.dot_dimension_numbers<[1], [0], [0], [1], [0, 0, 1, 1], [], []>} : vector<16x16xf32>, vector<16x32xf32>, vector<16x32xf32> -> vector<16x32xf32>
    %cst_67 = arith.constant dense<0.000000e+00> : vector<16x32xf32>
    %230 = tpu.matmul %223, %229, %cst_67 {dimension_numbers = #tpu.dot_dimension_numbers<[1], [0], [0], [1], [0, 0, 1, 1], [], []>} : vector<16x16xf32>, vector<16x32xf32>, vector<16x32xf32> -> vector<16x32xf32>
    %cst_68 = arith.constant 2.000000e+00 : f32
    %231 = vector.broadcast %cst_68 : f32 to vector<16x32xf32>
    %232 = arith.mulf %231, %230 : vector<16x32xf32>
    %233 = arith.subf %232, %205 : vector<16x32xf32>
    %c0_69 = arith.constant 0 : index
    %c0_70 = arith.constant 0 : index
    %234 = vector.load %arg5[%c0_69, %c0_70] : memref<97x16xf32, #tpu.memory_space<vmem>>, vector<97x16xf32>
    %235 = vector.extract_strided_slice %234 {offsets = [96, 0], sizes = [1, 16], strides = [1, 1]} : vector<97x16xf32> to vector<1x16xf32>
    %236 = tpu.concatenate %109, %141, %173, %205, %108, %140, %172, %204 in 0 : vector<16x32xf32>, vector<16x32xf32>, vector<16x32xf32>, vector<16x32xf32>, vector<16x32xf32>, vector<16x32xf32>, vector<16x32xf32>, vector<16x32xf32> -> vector<128x32xf32>
    %237 = vector.extract_strided_slice %234 {offsets = [0, 0], sizes = [32, 16], strides = [1, 1]} : vector<97x16xf32> to vector<32x16xf32>
    %cst_71 = arith.constant dense<0.000000e+00> : vector<128x16xf32>
    %238 = tpu.matmul %236, %237, %cst_71 {dimension_numbers = #tpu.dot_dimension_numbers<[1], [0], [0], [1], [0, 0, 1, 1], [], []>} : vector<128x32xf32>, vector<32x16xf32>, vector<128x16xf32> -> vector<128x16xf32>
    %239 = vector.broadcast %235 : vector<1x16xf32> to vector<128x16xf32>
    %240 = arith.addf %239, %238 : vector<128x16xf32>
    %241 = tpu.concatenate %133, %165, %197, %229, %128, %160, %192, %224 in 0 : vector<16x32xf32>, vector<16x32xf32>, vector<16x32xf32>, vector<16x32xf32>, vector<16x32xf32>, vector<16x32xf32>, vector<16x32xf32>, vector<16x32xf32> -> vector<128x32xf32>
    %242 = vector.extract_strided_slice %234 {offsets = [32, 0], sizes = [32, 16], strides = [1, 1]} : vector<97x16xf32> to vector<32x16xf32>
    %cst_72 = arith.constant dense<0.000000e+00> : vector<128x16xf32>
    %243 = tpu.matmul %241, %242, %cst_72 {dimension_numbers = #tpu.dot_dimension_numbers<[1], [0], [0], [1], [0, 0, 1, 1], [], []>} : vector<128x32xf32>, vector<32x16xf32>, vector<128x16xf32> -> vector<128x16xf32>
    %244 = arith.addf %240, %243 : vector<128x16xf32>
    %245 = tpu.concatenate %137, %169, %201, %233, %132, %164, %196, %228 in 0 : vector<16x32xf32>, vector<16x32xf32>, vector<16x32xf32>, vector<16x32xf32>, vector<16x32xf32>, vector<16x32xf32>, vector<16x32xf32>, vector<16x32xf32> -> vector<128x32xf32>
    %246 = vector.extract_strided_slice %234 {offsets = [64, 0], sizes = [32, 16], strides = [1, 1]} : vector<97x16xf32> to vector<32x16xf32>
    %cst_73 = arith.constant dense<0.000000e+00> : vector<128x16xf32>
    %247 = tpu.matmul %245, %246, %cst_73 {dimension_numbers = #tpu.dot_dimension_numbers<[1], [0], [0], [1], [0, 0, 1, 1], [], []>} : vector<128x32xf32>, vector<32x16xf32>, vector<128x16xf32> -> vector<128x16xf32>
    %248 = arith.addf %244, %247 : vector<128x16xf32>
    %249 = vector.extract_strided_slice %248 {offsets = [0, 0], sizes = [16, 16], strides = [1, 1]} : vector<128x16xf32> to vector<16x16xf32>
    %c0_74 = arith.constant 0 : index
    %c0_75 = arith.constant 0 : index
    %250 = vector.load %arg6[%c0_74, %c0_75] : memref<16x128xf32, #tpu.memory_space<vmem>>, vector<16x16xf32>
    tpu.vector_store %arg6[%c0_74, %c0_75], %249 {strides = array<i32>} : memref<16x128xf32, #tpu.memory_space<vmem>>, vector<16x16xf32>,
    %251 = vector.extract_strided_slice %248 {offsets = [16, 0], sizes = [16, 16], strides = [1, 1]} : vector<128x16xf32> to vector<16x16xf32>
    %c0_76 = arith.constant 0 : index
    %c16 = arith.constant 16 : index
    %252 = vector.load %arg6[%c0_76, %c16] : memref<16x128xf32, #tpu.memory_space<vmem>>, vector<16x16xf32>
    tpu.vector_store %arg6[%c0_76, %c16], %251 {strides = array<i32>} : memref<16x128xf32, #tpu.memory_space<vmem>>, vector<16x16xf32>,
    %253 = vector.extract_strided_slice %248 {offsets = [32, 0], sizes = [16, 16], strides = [1, 1]} : vector<128x16xf32> to vector<16x16xf32>
    %c0_77 = arith.constant 0 : index
    %c32 = arith.constant 32 : index
    %254 = vector.load %arg6[%c0_77, %c32] : memref<16x128xf32, #tpu.memory_space<vmem>>, vector<16x16xf32>
    tpu.vector_store %arg6[%c0_77, %c32], %253 {strides = array<i32>} : memref<16x128xf32, #tpu.memory_space<vmem>>, vector<16x16xf32>,
    %255 = vector.extract_strided_slice %248 {offsets = [48, 0], sizes = [16, 16], strides = [1, 1]} : vector<128x16xf32> to vector<16x16xf32>
    %c0_78 = arith.constant 0 : index
    %c48 = arith.constant 48 : index
    %256 = vector.load %arg6[%c0_78, %c48] : memref<16x128xf32, #tpu.memory_space<vmem>>, vector<16x16xf32>
    tpu.vector_store %arg6[%c0_78, %c48], %255 {strides = array<i32>} : memref<16x128xf32, #tpu.memory_space<vmem>>, vector<16x16xf32>,
    %257 = vector.extract_strided_slice %248 {offsets = [64, 0], sizes = [16, 16], strides = [1, 1]} : vector<128x16xf32> to vector<16x16xf32>
    %c0_79 = arith.constant 0 : index
    %c64 = arith.constant 64 : index
    %258 = vector.load %arg6[%c0_79, %c64] : memref<16x128xf32, #tpu.memory_space<vmem>>, vector<16x16xf32>
    tpu.vector_store %arg6[%c0_79, %c64], %257 {strides = array<i32>} : memref<16x128xf32, #tpu.memory_space<vmem>>, vector<16x16xf32>,
    %259 = vector.extract_strided_slice %248 {offsets = [80, 0], sizes = [16, 16], strides = [1, 1]} : vector<128x16xf32> to vector<16x16xf32>
    %c0_80 = arith.constant 0 : index
    %c80 = arith.constant 80 : index
    %260 = vector.load %arg6[%c0_80, %c80] : memref<16x128xf32, #tpu.memory_space<vmem>>, vector<16x16xf32>
    tpu.vector_store %arg6[%c0_80, %c80], %259 {strides = array<i32>} : memref<16x128xf32, #tpu.memory_space<vmem>>, vector<16x16xf32>,
    %261 = vector.extract_strided_slice %248 {offsets = [96, 0], sizes = [16, 16], strides = [1, 1]} : vector<128x16xf32> to vector<16x16xf32>
    %c0_81 = arith.constant 0 : index
    %c96 = arith.constant 96 : index
    %262 = vector.load %arg6[%c0_81, %c96] : memref<16x128xf32, #tpu.memory_space<vmem>>, vector<16x16xf32>
    tpu.vector_store %arg6[%c0_81, %c96], %261 {strides = array<i32>} : memref<16x128xf32, #tpu.memory_space<vmem>>, vector<16x16xf32>,
    %263 = vector.extract_strided_slice %248 {offsets = [112, 0], sizes = [16, 16], strides = [1, 1]} : vector<128x16xf32> to vector<16x16xf32>
    %c0_82 = arith.constant 0 : index
    %c112 = arith.constant 112 : index
    %264 = vector.load %arg6[%c0_82, %c112] : memref<16x128xf32, #tpu.memory_space<vmem>>, vector<16x16xf32>
    tpu.vector_store %arg6[%c0_82, %c112], %263 {strides = array<i32>} : memref<16x128xf32, #tpu.memory_space<vmem>>, vector<16x16xf32>,
    return
  }
}

</mosaic_0001>

<llo_original>
// kernel: relational_ml_forward.1
$region0: #{relational_ml_forward.1}
  #allocation0 [shape = 'u32[]', space=smem, size = 0x4, offset = 0x4, fixed_abs, tag = 'smem constant byte address 0x4 - core index']
  #allocation1 [shape = 'u32[144,128]{1,0:T(1,128)}', space=vmem, size = 0x12000, scoped, tag = 'internal scratch']
  %s0 = inlined_call_operand.vmem [shape: f32[64,17], index: 0, kind: input, shape index: {}]
  %s1 = inlined_call_operand.vmem [shape: f32[64,64], index: 1, kind: input, shape index: {}]
  %s2 = inlined_call_operand.vmem [shape: f32[17,3], index: 2, kind: input, shape index: {}]
  %s3 = inlined_call_operand.vmem [shape: f32[6,96], index: 3, kind: input, shape index: {}]
  %s4 = inlined_call_operand.vmem [shape: f32[64,32], index: 4, kind: input, shape index: {}]
  %s5 = inlined_call_operand.vmem [shape: f32[97,16], index: 5, kind: input, shape index: {}]
  %s6 = inlined_call_operand.vmem [shape: f32[16,128], index: 6, kind: output, shape index: {}]
  %s7 = sld [smem:[#allocation0]]
  $region34: #{relational_ml_forward.1} parent=0
    _
  %s9 = ssub.s32 1, %s7
  %s10 = scalar_select 0, %s9, %s7
  // Predicated region
  $region2: #{relational_ml_forward.1} parent=0 // pred_check
    _
  $region3: #{relational_ml_forward.1} parent=0 // pred_check_branch
    %12 = sbr.rel (0) target = $region5
  $region4: #{relational_ml_forward.1} parent=0 // pred_region
    _
  $region5: #{relational_ml_forward.1} parent=0 // pred_fallthru
    _
  // Predicated region
  $region6: #{relational_ml_forward.1} parent=0 // pred_check
    _
  $region7: #{relational_ml_forward.1} parent=0 // pred_check_branch
    %14 = sbr.rel (0) target = $region9
  $region8: #{relational_ml_forward.1} parent=0 // pred_region
    _
  $region9: #{relational_ml_forward.1} parent=0 // pred_fallthru
    _
  // Predicated region
  $region10: #{relational_ml_forward.1} parent=0 // pred_check
    _
  $region11: #{relational_ml_forward.1} parent=0 // pred_check_branch
    %16 = sbr.rel (0) target = $region13
  $region12: #{relational_ml_forward.1} parent=0 // pred_region
    _
  $region13: #{relational_ml_forward.1} parent=0 // pred_fallthru
    _
  // Predicated region
  $region14: #{relational_ml_forward.1} parent=0 // pred_check
    _
  $region15: #{relational_ml_forward.1} parent=0 // pred_check_branch
    %18 = sbr.rel (0) target = $region17
  $region16: #{relational_ml_forward.1} parent=0 // pred_region
    _
  $region17: #{relational_ml_forward.1} parent=0 // pred_fallthru
    _
  // Predicated region
  $region18: #{relational_ml_forward.1} parent=0 // pred_check
    _
  $region19: #{relational_ml_forward.1} parent=0 // pred_check_branch
    %20 = sbr.rel (0) target = $region21
  $region20: #{relational_ml_forward.1} parent=0 // pred_region
    _
  $region21: #{relational_ml_forward.1} parent=0 // pred_fallthru
    _
  // Predicated region
  $region22: #{relational_ml_forward.1} parent=0 // pred_check
    _
  $region23: #{relational_ml_forward.1} parent=0 // pred_check_branch
    %22 = sbr.rel (0) target = $region25
  $region24: #{relational_ml_forward.1} parent=0 // pred_region
    _
  $region25: #{relational_ml_forward.1} parent=0 // pred_fallthru
    _
  %v23 = vld [vmem:[%s0] sm:$0xff]
  %v24 = vld [vmem:[%s0 + $0x8] sm:$0xff]
  %v25 = vld [vmem:[%s0 + $0x10] sm:$0xff]
  %v26 = vld [vmem:[%s0 + $0x18] sm:$0xff]
  %v27 = vld [vmem:[%s0 + $0x20] sm:$0xff]
  %v28 = vld [vmem:[%s0 + $0x28] sm:$0xff]
  %v29 = vld [vmem:[%s0 + $0x30] sm:$0xff]
  %v30 = vld [vmem:[%s0 + $0x38] sm:$0xff]
  %v31 = vld [vmem:[%s2] sm:$0xff]
  %v32 = vld [vmem:[%s2 + $0x8] sm:$0xff]
  %v33 = vld [vmem:[%s2 + $0x10] sm:$0x1]
  %vm34 = vcmask 138240
  %v36 = vsel %vm34, %v23, 0
  %v39 = vsel %vm34, %v24, 0
  %v42 = vsel %vm34, %v25, 0
  %v45 = vsel %vm34, %v26, 0
  %v48 = vsel %vm34, %v27, 0
  %v51 = vsel %vm34, %v28, 0
  %v54 = vsel %vm34, %v29, 0
  %v57 = vsel %vm34, %v30, 0
  %vm59 = vcmask 1040384
  %v61 = vsel %vm59, %v33, 0
  %63 = vmatprep.subr.mxu0 0.0
  %64 = vmatpush1.msra.mxu0 %v31
  %65 = vmatprep.subr.mxu0 0.0
  %66 = vmatpush1.msra.mxu0 %v32
  %67 = vmatprep.subr.mxu0 0.0
  %68 = vmatpush1.msra.mxu0 %v61
  %69 = vmatprep.subr.mxu0 0.0
  %70 = vmatpush1.msra.mxu0 0.0
  %71 = vmatprep.subr.mxu0 0.0
  %72 = vmatpush1.msra.mxu0 0.0
  %73 = vmatprep.subr.mxu0 0.0
  %74 = vmatpush1.msra.mxu0 0.0
  %75 = vmatprep.subr.mxu0 0.0
  %76 = vmatpush1.msra.mxu0 0.0
  %77 = vmatprep.subr.mxu0 0.0
  %78 = vmatpush1.msra.mxu0 0.0
  %79 = vmatprep.subr.mxu0 0.0
  %80 = vmatpush1.msra.mxu0 0.0
  %81 = vmatprep.subr.mxu0 0.0
  %82 = vmatpush1.msra.mxu0 0.0
  %83 = vmatprep.subr.mxu0 0.0
  %84 = vmatpush1.msra.mxu0 0.0
  %85 = vmatprep.subr.mxu0 0.0
  %86 = vmatpush1.msra.mxu0 0.0
  %87 = vmatprep.subr.mxu0 0.0
  %88 = vmatpush1.msra.mxu0 0.0
  %89 = vmatprep.subr.mxu0 0.0
  %90 = vmatpush1.msra.mxu0 0.0
  %91 = vmatprep.subr.mxu0 0.0
  %92 = vmatpush1.msra.mxu0 0.0
  %93 = vmatprep.subr.mxu0 0.0
  %94 = vmatpush1.msra.mxu0 0.0
  %95 = vmatprep.subr.mxu0 0.0
  %96 = vmatpush1.msra.mxu0 0.0
  %97 = vmatprep.subr.mxu0 0.0
  %98 = vmatpush1.msra.mxu0 0.0
  %99 = vmatprep.subr.mxu0 0.0
  %100 = vmatpush1.msra.mxu0 0.0
  %101 = vmatprep.subr.mxu0 0.0
  %102 = vmatpush1.msra.mxu0 0.0
  %103 = vmatprep.subr.mxu0 0.0
  %104 = vmatpush1.msra.mxu0 0.0
  %105 = vmatprep.subr.mxu0 0.0
  %106 = vmatpush1.msra.mxu0 0.0
  %107 = vmatprep.subr.mxu0 0.0
  %108 = vmatpush1.msra.mxu0 0.0
  %109 = vmatprep.subr.mxu0 0.0
  %110 = vmatpush1.msra.mxu0 0.0
  %111 = vmatprep.subr.mxu0 0.0
  %112 = vmatpush1.msra.mxu0 0.0
  %113 = vmatprep.subr.mxu0 0.0
  %114 = vmatpush1.msra.mxu0 0.0
  %115 = vmatprep.subr.mxu0 0.0
  %116 = vmatpush1.msra.mxu0 0.0
  %117 = vmatprep.subr.mxu0 0.0
  %118 = vmatpush1.msra.mxu0 0.0
  %119 = vmatprep.subr.mxu0 0.0
  %120 = vmatpush1.msra.mxu0 0.0
  %121 = vmatprep.subr.mxu0 0.0
  %122 = vmatpush1.msra.mxu0 0.0
  %123 = vmatprep.subr.mxu0 0.0
  %124 = vmatpush1.msra.mxu0 0.0
  %125 = vmatprep.subr.mxu0 0.0
  %126 = vmatpush1.msra.mxu0 0.0
  %127 = vmatprep.mubr.f32.mxu0 0.0
  %128 = vmatmul.mubr.f32.gmra.mrb[0].mxu0 %v36
  %v129 = vpop.f32.mrb[0].mxu0
  %v130 = vadd.f32 0.0, %v129
  %v131 = vpop.f32.mrb[0].mxu0
  %132 = vmatprep.mubr.f32.mxu0 0.0
  %133 = vmatmul.mubr.f32.gmra.mrb[0].mxu0 %v39
  %v134 = vpop.f32.mrb[0].mxu0
  %v135 = vadd.f32 0.0, %v134
  %v136 = vpop.f32.mrb[0].mxu0
  %137 = vmatprep.mubr.f32.mxu0 0.0
  %138 = vmatmul.mubr.f32.gmra.mrb[0].mxu0 %v42
  %v139 = vpop.f32.mrb[0].mxu0
  %v140 = vadd.f32 0.0, %v139
  %v141 = vpop.f32.mrb[0].mxu0
  %142 = vmatprep.mubr.f32.mxu0 0.0
  %143 = vmatmul.mubr.f32.gmra.mrb[0].mxu0 %v45
  %v144 = vpop.f32.mrb[0].mxu0
  %v145 = vadd.f32 0.0, %v144
  %v146 = vpop.f32.mrb[0].mxu0
  %147 = vmatprep.mubr.f32.mxu0 0.0
  %148 = vmatmul.mubr.f32.gmra.mrb[0].mxu0 %v48
  %v149 = vpop.f32.mrb[0].mxu0
  %v150 = vadd.f32 0.0, %v149
  %v151 = vpop.f32.mrb[0].mxu0
  %152 = vmatprep.mubr.f32.mxu0 0.0
  %153 = vmatmul.mubr.f32.gmra.mrb[0].mxu0 %v51
  %v154 = vpop.f32.mrb[0].mxu0
  %v155 = vadd.f32 0.0, %v154
  %v156 = vpop.f32.mrb[0].mxu0
  %157 = vmatprep.mubr.f32.mxu0 0.0
  %158 = vmatmul.mubr.f32.gmra.mrb[0].mxu0 %v54
  %v159 = vpop.f32.mrb[0].mxu0
  %v160 = vadd.f32 0.0, %v159
  %v161 = vpop.f32.mrb[0].mxu0
  %162 = vmatprep.mubr.f32.mxu0 0.0
  %163 = vmatmul.mubr.f32.gmra.mrb[0].mxu0 %v57
  %v164 = vpop.f32.mrb[0].mxu0
  %v165 = vadd.f32 0.0, %v164
  %v166 = vpop.f32.mrb[0].mxu0
  %167 = vdwg.mxu0
  %v168 = vld [vmem:[%s1] sm:$0xff]
  %v169 = vld [vmem:[%s1 + $0x8] sm:$0xff]
  %v170 = vld [vmem:[%s1 + $0x10] sm:$0xff]
  %v171 = vld [vmem:[%s1 + $0x18] sm:$0xff]
  %v172 = vld [vmem:[%s1 + $0x20] sm:$0xff]
  %v173 = vld [vmem:[%s1 + $0x28] sm:$0xff]
  %v174 = vld [vmem:[%s1 + $0x30] sm:$0xff]
  %v175 = vld [vmem:[%s1 + $0x38] sm:$0xff]
  %vm176 = vcmask 523264
  %v178 = vsel %vm176, %v168, 0
  %v181 = vsel %vm176, %v169, 0
  %v184 = vsel %vm176, %v170, 0
  %v187 = vsel %vm176, %v171, 0
  %v190 = vsel %vm176, %v172, 0
  %v193 = vsel %vm176, %v173, 0
  %v196 = vsel %vm176, %v174, 0
  %v199 = vsel %vm176, %v175, 0
  %201 = vmatprep.subr.mxu0 0.0
  %202 = vmatpush1.msra.mxu0 %v130
  %203 = vmatprep.subr.mxu0 0.0
  %204 = vmatpush1.msra.mxu0 %v135
  %205 = vmatprep.subr.mxu0 0.0
  %206 = vmatpush1.msra.mxu0 %v140
  %207 = vmatprep.subr.mxu0 0.0
  %208 = vmatpush1.msra.mxu0 %v145
  %209 = vmatprep.subr.mxu0 0.0
  %210 = vmatpush1.msra.mxu0 %v150
  %211 = vmatprep.subr.mxu0 0.0
  %212 = vmatpush1.msra.mxu0 %v155
  %213 = vmatprep.subr.mxu0 0.0
  %214 = vmatpush1.msra.mxu0 %v160
  %215 = vmatprep.subr.mxu0 0.0
  %216 = vmatpush1.msra.mxu0 %v165
  %217 = vmatprep.subr.mxu0 0.0
  %218 = vmatpush1.msra.mxu0 0.0
  %219 = vmatprep.subr.mxu0 0.0
  %220 = vmatpush1.msra.mxu0 0.0
  %221 = vmatprep.subr.mxu0 0.0
  %222 = vmatpush1.msra.mxu0 0.0
  %223 = vmatprep.subr.mxu0 0.0
  %224 = vmatpush1.msra.mxu0 0.0
  %225 = vmatprep.subr.mxu0 0.0
  %226 = vmatpush1.msra.mxu0 0.0
  %227 = vmatprep.subr.mxu0 0.0
  %228 = vmatpush1.msra.mxu0 0.0
  %229 = vmatprep.subr.mxu0 0.0
  %230 = vmatpush1.msra.mxu0 0.0
  %231 = vmatprep.subr.mxu0 0.0
  %232 = vmatpush1.msra.mxu0 0.0
  %233 = vmatprep.subr.mxu0 0.0
  %234 = vmatpush1.msra.mxu0 0.0
  %235 = vmatprep.subr.mxu0 0.0
  %236 = vmatpush1.msra.mxu0 0.0
  %237 = vmatprep.subr.mxu0 0.0
  %238 = vmatpush1.msra.mxu0 0.0
  %239 = vmatprep.subr.mxu0 0.0
  %240 = vmatpush1.msra.mxu0 0.0
  %241 = vmatprep.subr.mxu0 0.0
  %242 = vmatpush1.msra.mxu0 0.0
  %243 = vmatprep.subr.mxu0 0.0
  %244 = vmatpush1.msra.mxu0 0.0
  %245 = vmatprep.subr.mxu0 0.0
  %246 = vmatpush1.msra.mxu0 0.0
  %247 = vmatprep.subr.mxu0 0.0
  %248 = vmatpush1.msra.mxu0 0.0
  %249 = vmatprep.subr.mxu0 0.0
  %250 = vmatpush1.msra.mxu0 0.0
  %251 = vmatprep.subr.mxu0 0.0
  %252 = vmatpush1.msra.mxu0 0.0
  %253 = vmatprep.subr.mxu0 0.0
  %254 = vmatpush1.msra.mxu0 0.0
  %255 = vmatprep.subr.mxu0 0.0
  %256 = vmatpush1.msra.mxu0 0.0
  %257 = vmatprep.subr.mxu0 0.0
  %258 = vmatpush1.msra.mxu0 0.0
  %259 = vmatprep.subr.mxu0 0.0
  %260 = vmatpush1.msra.mxu0 0.0
  %261 = vmatprep.subr.mxu0 0.0
  %262 = vmatpush1.msra.mxu0 0.0
  %263 = vmatprep.subr.mxu0 0.0
  %264 = vmatpush1.msra.mxu0 0.0
  %265 = vmatprep.mubr.f32.mxu0 0.0
  %266 = vmatmul.mubr.f32.gmra.mrb[0].mxu0 %v178
  %v267 = vpop.f32.mrb[0].mxu0
  %v268 = vadd.f32 0.0, %v267
  %v269 = vpop.f32.mrb[0].mxu0
  %270 = vmatprep.mubr.f32.mxu0 0.0
  %271 = vmatmul.mubr.f32.gmra.mrb[0].mxu0 %v181
  %v272 = vpop.f32.mrb[0].mxu0
  %v273 = vadd.f32 0.0, %v272
  %v274 = vpop.f32.mrb[0].mxu0
  %275 = vmatprep.mubr.f32.mxu0 0.0
  %276 = vmatmul.mubr.f32.gmra.mrb[0].mxu0 %v184
  %v277 = vpop.f32.mrb[0].mxu0
  %v278 = vadd.f32 0.0, %v277
  %v279 = vpop.f32.mrb[0].mxu0
  %280 = vmatprep.mubr.f32.mxu0 0.0
  %281 = vmatmul.mubr.f32.gmra.mrb[0].mxu0 %v187
  %v282 = vpop.f32.mrb[0].mxu0
  %v283 = vadd.f32 0.0, %v282
  %v284 = vpop.f32.mrb[0].mxu0
  %285 = vmatprep.mubr.f32.mxu0 0.0
  %286 = vmatmul.mubr.f32.gmra.mrb[0].mxu0 %v190
  %v287 = vpop.f32.mrb[0].mxu0
  %v288 = vadd.f32 0.0, %v287
  %v289 = vpop.f32.mrb[0].mxu0
  %290 = vmatprep.mubr.f32.mxu0 0.0
  %291 = vmatmul.mubr.f32.gmra.mrb[0].mxu0 %v193
  %v292 = vpop.f32.mrb[0].mxu0
  %v293 = vadd.f32 0.0, %v292
  %v294 = vpop.f32.mrb[0].mxu0
  %295 = vmatprep.mubr.f32.mxu0 0.0
  %296 = vmatmul.mubr.f32.gmra.mrb[0].mxu0 %v196
  %v297 = vpop.f32.mrb[0].mxu0
  %v298 = vadd.f32 0.0, %v297
  %v299 = vpop.f32.mrb[0].mxu0
  %300 = vmatprep.mubr.f32.mxu0 0.0
  %301 = vmatmul.mubr.f32.gmra.mrb[0].mxu0 %v199
  %v302 = vpop.f32.mrb[0].mxu0
  %v303 = vadd.f32 0.0, %v302
  %v304 = vpop.f32.mrb[0].mxu0
  %305 = vdwg.mxu0
  %v306 = vld [vmem:[%s3] sm:$0x3f]
  %308 = vset.pattern.permute.xlu0 0
  %309 = vperm.xlu0 %308, %v268
  %v310 = vpop.permute.xlu0 %309
  %313 = vset.pattern.permute.xlu0 0
  %314 = vperm.xlu0 %313, %v273
  %v315 = vpop.permute.xlu0 %314
  %318 = vset.pattern.permute.xlu0 0
  %319 = vperm.xlu0 %318, %v278
  %v320 = vpop.permute.xlu0 %319
  %323 = vset.pattern.permute.xlu0 0
  %324 = vperm.xlu0 %323, %v283
  %v325 = vpop.permute.xlu0 %324
  %328 = vset.pattern.permute.xlu0 0
  %329 = vperm.xlu0 %328, %v288
  %v330 = vpop.permute.xlu0 %329
  %333 = vset.pattern.permute.xlu0 0
  %334 = vperm.xlu0 %333, %v293
  %v335 = vpop.permute.xlu0 %334
  %338 = vset.pattern.permute.xlu0 0
  %339 = vperm.xlu0 %338, %v298
  %v340 = vpop.permute.xlu0 %339
  %343 = vset.pattern.permute.xlu0 0
  %344 = vperm.xlu0 %343, %v303
  %v345 = vpop.permute.xlu0 %344
  %v347 = vlaneseq
  %v348 = vshrl.u32 %v347, 7
  %v349 = vsub.s32 0, %v348
  %v350 = vrot.slane %v306, %v349
  %v351 = vmul.f32 %v310, %v350
  %v352 = vmul.f32 %v315, %v350
  %v353 = vmul.f32 %v320, %v350
  %v354 = vmul.f32 %v325, %v350
  %v355 = vmul.f32 %v330, %v350
  %v356 = vmul.f32 %v335, %v350
  %v357 = vmul.f32 %v340, %v350
  %v358 = vmul.f32 %v345, %v350
  %v359 = vlaneseq
  %v360 = vshrl.u32 %v359, 7
  %v361 = vsub.s32 3, %v360
  %v362 = vrot.slane %v306, %v361
  %v363 = vadd.f32 %v362, %v351
  %v364 = vadd.f32 %v362, %v352
  %v365 = vadd.f32 %v362, %v353
  %v366 = vadd.f32 %v362, %v354
  %v367 = vadd.f32 %v362, %v355
  %v368 = vadd.f32 %v362, %v356
  %v369 = vadd.f32 %v362, %v357
  %v370 = vadd.f32 %v362, %v358
  %371 = vset.pattern.permute.xlu0 1
  %372 = vperm.xlu0 %371, %v268
  %v373 = vpop.permute.xlu0 %372
  %375 = vset.pattern.permute.xlu0 1
  %376 = vperm.xlu0 %375, %v273
  %v377 = vpop.permute.xlu0 %376
  %379 = vset.pattern.permute.xlu0 1
  %380 = vperm.xlu0 %379, %v278
  %v381 = vpop.permute.xlu0 %380
  %383 = vset.pattern.permute.xlu0 1
  %384 = vperm.xlu0 %383, %v283
  %v385 = vpop.permute.xlu0 %384
  %387 = vset.pattern.permute.xlu0 1
  %388 = vperm.xlu0 %387, %v288
  %v389 = vpop.permute.xlu0 %388
  %391 = vset.pattern.permute.xlu0 1
  %392 = vperm.xlu0 %391, %v293
  %v393 = vpop.permute.xlu0 %392
  %395 = vset.pattern.permute.xlu0 1
  %396 = vperm.xlu0 %395, %v298
  %v397 = vpop.permute.xlu0 %396
  %399 = vset.pattern.permute.xlu0 1
  %400 = vperm.xlu0 %399, %v303
  %v401 = vpop.permute.xlu0 %400
  %v403 = vlaneseq
  %v404 = vshrl.u32 %v403, 7
  %v405 = vsub.s32 1, %v404
  %v406 = vrot.slane %v306, %v405
  %v407 = vmul.f32 %v373, %v406
  %v408 = vmul.f32 %v377, %v406
  %v409 = vmul.f32 %v381, %v406
  %v410 = vmul.f32 %v385, %v406
  %v411 = vmul.f32 %v389, %v406
  %v412 = vmul.f32 %v393, %v406
  %v413 = vmul.f32 %v397, %v406
  %v414 = vmul.f32 %v401, %v406
  %v415 = vadd.f32 %v363, %v407
  %v416 = vadd.f32 %v364, %v408
  %v417 = vadd.f32 %v365, %v409
  %v418 = vadd.f32 %v366, %v410
  %v419 = vadd.f32 %v367, %v411
  %v420 = vadd.f32 %v368, %v412
  %v421 = vadd.f32 %v369, %v413
  %v422 = vadd.f32 %v370, %v414
  %423 = vset.pattern.permute.xlu0 2
  %424 = vperm.xlu0 %423, %v268
  %v425 = vpop.permute.xlu0 %424
  %427 = vset.pattern.permute.xlu0 2
  %428 = vperm.xlu0 %427, %v273
  %v429 = vpop.permute.xlu0 %428
  %431 = vset.pattern.permute.xlu0 2
  %432 = vperm.xlu0 %431, %v278
  %v433 = vpop.permute.xlu0 %432
  %435 = vset.pattern.permute.xlu0 2
  %436 = vperm.xlu0 %435, %v283
  %v437 = vpop.permute.xlu0 %436
  %439 = vset.pattern.permute.xlu0 2
  %440 = vperm.xlu0 %439, %v288
  %v441 = vpop.permute.xlu0 %440
  %443 = vset.pattern.permute.xlu0 2
  %444 = vperm.xlu0 %443, %v293
  %v445 = vpop.permute.xlu0 %444
  %447 = vset.pattern.permute.xlu0 2
  %448 = vperm.xlu0 %447, %v298
  %v449 = vpop.permute.xlu0 %448
  %451 = vset.pattern.permute.xlu0 2
  %452 = vperm.xlu0 %451, %v303
  %v453 = vpop.permute.xlu0 %452
  %v455 = vlaneseq
  %v456 = vshrl.u32 %v455, 7
  %v457 = vsub.s32 2, %v456
  %v458 = vrot.slane %v306, %v457
  %v459 = vmul.f32 %v425, %v458
  %v460 = vmul.f32 %v429, %v458
  %v461 = vmul.f32 %v433, %v458
  %v462 = vmul.f32 %v437, %v458
  %v463 = vmul.f32 %v441, %v458
  %v464 = vmul.f32 %v445, %v458
  %v465 = vmul.f32 %v449, %v458
  %v466 = vmul.f32 %v453, %v458
  %v467 = vadd.f32 %v415, %v459
  %v468 = vadd.f32 %v416, %v460
  %v469 = vadd.f32 %v417, %v461
  %v470 = vadd.f32 %v418, %v462
  %v471 = vadd.f32 %v419, %v463
  %v472 = vadd.f32 %v420, %v464
  %v473 = vadd.f32 %v421, %v465
  %v474 = vadd.f32 %v422, %v466
  %vm475 = vcmask 261120
  %v476 = vsel %vm475, %v467, 0.0
  %477 = vadd.xlane.f32.xlu0 %v476
  %v478 = vpop.xlane.xlu0 %477
  %v479 = vsel %vm475, %v468, 0.0
  %480 = vadd.xlane.f32.xlu0 %v479
  %v481 = vpop.xlane.xlu0 %480
  %v482 = vsel %vm475, %v469, 0.0
  %483 = vadd.xlane.f32.xlu0 %v482
  %v484 = vpop.xlane.xlu0 %483
  %v485 = vsel %vm475, %v470, 0.0
  %486 = vadd.xlane.f32.xlu0 %v485
  %v487 = vpop.xlane.xlu0 %486
  %v488 = vsel %vm475, %v471, 0.0
  %489 = vadd.xlane.f32.xlu0 %v488
  %v490 = vpop.xlane.xlu0 %489
  %v491 = vsel %vm475, %v472, 0.0
  %492 = vadd.xlane.f32.xlu0 %v491
  %v493 = vpop.xlane.xlu0 %492
  %v494 = vsel %vm475, %v473, 0.0
  %495 = vadd.xlane.f32.xlu0 %v494
  %v496 = vpop.xlane.xlu0 %495
  %v497 = vsel %vm475, %v474, 0.0
  %498 = vadd.xlane.f32.xlu0 %v497
  %v499 = vpop.xlane.xlu0 %498
  %v500 = vrcp.pop 32.0
  %v501 = vmul.f32 %v478, %v500
  %v502 = vmul.f32 %v481, %v500
  %v503 = vmul.f32 %v484, %v500
  %v504 = vmul.f32 %v487, %v500
  %v505 = vmul.f32 %v490, %v500
  %v506 = vmul.f32 %v493, %v500
  %v507 = vmul.f32 %v496, %v500
  %v508 = vmul.f32 %v499, %v500
  %v509 = vsub.f32 %v467, %v501
  %v510 = vsub.f32 %v468, %v502
  %v511 = vsub.f32 %v469, %v503
  %v512 = vsub.f32 %v470, %v504
  %v513 = vsub.f32 %v471, %v505
  %v514 = vsub.f32 %v472, %v506
  %v515 = vsub.f32 %v473, %v507
  %v516 = vsub.f32 %v474, %v508
  %v517 = vmul.f32 %v509, %v509
  %v518 = vmul.f32 %v510, %v510
  %v519 = vmul.f32 %v511, %v511
  %v520 = vmul.f32 %v512, %v512
  %v521 = vmul.f32 %v513, %v513
  %v522 = vmul.f32 %v514, %v514
  %v523 = vmul.f32 %v515, %v515
  %v524 = vmul.f32 %v516, %v516
  %v525 = vsel %vm475, %v517, 0.0
  %526 = vadd.xlane.f32.xlu0 %v525
  %v527 = vpop.xlane.xlu0 %526
  %v528 = vsel %vm475, %v518, 0.0
  %529 = vadd.xlane.f32.xlu0 %v528
  %v530 = vpop.xlane.xlu0 %529
  %v531 = vsel %vm475, %v519, 0.0
  %532 = vadd.xlane.f32.xlu0 %v531
  %v533 = vpop.xlane.xlu0 %532
  %v534 = vsel %vm475, %v520, 0.0
  %535 = vadd.xlane.f32.xlu0 %v534
  %v536 = vpop.xlane.xlu0 %535
  %v537 = vsel %vm475, %v521, 0.0
  %538 = vadd.xlane.f32.xlu0 %v537
  %v539 = vpop.xlane.xlu0 %538
  %v540 = vsel %vm475, %v522, 0.0
  %541 = vadd.xlane.f32.xlu0 %v540
  %v542 = vpop.xlane.xlu0 %541
  %v543 = vsel %vm475, %v523, 0.0
  %544 = vadd.xlane.f32.xlu0 %v543
  %v545 = vpop.xlane.xlu0 %544
  %v546 = vsel %vm475, %v524, 0.0
  %547 = vadd.xlane.f32.xlu0 %v546
  %v548 = vpop.xlane.xlu0 %547
  %v549 = vmul.f32 %v527, %v500
  %v550 = vmul.f32 %v530, %v500
  %v551 = vmul.f32 %v533, %v500
  %v552 = vmul.f32 %v536, %v500
  %v553 = vmul.f32 %v539, %v500
  %v554 = vmul.f32 %v542, %v500
  %v555 = vmul.f32 %v545, %v500
  %v556 = vmul.f32 %v548, %v500
  %v557 = vadd.f32 %v549, 1e-05
  %v558 = vadd.f32 %v550, 1e-05
  %v559 = vadd.f32 %v551, 1e-05
  %v560 = vadd.f32 %v552, 1e-05
  %v561 = vadd.f32 %v553, 1e-05
  %v562 = vadd.f32 %v554, 1e-05
  %v563 = vadd.f32 %v555, 1e-05
  %v564 = vadd.f32 %v556, 1e-05
  %v565 = vrsqrt.pop %v557
  %v566 = vrsqrt.pop %v558
  %v567 = vrsqrt.pop %v559
  %v568 = vrsqrt.pop %v560
  %v569 = vrsqrt.pop %v561
  %v570 = vrsqrt.pop %v562
  %v571 = vrsqrt.pop %v563
  %v572 = vrsqrt.pop %v564
  %v573 = vmul.f32 %v509, %v565
  %v574 = vmul.f32 %v510, %v566
  %v575 = vmul.f32 %v511, %v567
  %v576 = vmul.f32 %v512, %v568
  %v577 = vmul.f32 %v513, %v569
  %v578 = vmul.f32 %v514, %v570
  %v579 = vmul.f32 %v515, %v571
  %v580 = vmul.f32 %v516, %v572
  %v581 = vlaneseq
  %v582 = vshrl.u32 %v581, 7
  %v583 = vsub.s32 4, %v582
  %v584 = vrot.slane %v306, %v583
  %v585 = vmul.f32 %v573, %v584
  %v586 = vmul.f32 %v574, %v584
  %v587 = vmul.f32 %v575, %v584
  %v588 = vmul.f32 %v576, %v584
  %v589 = vmul.f32 %v577, %v584
  %v590 = vmul.f32 %v578, %v584
  %v591 = vmul.f32 %v579, %v584
  %v592 = vmul.f32 %v580, %v584
  %v593 = vlaneseq
  %v594 = vshrl.u32 %v593, 7
  %v595 = vsub.s32 5, %v594
  %v596 = vrot.slane %v306, %v595
  %v597 = vadd.f32 %v585, %v596
  %v598 = vadd.f32 %v586, %v596
  %v599 = vadd.f32 %v587, %v596
  %v600 = vadd.f32 %v588, %v596
  %v601 = vadd.f32 %v589, %v596
  %v602 = vadd.f32 %v590, %v596
  %v603 = vadd.f32 %v591, %v596
  %v604 = vadd.f32 %v592, %v596
  %613 = vrot.lane.b32.xlu0 %v467, 96
  %v614 = vpop.permute.xlu0 %613
  %615 = vrot.lane.b32.xlu0 %v468, 96
  %v616 = vpop.permute.xlu0 %615
  %617 = vrot.lane.b32.xlu0 %v469, 96
  %v618 = vpop.permute.xlu0 %617
  %619 = vrot.lane.b32.xlu0 %v470, 96
  %v620 = vpop.permute.xlu0 %619
  %621 = vrot.lane.b32.xlu0 %v471, 96
  %v622 = vpop.permute.xlu0 %621
  %623 = vrot.lane.b32.xlu0 %v472, 96
  %v624 = vpop.permute.xlu0 %623
  %625 = vrot.lane.b32.xlu0 %v473, 96
  %v626 = vpop.permute.xlu0 %625
  %627 = vrot.lane.b32.xlu0 %v474, 96
  %v628 = vpop.permute.xlu0 %627
  %v637 = vsel %vm475, %v614, 0.0
  %638 = vadd.xlane.f32.xlu0 %v637
  %v639 = vpop.xlane.xlu0 %638
  %v640 = vsel %vm475, %v616, 0.0
  %641 = vadd.xlane.f32.xlu0 %v640
  %v642 = vpop.xlane.xlu0 %641
  %v643 = vsel %vm475, %v618, 0.0
  %644 = vadd.xlane.f32.xlu0 %v643
  %v645 = vpop.xlane.xlu0 %644
  %v646 = vsel %vm475, %v620, 0.0
  %647 = vadd.xlane.f32.xlu0 %v646
  %v648 = vpop.xlane.xlu0 %647
  %v649 = vsel %vm475, %v622, 0.0
  %650 = vadd.xlane.f32.xlu0 %v649
  %v651 = vpop.xlane.xlu0 %650
  %v652 = vsel %vm475, %v624, 0.0
  %653 = vadd.xlane.f32.xlu0 %v652
  %v654 = vpop.xlane.xlu0 %653
  %v655 = vsel %vm475, %v626, 0.0
  %656 = vadd.xlane.f32.xlu0 %v655
  %v657 = vpop.xlane.xlu0 %656
  %v658 = vsel %vm475, %v628, 0.0
  %659 = vadd.xlane.f32.xlu0 %v658
  %v660 = vpop.xlane.xlu0 %659
  %v661 = vmul.f32 %v639, %v500
  %v662 = vmul.f32 %v642, %v500
  %v663 = vmul.f32 %v645, %v500
  %v664 = vmul.f32 %v648, %v500
  %v665 = vmul.f32 %v651, %v500
  %v666 = vmul.f32 %v654, %v500
  %v667 = vmul.f32 %v657, %v500
  %v668 = vmul.f32 %v660, %v500
  %v669 = vsub.f32 %v467, %v661
  %v670 = vsub.f32 %v468, %v662
  %v671 = vsub.f32 %v469, %v663
  %v672 = vsub.f32 %v470, %v664
  %v673 = vsub.f32 %v471, %v665
  %v674 = vsub.f32 %v472, %v666
  %v675 = vsub.f32 %v473, %v667
  %v676 = vsub.f32 %v474, %v668
  %v677 = vmul.f32 %v669, %v669
  %v678 = vmul.f32 %v670, %v670
  %v679 = vmul.f32 %v671, %v671
  %v680 = vmul.f32 %v672, %v672
  %v681 = vmul.f32 %v673, %v673
  %v682 = vmul.f32 %v674, %v674
  %v683 = vmul.f32 %v675, %v675
  %v684 = vmul.f32 %v676, %v676
  %693 = vrot.lane.b32.xlu0 %v677, 96
  %v694 = vpop.permute.xlu0 %693
  %695 = vrot.lane.b32.xlu0 %v678, 96
  %v696 = vpop.permute.xlu0 %695
  %697 = vrot.lane.b32.xlu0 %v679, 96
  %v698 = vpop.permute.xlu0 %697
  %699 = vrot.lane.b32.xlu0 %v680, 96
  %v700 = vpop.permute.xlu0 %699
  %701 = vrot.lane.b32.xlu0 %v681, 96
  %v702 = vpop.permute.xlu0 %701
  %703 = vrot.lane.b32.xlu0 %v682, 96
  %v704 = vpop.permute.xlu0 %703
  %705 = vrot.lane.b32.xlu0 %v683, 96
  %v706 = vpop.permute.xlu0 %705
  %707 = vrot.lane.b32.xlu0 %v684, 96
  %v708 = vpop.permute.xlu0 %707
  %v717 = vsel %vm475, %v694, 0.0
  %718 = vadd.xlane.f32.xlu0 %v717
  %v719 = vpop.xlane.xlu0 %718
  %v720 = vsel %vm475, %v696, 0.0
  %721 = vadd.xlane.f32.xlu0 %v720
  %v722 = vpop.xlane.xlu0 %721
  %v723 = vsel %vm475, %v698, 0.0
  %724 = vadd.xlane.f32.xlu0 %v723
  %v725 = vpop.xlane.xlu0 %724
  %v726 = vsel %vm475, %v700, 0.0
  %727 = vadd.xlane.f32.xlu0 %v726
  %v728 = vpop.xlane.xlu0 %727
  %v729 = vsel %vm475, %v702, 0.0
  %730 = vadd.xlane.f32.xlu0 %v729
  %v731 = vpop.xlane.xlu0 %730
  %v732 = vsel %vm475, %v704, 0.0
  %733 = vadd.xlane.f32.xlu0 %v732
  %v734 = vpop.xlane.xlu0 %733
  %v735 = vsel %vm475, %v706, 0.0
  %736 = vadd.xlane.f32.xlu0 %v735
  %v737 = vpop.xlane.xlu0 %736
  %v738 = vsel %vm475, %v708, 0.0
  %739 = vadd.xlane.f32.xlu0 %v738
  %v740 = vpop.xlane.xlu0 %739
  %v741 = vmul.f32 %v719, %v500
  %v742 = vmul.f32 %v722, %v500
  %v743 = vmul.f32 %v725, %v500
  %v744 = vmul.f32 %v728, %v500
  %v745 = vmul.f32 %v731, %v500
  %v746 = vmul.f32 %v734, %v500
  %v747 = vmul.f32 %v737, %v500
  %v748 = vmul.f32 %v740, %v500
  %v749 = vadd.f32 %v741, 1e-05
  %v750 = vadd.f32 %v742, 1e-05
  %v751 = vadd.f32 %v743, 1e-05
  %v752 = vadd.f32 %v744, 1e-05
  %v753 = vadd.f32 %v745, 1e-05
  %v754 = vadd.f32 %v746, 1e-05
  %v755 = vadd.f32 %v747, 1e-05
  %v756 = vadd.f32 %v748, 1e-05
  %v757 = vrsqrt.pop %v749
  %v758 = vrsqrt.pop %v750
  %v759 = vrsqrt.pop %v751
  %v760 = vrsqrt.pop %v752
  %v761 = vrsqrt.pop %v753
  %v762 = vrsqrt.pop %v754
  %v763 = vrsqrt.pop %v755
  %v764 = vrsqrt.pop %v756
  %v765 = vmul.f32 %v669, %v757
  %v766 = vmul.f32 %v670, %v758
  %v767 = vmul.f32 %v671, %v759
  %v768 = vmul.f32 %v672, %v760
  %v769 = vmul.f32 %v673, %v761
  %v770 = vmul.f32 %v674, %v762
  %v771 = vmul.f32 %v675, %v763
  %v772 = vmul.f32 %v676, %v764
  %v773 = vmul.f32 %v765, %v584
  %v774 = vmul.f32 %v766, %v584
  %v775 = vmul.f32 %v767, %v584
  %v776 = vmul.f32 %v768, %v584
  %v777 = vmul.f32 %v769, %v584
  %v778 = vmul.f32 %v770, %v584
  %v779 = vmul.f32 %v771, %v584
  %v780 = vmul.f32 %v772, %v584
  %v781 = vadd.f32 %v773, %v596
  %v782 = vadd.f32 %v774, %v596
  %v783 = vadd.f32 %v775, %v596
  %v784 = vadd.f32 %v776, %v596
  %v785 = vadd.f32 %v777, %v596
  %v786 = vadd.f32 %v778, %v596
  %v787 = vadd.f32 %v779, %v596
  %v788 = vadd.f32 %v780, %v596
  %789 = vrot.lane.b32.xlu0 %v467, 64
  %v790 = vpop.permute.xlu0 %789
  %791 = vrot.lane.b32.xlu0 %v468, 64
  %v792 = vpop.permute.xlu0 %791
  %793 = vrot.lane.b32.xlu0 %v469, 64
  %v794 = vpop.permute.xlu0 %793
  %795 = vrot.lane.b32.xlu0 %v470, 64
  %v796 = vpop.permute.xlu0 %795
  %797 = vrot.lane.b32.xlu0 %v471, 64
  %v798 = vpop.permute.xlu0 %797
  %799 = vrot.lane.b32.xlu0 %v472, 64
  %v800 = vpop.permute.xlu0 %799
  %801 = vrot.lane.b32.xlu0 %v473, 64
  %v802 = vpop.permute.xlu0 %801
  %803 = vrot.lane.b32.xlu0 %v474, 64
  %v804 = vpop.permute.xlu0 %803
  %v813 = vsel %vm475, %v790, 0.0
  %814 = vadd.xlane.f32.xlu0 %v813
  %v815 = vpop.xlane.xlu0 %814
  %v816 = vsel %vm475, %v792, 0.0
  %817 = vadd.xlane.f32.xlu0 %v816
  %v818 = vpop.xlane.xlu0 %817
  %v819 = vsel %vm475, %v794, 0.0
  %820 = vadd.xlane.f32.xlu0 %v819
  %v821 = vpop.xlane.xlu0 %820
  %v822 = vsel %vm475, %v796, 0.0
  %823 = vadd.xlane.f32.xlu0 %v822
  %v824 = vpop.xlane.xlu0 %823
  %v825 = vsel %vm475, %v798, 0.0
  %826 = vadd.xlane.f32.xlu0 %v825
  %v827 = vpop.xlane.xlu0 %826
  %v828 = vsel %vm475, %v800, 0.0
  %829 = vadd.xlane.f32.xlu0 %v828
  %v830 = vpop.xlane.xlu0 %829
  %v831 = vsel %vm475, %v802, 0.0
  %832 = vadd.xlane.f32.xlu0 %v831
  %v833 = vpop.xlane.xlu0 %832
  %v834 = vsel %vm475, %v804, 0.0
  %835 = vadd.xlane.f32.xlu0 %v834
  %v836 = vpop.xlane.xlu0 %835
  %v837 = vmul.f32 %v815, %v500
  %v838 = vmul.f32 %v818, %v500
  %v839 = vmul.f32 %v821, %v500
  %v840 = vmul.f32 %v824, %v500
  %v841 = vmul.f32 %v827, %v500
  %v842 = vmul.f32 %v830, %v500
  %v843 = vmul.f32 %v833, %v500
  %v844 = vmul.f32 %v836, %v500
  %v845 = vsub.f32 %v467, %v837
  %v846 = vsub.f32 %v468, %v838
  %v847 = vsub.f32 %v469, %v839
  %v848 = vsub.f32 %v470, %v840
  %v849 = vsub.f32 %v471, %v841
  %v850 = vsub.f32 %v472, %v842
  %v851 = vsub.f32 %v473, %v843
  %v852 = vsub.f32 %v474, %v844
  %v853 = vmul.f32 %v845, %v845
  %v854 = vmul.f32 %v846, %v846
  %v855 = vmul.f32 %v847, %v847
  %v856 = vmul.f32 %v848, %v848
  %v857 = vmul.f32 %v849, %v849
  %v858 = vmul.f32 %v850, %v850
  %v859 = vmul.f32 %v851, %v851
  %v860 = vmul.f32 %v852, %v852
  %869 = vrot.lane.b32.xlu0 %v853, 64
  %v870 = vpop.permute.xlu0 %869
  %871 = vrot.lane.b32.xlu0 %v854, 64
  %v872 = vpop.permute.xlu0 %871
  %873 = vrot.lane.b32.xlu0 %v855, 64
  %v874 = vpop.permute.xlu0 %873
  %875 = vrot.lane.b32.xlu0 %v856, 64
  %v876 = vpop.permute.xlu0 %875
  %877 = vrot.lane.b32.xlu0 %v857, 64
  %v878 = vpop.permute.xlu0 %877
  %879 = vrot.lane.b32.xlu0 %v858, 64
  %v880 = vpop.permute.xlu0 %879
  %881 = vrot.lane.b32.xlu0 %v859, 64
  %v882 = vpop.permute.xlu0 %881
  %883 = vrot.lane.b32.xlu0 %v860, 64
  %v884 = vpop.permute.xlu0 %883
  %v893 = vsel %vm475, %v870, 0.0
  %894 = vadd.xlane.f32.xlu0 %v893
  %v895 = vpop.xlane.xlu0 %894
  %v896 = vsel %vm475, %v872, 0.0
  %897 = vadd.xlane.f32.xlu0 %v896
  %v898 = vpop.xlane.xlu0 %897
  %v899 = vsel %vm475, %v874, 0.0
  %900 = vadd.xlane.f32.xlu0 %v899
  %v901 = vpop.xlane.xlu0 %900
  %v902 = vsel %vm475, %v876, 0.0
  %903 = vadd.xlane.f32.xlu0 %v902
  %v904 = vpop.xlane.xlu0 %903
  %v905 = vsel %vm475, %v878, 0.0
  %906 = vadd.xlane.f32.xlu0 %v905
  %v907 = vpop.xlane.xlu0 %906
  %v908 = vsel %vm475, %v880, 0.0
  %909 = vadd.xlane.f32.xlu0 %v908
  %v910 = vpop.xlane.xlu0 %909
  %v911 = vsel %vm475, %v882, 0.0
  %912 = vadd.xlane.f32.xlu0 %v911
  %v913 = vpop.xlane.xlu0 %912
  %v914 = vsel %vm475, %v884, 0.0
  %915 = vadd.xlane.f32.xlu0 %v914
  %v916 = vpop.xlane.xlu0 %915
  %v917 = vmul.f32 %v895, %v500
  %v918 = vmul.f32 %v898, %v500
  %v919 = vmul.f32 %v901, %v500
  %v920 = vmul.f32 %v904, %v500
  %v921 = vmul.f32 %v907, %v500
  %v922 = vmul.f32 %v910, %v500
  %v923 = vmul.f32 %v913, %v500
  %v924 = vmul.f32 %v916, %v500
  %v925 = vadd.f32 %v917, 1e-05
  %v926 = vadd.f32 %v918, 1e-05
  %v927 = vadd.f32 %v919, 1e-05
  %v928 = vadd.f32 %v920, 1e-05
  %v929 = vadd.f32 %v921, 1e-05
  %v930 = vadd.f32 %v922, 1e-05
  %v931 = vadd.f32 %v923, 1e-05
  %v932 = vadd.f32 %v924, 1e-05
  %v933 = vrsqrt.pop %v925
  %v934 = vrsqrt.pop %v926
  %v935 = vrsqrt.pop %v927
  %v936 = vrsqrt.pop %v928
  %v937 = vrsqrt.pop %v929
  %v938 = vrsqrt.pop %v930
  %v939 = vrsqrt.pop %v931
  %v940 = vrsqrt.pop %v932
  %v941 = vmul.f32 %v845, %v933
  %v942 = vmul.f32 %v846, %v934
  %v943 = vmul.f32 %v847, %v935
  %v944 = vmul.f32 %v848, %v936
  %v945 = vmul.f32 %v849, %v937
  %v946 = vmul.f32 %v850, %v938
  %v947 = vmul.f32 %v851, %v939
  %v948 = vmul.f32 %v852, %v940
  %v949 = vmul.f32 %v941, %v584
  %v950 = vmul.f32 %v942, %v584
  %v951 = vmul.f32 %v943, %v584
  %v952 = vmul.f32 %v944, %v584
  %v953 = vmul.f32 %v945, %v584
  %v954 = vmul.f32 %v946, %v584
  %v955 = vmul.f32 %v947, %v584
  %v956 = vmul.f32 %v948, %v584
  %v957 = vadd.f32 %v949, %v596
  %v958 = vadd.f32 %v950, %v596
  %v959 = vadd.f32 %v951, %v596
  %v960 = vadd.f32 %v952, %v596
  %v961 = vadd.f32 %v953, %v596
  %v962 = vadd.f32 %v954, %v596
  %v963 = vadd.f32 %v955, %v596
  %v964 = vadd.f32 %v956, %v596
  %v965 = vld [vmem:[%s4] sm:$0xff]
  %v966 = vld [vmem:[%s4 + $0x8] sm:$0xff]
  %v967 = vld [vmem:[%s4 + $0x10] sm:$0xff]
  %v968 = vld [vmem:[%s4 + $0x18] sm:$0xff]
  %v969 = vld [vmem:[%s4 + $0x20] sm:$0xff]
  %v970 = vld [vmem:[%s4 + $0x28] sm:$0xff]
  %v971 = vld [vmem:[%s4 + $0x30] sm:$0xff]
  %v972 = vld [vmem:[%s4 + $0x38] sm:$0xff]
  %981 = vrot.lane.b32.xlu0 %v965, 64
  %v982 = vpop.permute.xlu0 %981
  %983 = vrot.lane.b32.xlu0 %v966, 64
  %v984 = vpop.permute.xlu0 %983
  %985 = vrot.lane.b32.xlu0 %v967, 64
  %v986 = vpop.permute.xlu0 %985
  %987 = vrot.lane.b32.xlu0 %v968, 64
  %v988 = vpop.permute.xlu0 %987
  %989 = vrot.lane.b32.xlu0 %v969, 64
  %v990 = vpop.permute.xlu0 %989
  %991 = vrot.lane.b32.xlu0 %v970, 64
  %v992 = vpop.permute.xlu0 %991
  %993 = vrot.lane.b32.xlu0 %v971, 64
  %v994 = vpop.permute.xlu0 %993
  %995 = vrot.lane.b32.xlu0 %v972, 64
  %v996 = vpop.permute.xlu0 %995
  %v1005 = vmul.f32 %v957, %v982
  %v1006 = vmul.f32 %v958, %v984
  %v1007 = vmul.f32 %v959, %v986
  %v1008 = vmul.f32 %v960, %v988
  %v1009 = vmul.f32 %v961, %v990
  %v1010 = vmul.f32 %v962, %v992
  %v1011 = vmul.f32 %v963, %v994
  %v1012 = vmul.f32 %v964, %v996
  %1015 = vrot.lane.b32.xlu0 %v781, 96
  %v1016 = vpop.permute.xlu0 %1015
  %1017 = vrot.lane.b32.xlu0 %v782, 96
  %v1018 = vpop.permute.xlu0 %1017
  %v1020 = vsel %vm475, %v597, 0
  %v1023 = vsel %vm475, %v598, 0
  %v1025 = vsel %vm475, %v1016, 0
  %v1027 = vsel %vm475, %v1018, 0
  %1029 = vmatprep.subr.mxu0 0.0
  %1030 = vmatpush1.xpose.msra.mxu0 %v1025
  %1031 = vmatprep.subr.mxu0 0.0
  %1032 = vmatpush1.xpose.msra.mxu0 %v1027
  %1033 = vmatprep.subr.mxu0 0.0
  %1034 = vmatpush1.xpose.msra.mxu0 0.0
  %1035 = vmatprep.subr.mxu0 0.0
  %1036 = vmatpush1.xpose.msra.mxu0 0.0
  %1037 = vmatprep.subr.mxu0 0.0
  %1038 = vmatpush1.xpose.msra.mxu0 0.0
  %1039 = vmatprep.subr.mxu0 0.0
  %1040 = vmatpush1.xpose.msra.mxu0 0.0
  %1041 = vmatprep.subr.mxu0 0.0
  %1042 = vmatpush1.xpose.msra.mxu0 0.0
  %1043 = vmatprep.subr.mxu0 0.0
  %1044 = vmatpush1.xpose.msra.mxu0 0.0
  %1045 = vmatprep.subr.mxu0 0.0
  %1046 = vmatpush1.xpose.msra.mxu0 0.0
  %1047 = vmatprep.subr.mxu0 0.0
  %1048 = vmatpush1.xpose.msra.mxu0 0.0
  %1049 = vmatprep.subr.mxu0 0.0
  %1050 = vmatpush1.xpose.msra.mxu0 0.0
  %1051 = vmatprep.subr.mxu0 0.0
  %1052 = vmatpush1.xpose.msra.mxu0 0.0
  %1053 = vmatprep.subr.mxu0 0.0
  %1054 = vmatpush1.xpose.msra.mxu0 0.0
  %1055 = vmatprep.subr.mxu0 0.0
  %1056 = vmatpush1.xpose.msra.mxu0 0.0
  %1057 = vmatprep.subr.mxu0 0.0
  %1058 = vmatpush1.xpose.msra.mxu0 0.0
  %1059 = vmatprep.subr.mxu0 0.0
  %1060 = vmatpush1.xpose.msra.mxu0 0.0
  %1061 = vmatprep.subr.mxu0 0.0
  %1062 = vmatpush1.xpose.msra.mxu0 0.0
  %1063 = vmatprep.subr.mxu0 0.0
  %1064 = vmatpush1.xpose.msra.mxu0 0.0
  %1065 = vmatprep.subr.mxu0 0.0
  %1066 = vmatpush1.xpose.msra.mxu0 0.0
  %1067 = vmatprep.subr.mxu0 0.0
  %1068 = vmatpush1.xpose.msra.mxu0 0.0
  %1069 = vmatprep.subr.mxu0 0.0
  %1070 = vmatpush1.xpose.msra.mxu0 0.0
  %1071 = vmatprep.subr.mxu0 0.0
  %1072 = vmatpush1.xpose.msra.mxu0 0.0
  %1073 = vmatprep.subr.mxu0 0.0
  %1074 = vmatpush1.xpose.msra.mxu0 0.0
  %1075 = vmatprep.subr.mxu0 0.0
  %1076 = vmatpush1.xpose.msra.mxu0 0.0
  %1077 = vmatprep.subr.mxu0 0.0
  %1078 = vmatpush1.xpose.msra.mxu0 0.0
  %1079 = vmatprep.subr.mxu0 0.0
  %1080 = vmatpush1.xpose.msra.mxu0 0.0
  %1081 = vmatprep.subr.mxu0 0.0
  %1082 = vmatpush1.xpose.msra.mxu0 0.0
  %1083 = vmatprep.subr.mxu0 0.0
  %1084 = vmatpush1.xpose.msra.mxu0 0.0
  %1085 = vmatprep.subr.mxu0 0.0
  %1086 = vmatpush1.xpose.msra.mxu0 0.0
  %1087 = vmatprep.subr.mxu0 0.0
  %1088 = vmatpush1.xpose.msra.mxu0 0.0
  %1089 = vmatprep.subr.mxu0 0.0
  %1090 = vmatpush1.xpose.msra.mxu0 0.0
  %1091 = vmatprep.subr.mxu0 0.0
  %1092 = vmatpush1.xpose.msra.mxu0 0.0
  %1093 = vmatprep.mubr.f32.mxu0 0.0
  %1094 = vmatmul.mubr.f32.gmra.mrb[0].mxu0 %v1020
  %v1095 = vpop.f32.mrb[0].mxu0
  %v1096 = vadd.f32 0.0, %v1095
  %v1097 = vpop.f32.mrb[0].mxu0
  %1098 = vmatprep.mubr.f32.mxu0 0.0
  %1099 = vmatmul.mubr.f32.gmra.mrb[0].mxu0 %v1023
  %v1100 = vpop.f32.mrb[0].mxu0
  %v1101 = vadd.f32 0.0, %v1100
  %v1102 = vpop.f32.mrb[0].mxu0
  %1103 = vdwg.mxu0
  %v1104 = vmul.f32 %v1096, 0.25
  %v1105 = vmul.f32 %v1101, 0.25
  %vm1106 = vcmask 130048
  %v1107 = vsel %vm1106, %v1104, -inf
  %1108 = vmax.xlane.f32.xlu0 %v1107
  %v1109 = vpop.xlane.xlu0 %1108
  %v1110 = vsel %vm1106, %v1105, -inf
  %1111 = vmax.xlane.f32.xlu0 %v1110
  %v1112 = vpop.xlane.xlu0 %1111
  %v1113 = vsub.f32 %v1104, %v1109
  %v1114 = vsub.f32 %v1105, %v1112
  %v1115 = vmul.f32 %v1113, 1.442695
  %v1116 = vpow.pop %v1115
  %v1117 = vmul.f32 %v1114, 1.442695
  %v1118 = vpow.pop %v1117
  %v1119 = vrcp.pop %v1116
  %v1120 = vrcp.pop %v1118
  %v1121 = vsel %vm1106, %v1116, 0.0
  %1122 = vadd.xlane.f32.xlu0 %v1121
  %v1123 = vpop.xlane.xlu0 %1122
  %v1124 = vsel %vm1106, %v1118, 0.0
  %1125 = vadd.xlane.f32.xlu0 %v1124
  %v1126 = vpop.xlane.xlu0 %1125
  %v1127 = vrcp.pop %v1123
  %v1128 = vmul.f32 %v1116, %v1127
  %v1129 = vrcp.pop %v1126
  %v1130 = vmul.f32 %v1118, %v1129
  %v1131 = vsel %vm1106, %v1119, 0.0
  %1132 = vadd.xlane.f32.xlu0 %v1131
  %v1133 = vpop.xlane.xlu0 %1132
  %v1134 = vsel %vm1106, %v1120, 0.0
  %1135 = vadd.xlane.f32.xlu0 %v1134
  %v1136 = vpop.xlane.xlu0 %1135
  %v1137 = vrcp.pop %v1133
  %v1138 = vmul.f32 %v1119, %v1137
  %v1139 = vrcp.pop %v1136
  %v1140 = vmul.f32 %v1120, %v1139
  %1143 = vrot.lane.b32.xlu0 %v957, 64
  %v1144 = vpop.permute.xlu0 %1143
  %1145 = vrot.lane.b32.xlu0 %v958, 64
  %v1146 = vpop.permute.xlu0 %1145
  %v1150 = vsel %vm1106, %v1128, 0
  %v1153 = vsel %vm1106, %v1130, 0
  %1155 = vmatprep.subr.mxu0 0.0
  %1156 = vmatpush1.msra.mxu0 %v1144
  %1157 = vmatprep.subr.mxu0 0.0
  %1158 = vmatpush1.msra.mxu0 %v1146
  %1159 = vmatprep.subr.mxu0 0.0
  %1160 = vmatpush1.msra.mxu0 0.0
  %1161 = vmatprep.subr.mxu0 0.0
  %1162 = vmatpush1.msra.mxu0 0.0
  %1163 = vmatprep.subr.mxu0 0.0
  %1164 = vmatpush1.msra.mxu0 0.0
  %1165 = vmatprep.subr.mxu0 0.0
  %1166 = vmatpush1.msra.mxu0 0.0
  %1167 = vmatprep.subr.mxu0 0.0
  %1168 = vmatpush1.msra.mxu0 0.0
  %1169 = vmatprep.subr.mxu0 0.0
  %1170 = vmatpush1.msra.mxu0 0.0
  %1171 = vmatprep.subr.mxu0 0.0
  %1172 = vmatpush1.msra.mxu0 0.0
  %1173 = vmatprep.subr.mxu0 0.0
  %1174 = vmatpush1.msra.mxu0 0.0
  %1175 = vmatprep.subr.mxu0 0.0
  %1176 = vmatpush1.msra.mxu0 0.0
  %1177 = vmatprep.subr.mxu0 0.0
  %1178 = vmatpush1.msra.mxu0 0.0
  %1179 = vmatprep.subr.mxu0 0.0
  %1180 = vmatpush1.msra.mxu0 0.0
  %1181 = vmatprep.subr.mxu0 0.0
  %1182 = vmatpush1.msra.mxu0 0.0
  %1183 = vmatprep.subr.mxu0 0.0
  %1184 = vmatpush1.msra.mxu0 0.0
  %1185 = vmatprep.subr.mxu0 0.0
  %1186 = vmatpush1.msra.mxu0 0.0
  %1187 = vmatprep.subr.mxu0 0.0
  %1188 = vmatpush1.msra.mxu0 0.0
  %1189 = vmatprep.subr.mxu0 0.0
  %1190 = vmatpush1.msra.mxu0 0.0
  %1191 = vmatprep.subr.mxu0 0.0
  %1192 = vmatpush1.msra.mxu0 0.0
  %1193 = vmatprep.subr.mxu0 0.0
  %1194 = vmatpush1.msra.mxu0 0.0
  %1195 = vmatprep.subr.mxu0 0.0
  %1196 = vmatpush1.msra.mxu0 0.0
  %1197 = vmatprep.subr.mxu0 0.0
  %1198 = vmatpush1.msra.mxu0 0.0
  %1199 = vmatprep.subr.mxu0 0.0
  %1200 = vmatpush1.msra.mxu0 0.0
  %1201 = vmatprep.subr.mxu0 0.0
  %1202 = vmatpush1.msra.mxu0 0.0
  %1203 = vmatprep.subr.mxu0 0.0
  %1204 = vmatpush1.msra.mxu0 0.0
  %1205 = vmatprep.subr.mxu0 0.0
  %1206 = vmatpush1.msra.mxu0 0.0
  %1207 = vmatprep.subr.mxu0 0.0
  %1208 = vmatpush1.msra.mxu0 0.0
  %1209 = vmatprep.subr.mxu0 0.0
  %1210 = vmatpush1.msra.mxu0 0.0
  %1211 = vmatprep.subr.mxu0 0.0
  %1212 = vmatpush1.msra.mxu0 0.0
  %1213 = vmatprep.subr.mxu0 0.0
  %1214 = vmatpush1.msra.mxu0 0.0
  %1215 = vmatprep.subr.mxu0 0.0
  %1216 = vmatpush1.msra.mxu0 0.0
  %1217 = vmatprep.subr.mxu0 0.0
  %1218 = vmatpush1.msra.mxu0 0.0
  %1219 = vmatprep.mubr.f32.mxu0 0.0
  %1220 = vmatmul.mubr.f32.gmra.mrb[0].mxu0 %v1150
  %v1221 = vpop.f32.mrb[0].mxu0
  %v1222 = vadd.f32 0.0, %v1221
  %v1223 = vpop.f32.mrb[0].mxu0
  %1224 = vmatprep.mubr.f32.mxu0 0.0
  %1225 = vmatmul.mubr.f32.gmra.mrb[0].mxu0 %v1153
  %v1226 = vpop.f32.mrb[0].mxu0
  %v1227 = vadd.f32 0.0, %v1226
  %v1228 = vpop.f32.mrb[0].mxu0
  %1229 = vdwg.mxu0
  %1230 = vmatprep.subr.mxu0 0.0
  %1231 = vmatpush1.msra.mxu0 %v1222
  %1232 = vmatprep.subr.mxu0 0.0
  %1233 = vmatpush1.msra.mxu0 %v1227
  %1234 = vmatprep.subr.mxu0 0.0
  %1235 = vmatpush1.msra.mxu0 0.0
  %1236 = vmatprep.subr.mxu0 0.0
  %1237 = vmatpush1.msra.mxu0 0.0
  %1238 = vmatprep.subr.mxu0 0.0
  %1239 = vmatpush1.msra.mxu0 0.0
  %1240 = vmatprep.subr.mxu0 0.0
  %1241 = vmatpush1.msra.mxu0 0.0
  %1242 = vmatprep.subr.mxu0 0.0
  %1243 = vmatpush1.msra.mxu0 0.0
  %1244 = vmatprep.subr.mxu0 0.0
  %1245 = vmatpush1.msra.mxu0 0.0
  %1246 = vmatprep.subr.mxu0 0.0
  %1247 = vmatpush1.msra.mxu0 0.0
  %1248 = vmatprep.subr.mxu0 0.0
  %1249 = vmatpush1.msra.mxu0 0.0
  %1250 = vmatprep.subr.mxu0 0.0
  %1251 = vmatpush1.msra.mxu0 0.0
  %1252 = vmatprep.subr.mxu0 0.0
  %1253 = vmatpush1.msra.mxu0 0.0
  %1254 = vmatprep.subr.mxu0 0.0
  %1255 = vmatpush1.msra.mxu0 0.0
  %1256 = vmatprep.subr.mxu0 0.0
  %1257 = vmatpush1.msra.mxu0 0.0
  %1258 = vmatprep.subr.mxu0 0.0
  %1259 = vmatpush1.msra.mxu0 0.0
  %1260 = vmatprep.subr.mxu0 0.0
  %1261 = vmatpush1.msra.mxu0 0.0
  %1262 = vmatprep.subr.mxu0 0.0
  %1263 = vmatpush1.msra.mxu0 0.0
  %1264 = vmatprep.subr.mxu0 0.0
  %1265 = vmatpush1.msra.mxu0 0.0
  %1266 = vmatprep.subr.mxu0 0.0
  %1267 = vmatpush1.msra.mxu0 0.0
  %1268 = vmatprep.subr.mxu0 0.0
  %1269 = vmatpush1.msra.mxu0 0.0
  %1270 = vmatprep.subr.mxu0 0.0
  %1271 = vmatpush1.msra.mxu0 0.0
  %1272 = vmatprep.subr.mxu0 0.0
  %1273 = vmatpush1.msra.mxu0 0.0
  %1274 = vmatprep.subr.mxu0 0.0
  %1275 = vmatpush1.msra.mxu0 0.0
  %1276 = vmatprep.subr.mxu0 0.0
  %1277 = vmatpush1.msra.mxu0 0.0
  %1278 = vmatprep.subr.mxu0 0.0
  %1279 = vmatpush1.msra.mxu0 0.0
  %1280 = vmatprep.subr.mxu0 0.0
  %1281 = vmatpush1.msra.mxu0 0.0
  %1282 = vmatprep.subr.mxu0 0.0
  %1283 = vmatpush1.msra.mxu0 0.0
  %1284 = vmatprep.subr.mxu0 0.0
  %1285 = vmatpush1.msra.mxu0 0.0
  %1286 = vmatprep.subr.mxu0 0.0
  %1287 = vmatpush1.msra.mxu0 0.0
  %1288 = vmatprep.subr.mxu0 0.0
  %1289 = vmatpush1.msra.mxu0 0.0
  %1290 = vmatprep.subr.mxu0 0.0
  %1291 = vmatpush1.msra.mxu0 0.0
  %1292 = vmatprep.subr.mxu0 0.0
  %1293 = vmatpush1.msra.mxu0 0.0
  %1294 = vmatprep.mubr.f32.mxu0 0.0
  %1295 = vmatmul.mubr.f32.gmra.mrb[0].mxu0 %v1150
  %v1296 = vpop.f32.mrb[0].mxu0
  %v1297 = vadd.f32 0.0, %v1296
  %v1298 = vpop.f32.mrb[0].mxu0
  %1299 = vmatprep.mubr.f32.mxu0 0.0
  %1300 = vmatmul.mubr.f32.gmra.mrb[0].mxu0 %v1153
  %v1301 = vpop.f32.mrb[0].mxu0
  %v1302 = vadd.f32 0.0, %v1301
  %v1303 = vpop.f32.mrb[0].mxu0
  %1304 = vdwg.mxu0
  %v1305 = vmul.f32 %v1297, 2.0
  %v1306 = vmul.f32 %v1302, 2.0
  %v1307 = vsub.f32 %v1305, %v1144
  %v1308 = vsub.f32 %v1306, %v1146
  %1311 = vrot.lane.b32.xlu0 %v1005, 64
  %v1312 = vpop.permute.xlu0 %1311
  %1313 = vrot.lane.b32.xlu0 %v1006, 64
  %v1314 = vpop.permute.xlu0 %1313
  %v1318 = vsel %vm1106, %v1138, 0
  %v1321 = vsel %vm1106, %v1140, 0
  %1323 = vmatprep.subr.mxu0 0.0
  %1324 = vmatpush1.msra.mxu0 %v1312
  %1325 = vmatprep.subr.mxu0 0.0
  %1326 = vmatpush1.msra.mxu0 %v1314
  %1327 = vmatprep.subr.mxu0 0.0
  %1328 = vmatpush1.msra.mxu0 0.0
  %1329 = vmatprep.subr.mxu0 0.0
  %1330 = vmatpush1.msra.mxu0 0.0
  %1331 = vmatprep.subr.mxu0 0.0
  %1332 = vmatpush1.msra.mxu0 0.0
  %1333 = vmatprep.subr.mxu0 0.0
  %1334 = vmatpush1.msra.mxu0 0.0
  %1335 = vmatprep.subr.mxu0 0.0
  %1336 = vmatpush1.msra.mxu0 0.0
  %1337 = vmatprep.subr.mxu0 0.0
  %1338 = vmatpush1.msra.mxu0 0.0
  %1339 = vmatprep.subr.mxu0 0.0
  %1340 = vmatpush1.msra.mxu0 0.0
  %1341 = vmatprep.subr.mxu0 0.0
  %1342 = vmatpush1.msra.mxu0 0.0
  %1343 = vmatprep.subr.mxu0 0.0
  %1344 = vmatpush1.msra.mxu0 0.0
  %1345 = vmatprep.subr.mxu0 0.0
  %1346 = vmatpush1.msra.mxu0 0.0
  %1347 = vmatprep.subr.mxu0 0.0
  %1348 = vmatpush1.msra.mxu0 0.0
  %1349 = vmatprep.subr.mxu0 0.0
  %1350 = vmatpush1.msra.mxu0 0.0
  %1351 = vmatprep.subr.mxu0 0.0
  %1352 = vmatpush1.msra.mxu0 0.0
  %1353 = vmatprep.subr.mxu0 0.0
  %1354 = vmatpush1.msra.mxu0 0.0
  %1355 = vmatprep.subr.mxu0 0.0
  %1356 = vmatpush1.msra.mxu0 0.0
  %1357 = vmatprep.subr.mxu0 0.0
  %1358 = vmatpush1.msra.mxu0 0.0
  %1359 = vmatprep.subr.mxu0 0.0
  %1360 = vmatpush1.msra.mxu0 0.0
  %1361 = vmatprep.subr.mxu0 0.0
  %1362 = vmatpush1.msra.mxu0 0.0
  %1363 = vmatprep.subr.mxu0 0.0
  %1364 = vmatpush1.msra.mxu0 0.0
  %1365 = vmatprep.subr.mxu0 0.0
  %1366 = vmatpush1.msra.mxu0 0.0
  %1367 = vmatprep.subr.mxu0 0.0
  %1368 = vmatpush1.msra.mxu0 0.0
  %1369 = vmatprep.subr.mxu0 0.0
  %1370 = vmatpush1.msra.mxu0 0.0
  %1371 = vmatprep.subr.mxu0 0.0
  %1372 = vmatpush1.msra.mxu0 0.0
  %1373 = vmatprep.subr.mxu0 0.0
  %1374 = vmatpush1.msra.mxu0 0.0
  %1375 = vmatprep.subr.mxu0 0.0
  %1376 = vmatpush1.msra.mxu0 0.0
  %1377 = vmatprep.subr.mxu0 0.0
  %1378 = vmatpush1.msra.mxu0 0.0
  %1379 = vmatprep.subr.mxu0 0.0
  %1380 = vmatpush1.msra.mxu0 0.0
  %1381 = vmatprep.subr.mxu0 0.0
  %1382 = vmatpush1.msra.mxu0 0.0
  %1383 = vmatprep.subr.mxu0 0.0
  %1384 = vmatpush1.msra.mxu0 0.0
  %1385 = vmatprep.subr.mxu0 0.0
  %1386 = vmatpush1.msra.mxu0 0.0
  %1387 = vmatprep.mubr.f32.mxu0 0.0
  %1388 = vmatmul.mubr.f32.gmra.mrb[0].mxu0 %v1318
  %v1389 = vpop.f32.mrb[0].mxu0
  %v1390 = vadd.f32 0.0, %v1389
  %v1391 = vpop.f32.mrb[0].mxu0
  %1392 = vmatprep.mubr.f32.mxu0 0.0
  %1393 = vmatmul.mubr.f32.gmra.mrb[0].mxu0 %v1321
  %v1394 = vpop.f32.mrb[0].mxu0
  %v1395 = vadd.f32 0.0, %v1394
  %v1396 = vpop.f32.mrb[0].mxu0
  %1397 = vdwg.mxu0
  %1398 = vmatprep.subr.mxu0 0.0
  %1399 = vmatpush1.msra.mxu0 %v1390
  %1400 = vmatprep.subr.mxu0 0.0
  %1401 = vmatpush1.msra.mxu0 %v1395
  %1402 = vmatprep.subr.mxu0 0.0
  %1403 = vmatpush1.msra.mxu0 0.0
  %1404 = vmatprep.subr.mxu0 0.0
  %1405 = vmatpush1.msra.mxu0 0.0
  %1406 = vmatprep.subr.mxu0 0.0
  %1407 = vmatpush1.msra.mxu0 0.0
  %1408 = vmatprep.subr.mxu0 0.0
  %1409 = vmatpush1.msra.mxu0 0.0
  %1410 = vmatprep.subr.mxu0 0.0
  %1411 = vmatpush1.msra.mxu0 0.0
  %1412 = vmatprep.subr.mxu0 0.0
  %1413 = vmatpush1.msra.mxu0 0.0
  %1414 = vmatprep.subr.mxu0 0.0
  %1415 = vmatpush1.msra.mxu0 0.0
  %1416 = vmatprep.subr.mxu0 0.0
  %1417 = vmatpush1.msra.mxu0 0.0
  %1418 = vmatprep.subr.mxu0 0.0
  %1419 = vmatpush1.msra.mxu0 0.0
  %1420 = vmatprep.subr.mxu0 0.0
  %1421 = vmatpush1.msra.mxu0 0.0
  %1422 = vmatprep.subr.mxu0 0.0
  %1423 = vmatpush1.msra.mxu0 0.0
  %1424 = vmatprep.subr.mxu0 0.0
  %1425 = vmatpush1.msra.mxu0 0.0
  %1426 = vmatprep.subr.mxu0 0.0
  %1427 = vmatpush1.msra.mxu0 0.0
  %1428 = vmatprep.subr.mxu0 0.0
  %1429 = vmatpush1.msra.mxu0 0.0
  %1430 = vmatprep.subr.mxu0 0.0
  %1431 = vmatpush1.msra.mxu0 0.0
  %1432 = vmatprep.subr.mxu0 0.0
  %1433 = vmatpush1.msra.mxu0 0.0
  %1434 = vmatprep.subr.mxu0 0.0
  %1435 = vmatpush1.msra.mxu0 0.0
  %1436 = vmatprep.subr.mxu0 0.0
  %1437 = vmatpush1.msra.mxu0 0.0
  %1438 = vmatprep.subr.mxu0 0.0
  %1439 = vmatpush1.msra.mxu0 0.0
  %1440 = vmatprep.subr.mxu0 0.0
  %1441 = vmatpush1.msra.mxu0 0.0
  %1442 = vmatprep.subr.mxu0 0.0
  %1443 = vmatpush1.msra.mxu0 0.0
  %1444 = vmatprep.subr.mxu0 0.0
  %1445 = vmatpush1.msra.mxu0 0.0
  %1446 = vmatprep.subr.mxu0 0.0
  %1447 = vmatpush1.msra.mxu0 0.0
  %1448 = vmatprep.subr.mxu0 0.0
  %1449 = vmatpush1.msra.mxu0 0.0
  %1450 = vmatprep.subr.mxu0 0.0
  %1451 = vmatpush1.msra.mxu0 0.0
  %1452 = vmatprep.subr.mxu0 0.0
  %1453 = vmatpush1.msra.mxu0 0.0
  %1454 = vmatprep.subr.mxu0 0.0
  %1455 = vmatpush1.msra.mxu0 0.0
  %1456 = vmatprep.subr.mxu0 0.0
  %1457 = vmatpush1.msra.mxu0 0.0
  %1458 = vmatprep.subr.mxu0 0.0
  %1459 = vmatpush1.msra.mxu0 0.0
  %1460 = vmatprep.subr.mxu0 0.0
  %1461 = vmatpush1.msra.mxu0 0.0
  %1462 = vmatprep.mubr.f32.mxu0 0.0
  %1463 = vmatmul.mubr.f32.gmra.mrb[0].mxu0 %v1318
  %v1464 = vpop.f32.mrb[0].mxu0
  %v1465 = vadd.f32 0.0, %v1464
  %v1466 = vpop.f32.mrb[0].mxu0
  %1467 = vmatprep.mubr.f32.mxu0 0.0
  %1468 = vmatmul.mubr.f32.gmra.mrb[0].mxu0 %v1321
  %v1469 = vpop.f32.mrb[0].mxu0
  %v1470 = vadd.f32 0.0, %v1469
  %v1471 = vpop.f32.mrb[0].mxu0
  %1472 = vdwg.mxu0
  %v1473 = vmul.f32 %v1465, 2.0
  %v1474 = vmul.f32 %v1470, 2.0
  %v1475 = vsub.f32 %v1473, %v1312
  %v1476 = vsub.f32 %v1474, %v1314
  %1479 = vrot.lane.b32.xlu0 %v783, 96
  %v1480 = vpop.permute.xlu0 %1479
  %1481 = vrot.lane.b32.xlu0 %v784, 96
  %v1482 = vpop.permute.xlu0 %1481
  %v1484 = vsel %vm475, %v599, 0
  %v1487 = vsel %vm475, %v600, 0
  %v1489 = vsel %vm475, %v1480, 0
  %v1491 = vsel %vm475, %v1482, 0
  %1493 = vmatprep.subr.mxu0 0.0
  %1494 = vmatpush1.xpose.msra.mxu0 %v1489
  %1495 = vmatprep.subr.mxu0 0.0
  %1496 = vmatpush1.xpose.msra.mxu0 %v1491
  %1497 = vmatprep.subr.mxu0 0.0
  %1498 = vmatpush1.xpose.msra.mxu0 0.0
  %1499 = vmatprep.subr.mxu0 0.0
  %1500 = vmatpush1.xpose.msra.mxu0 0.0
  %1501 = vmatprep.subr.mxu0 0.0
  %1502 = vmatpush1.xpose.msra.mxu0 0.0
  %1503 = vmatprep.subr.mxu0 0.0
  %1504 = vmatpush1.xpose.msra.mxu0 0.0
  %1505 = vmatprep.subr.mxu0 0.0
  %1506 = vmatpush1.xpose.msra.mxu0 0.0
  %1507 = vmatprep.subr.mxu0 0.0
  %1508 = vmatpush1.xpose.msra.mxu0 0.0
  %1509 = vmatprep.subr.mxu0 0.0
  %1510 = vmatpush1.xpose.msra.mxu0 0.0
  %1511 = vmatprep.subr.mxu0 0.0
  %1512 = vmatpush1.xpose.msra.mxu0 0.0
  %1513 = vmatprep.subr.mxu0 0.0
  %1514 = vmatpush1.xpose.msra.mxu0 0.0
  %1515 = vmatprep.subr.mxu0 0.0
  %1516 = vmatpush1.xpose.msra.mxu0 0.0
  %1517 = vmatprep.subr.mxu0 0.0
  %1518 = vmatpush1.xpose.msra.mxu0 0.0
  %1519 = vmatprep.subr.mxu0 0.0
  %1520 = vmatpush1.xpose.msra.mxu0 0.0
  %1521 = vmatprep.subr.mxu0 0.0
  %1522 = vmatpush1.xpose.msra.mxu0 0.0
  %1523 = vmatprep.subr.mxu0 0.0
  %1524 = vmatpush1.xpose.msra.mxu0 0.0
  %1525 = vmatprep.subr.mxu0 0.0
  %1526 = vmatpush1.xpose.msra.mxu0 0.0
  %1527 = vmatprep.subr.mxu0 0.0
  %1528 = vmatpush1.xpose.msra.mxu0 0.0
  %1529 = vmatprep.subr.mxu0 0.0
  %1530 = vmatpush1.xpose.msra.mxu0 0.0
  %1531 = vmatprep.subr.mxu0 0.0
  %1532 = vmatpush1.xpose.msra.mxu0 0.0
  %1533 = vmatprep.subr.mxu0 0.0
  %1534 = vmatpush1.xpose.msra.mxu0 0.0
  %1535 = vmatprep.subr.mxu0 0.0
  %1536 = vmatpush1.xpose.msra.mxu0 0.0
  %1537 = vmatprep.subr.mxu0 0.0
  %1538 = vmatpush1.xpose.msra.mxu0 0.0
  %1539 = vmatprep.subr.mxu0 0.0
  %1540 = vmatpush1.xpose.msra.mxu0 0.0
  %1541 = vmatprep.subr.mxu0 0.0
  %1542 = vmatpush1.xpose.msra.mxu0 0.0
  %1543 = vmatprep.subr.mxu0 0.0
  %1544 = vmatpush1.xpose.msra.mxu0 0.0
  %1545 = vmatprep.subr.mxu0 0.0
  %1546 = vmatpush1.xpose.msra.mxu0 0.0
  %1547 = vmatprep.subr.mxu0 0.0
  %1548 = vmatpush1.xpose.msra.mxu0 0.0
  %1549 = vmatprep.subr.mxu0 0.0
  %1550 = vmatpush1.xpose.msra.mxu0 0.0
  %1551 = vmatprep.subr.mxu0 0.0
  %1552 = vmatpush1.xpose.msra.mxu0 0.0
  %1553 = vmatprep.subr.mxu0 0.0
  %1554 = vmatpush1.xpose.msra.mxu0 0.0
  %1555 = vmatprep.subr.mxu0 0.0
  %1556 = vmatpush1.xpose.msra.mxu0 0.0
  %1557 = vmatprep.mubr.f32.mxu0 0.0
  %1558 = vmatmul.mubr.f32.gmra.mrb[0].mxu0 %v1484
  %v1559 = vpop.f32.mrb[0].mxu0
  %v1560 = vadd.f32 0.0, %v1559
  %v1561 = vpop.f32.mrb[0].mxu0
  %1562 = vmatprep.mubr.f32.mxu0 0.0
  %1563 = vmatmul.mubr.f32.gmra.mrb[0].mxu0 %v1487
  %v1564 = vpop.f32.mrb[0].mxu0
  %v1565 = vadd.f32 0.0, %v1564
  %v1566 = vpop.f32.mrb[0].mxu0
  %1567 = vdwg.mxu0
  %v1568 = vmul.f32 %v1560, 0.25
  %v1569 = vmul.f32 %v1565, 0.25
  %v1570 = vsel %vm1106, %v1568, -inf
  %1571 = vmax.xlane.f32.xlu0 %v1570
  %v1572 = vpop.xlane.xlu0 %1571
  %v1573 = vsel %vm1106, %v1569, -inf
  %1574 = vmax.xlane.f32.xlu0 %v1573
  %v1575 = vpop.xlane.xlu0 %1574
  %v1576 = vsub.f32 %v1568, %v1572
  %v1577 = vsub.f32 %v1569, %v1575
  %v1578 = vmul.f32 %v1576, 1.442695
  %v1579 = vpow.pop %v1578
  %v1580 = vmul.f32 %v1577, 1.442695
  %v1581 = vpow.pop %v1580
  %v1582 = vrcp.pop %v1579
  %v1583 = vrcp.pop %v1581
  %v1584 = vsel %vm1106, %v1579, 0.0
  %1585 = vadd.xlane.f32.xlu0 %v1584
  %v1586 = vpop.xlane.xlu0 %1585
  %v1587 = vsel %vm1106, %v1581, 0.0
  %1588 = vadd.xlane.f32.xlu0 %v1587
  %v1589 = vpop.xlane.xlu0 %1588
  %v1590 = vrcp.pop %v1586
  %v1591 = vmul.f32 %v1579, %v1590
  %v1592 = vrcp.pop %v1589
  %v1593 = vmul.f32 %v1581, %v1592
  %v1594 = vsel %vm1106, %v1582, 0.0
  %1595 = vadd.xlane.f32.xlu0 %v1594
  %v1596 = vpop.xlane.xlu0 %1595
  %v1597 = vsel %vm1106, %v1583, 0.0
  %1598 = vadd.xlane.f32.xlu0 %v1597
  %v1599 = vpop.xlane.xlu0 %1598
  %v1600 = vrcp.pop %v1596
  %v1601 = vmul.f32 %v1582, %v1600
  %v1602 = vrcp.pop %v1599
  %v1603 = vmul.f32 %v1583, %v1602
  %1606 = vrot.lane.b32.xlu0 %v959, 64
  %v1607 = vpop.permute.xlu0 %1606
  %1608 = vrot.lane.b32.xlu0 %v960, 64
  %v1609 = vpop.permute.xlu0 %1608
  %v1613 = vsel %vm1106, %v1591, 0
  %v1616 = vsel %vm1106, %v1593, 0
  %1618 = vmatprep.subr.mxu0 0.0
  %1619 = vmatpush1.msra.mxu0 %v1607
  %1620 = vmatprep.subr.mxu0 0.0
  %1621 = vmatpush1.msra.mxu0 %v1609
  %1622 = vmatprep.subr.mxu0 0.0
  %1623 = vmatpush1.msra.mxu0 0.0
  %1624 = vmatprep.subr.mxu0 0.0
  %1625 = vmatpush1.msra.mxu0 0.0
  %1626 = vmatprep.subr.mxu0 0.0
  %1627 = vmatpush1.msra.mxu0 0.0
  %1628 = vmatprep.subr.mxu0 0.0
  %1629 = vmatpush1.msra.mxu0 0.0
  %1630 = vmatprep.subr.mxu0 0.0
  %1631 = vmatpush1.msra.mxu0 0.0
  %1632 = vmatprep.subr.mxu0 0.0
  %1633 = vmatpush1.msra.mxu0 0.0
  %1634 = vmatprep.subr.mxu0 0.0
  %1635 = vmatpush1.msra.mxu0 0.0
  %1636 = vmatprep.subr.mxu0 0.0
  %1637 = vmatpush1.msra.mxu0 0.0
  %1638 = vmatprep.subr.mxu0 0.0
  %1639 = vmatpush1.msra.mxu0 0.0
  %1640 = vmatprep.subr.mxu0 0.0
  %1641 = vmatpush1.msra.mxu0 0.0
  %1642 = vmatprep.subr.mxu0 0.0
  %1643 = vmatpush1.msra.mxu0 0.0
  %1644 = vmatprep.subr.mxu0 0.0
  %1645 = vmatpush1.msra.mxu0 0.0
  %1646 = vmatprep.subr.mxu0 0.0
  %1647 = vmatpush1.msra.mxu0 0.0
  %1648 = vmatprep.subr.mxu0 0.0
  %1649 = vmatpush1.msra.mxu0 0.0
  %1650 = vmatprep.subr.mxu0 0.0
  %1651 = vmatpush1.msra.mxu0 0.0
  %1652 = vmatprep.subr.mxu0 0.0
  %1653 = vmatpush1.msra.mxu0 0.0
  %1654 = vmatprep.subr.mxu0 0.0
  %1655 = vmatpush1.msra.mxu0 0.0
  %1656 = vmatprep.subr.mxu0 0.0
  %1657 = vmatpush1.msra.mxu0 0.0
  %1658 = vmatprep.subr.mxu0 0.0
  %1659 = vmatpush1.msra.mxu0 0.0
  %1660 = vmatprep.subr.mxu0 0.0
  %1661 = vmatpush1.msra.mxu0 0.0
  %1662 = vmatprep.subr.mxu0 0.0
  %1663 = vmatpush1.msra.mxu0 0.0
  %1664 = vmatprep.subr.mxu0 0.0
  %1665 = vmatpush1.msra.mxu0 0.0
  %1666 = vmatprep.subr.mxu0 0.0
  %1667 = vmatpush1.msra.mxu0 0.0
  %1668 = vmatprep.subr.mxu0 0.0
  %1669 = vmatpush1.msra.mxu0 0.0
  %1670 = vmatprep.subr.mxu0 0.0
  %1671 = vmatpush1.msra.mxu0 0.0
  %1672 = vmatprep.subr.mxu0 0.0
  %1673 = vmatpush1.msra.mxu0 0.0
  %1674 = vmatprep.subr.mxu0 0.0
  %1675 = vmatpush1.msra.mxu0 0.0
  %1676 = vmatprep.subr.mxu0 0.0
  %1677 = vmatpush1.msra.mxu0 0.0
  %1678 = vmatprep.subr.mxu0 0.0
  %1679 = vmatpush1.msra.mxu0 0.0
  %1680 = vmatprep.subr.mxu0 0.0
  %1681 = vmatpush1.msra.mxu0 0.0
  %1682 = vmatprep.mubr.f32.mxu0 0.0
  %1683 = vmatmul.mubr.f32.gmra.mrb[0].mxu0 %v1613
  %v1684 = vpop.f32.mrb[0].mxu0
  %v1685 = vadd.f32 0.0, %v1684
  %v1686 = vpop.f32.mrb[0].mxu0
  %1687 = vmatprep.mubr.f32.mxu0 0.0
  %1688 = vmatmul.mubr.f32.gmra.mrb[0].mxu0 %v1616
  %v1689 = vpop.f32.mrb[0].mxu0
  %v1690 = vadd.f32 0.0, %v1689
  %v1691 = vpop.f32.mrb[0].mxu0
  %1692 = vdwg.mxu0
  %1693 = vmatprep.subr.mxu0 0.0
  %1694 = vmatpush1.msra.mxu0 %v1685
  %1695 = vmatprep.subr.mxu0 0.0
  %1696 = vmatpush1.msra.mxu0 %v1690
  %1697 = vmatprep.subr.mxu0 0.0
  %1698 = vmatpush1.msra.mxu0 0.0
  %1699 = vmatprep.subr.mxu0 0.0
  %1700 = vmatpush1.msra.mxu0 0.0
  %1701 = vmatprep.subr.mxu0 0.0
  %1702 = vmatpush1.msra.mxu0 0.0
  %1703 = vmatprep.subr.mxu0 0.0
  %1704 = vmatpush1.msra.mxu0 0.0
  %1705 = vmatprep.subr.mxu0 0.0
  %1706 = vmatpush1.msra.mxu0 0.0
  %1707 = vmatprep.subr.mxu0 0.0
  %1708 = vmatpush1.msra.mxu0 0.0
  %1709 = vmatprep.subr.mxu0 0.0
  %1710 = vmatpush1.msra.mxu0 0.0
  %1711 = vmatprep.subr.mxu0 0.0
  %1712 = vmatpush1.msra.mxu0 0.0
  %1713 = vmatprep.subr.mxu0 0.0
  %1714 = vmatpush1.msra.mxu0 0.0
  %1715 = vmatprep.subr.mxu0 0.0
  %1716 = vmatpush1.msra.mxu0 0.0
  %1717 = vmatprep.subr.mxu0 0.0
  %1718 = vmatpush1.msra.mxu0 0.0
  %1719 = vmatprep.subr.mxu0 0.0
  %1720 = vmatpush1.msra.mxu0 0.0
  %1721 = vmatprep.subr.mxu0 0.0
  %1722 = vmatpush1.msra.mxu0 0.0
  %1723 = vmatprep.subr.mxu0 0.0
  %1724 = vmatpush1.msra.mxu0 0.0
  %1725 = vmatprep.subr.mxu0 0.0
  %1726 = vmatpush1.msra.mxu0 0.0
  %1727 = vmatprep.subr.mxu0 0.0
  %1728 = vmatpush1.msra.mxu0 0.0
  %1729 = vmatprep.subr.mxu0 0.0
  %1730 = vmatpush1.msra.mxu0 0.0
  %1731 = vmatprep.subr.mxu0 0.0
  %1732 = vmatpush1.msra.mxu0 0.0
  %1733 = vmatprep.subr.mxu0 0.0
  %1734 = vmatpush1.msra.mxu0 0.0
  %1735 = vmatprep.subr.mxu0 0.0
  %1736 = vmatpush1.msra.mxu0 0.0
  %1737 = vmatprep.subr.mxu0 0.0
  %1738 = vmatpush1.msra.mxu0 0.0
  %1739 = vmatprep.subr.mxu0 0.0
  %1740 = vmatpush1.msra.mxu0 0.0
  %1741 = vmatprep.subr.mxu0 0.0
  %1742 = vmatpush1.msra.mxu0 0.0
  %1743 = vmatprep.subr.mxu0 0.0
  %1744 = vmatpush1.msra.mxu0 0.0
  %1745 = vmatprep.subr.mxu0 0.0
  %1746 = vmatpush1.msra.mxu0 0.0
  %1747 = vmatprep.subr.mxu0 0.0
  %1748 = vmatpush1.msra.mxu0 0.0
  %1749 = vmatprep.subr.mxu0 0.0
  %1750 = vmatpush1.msra.mxu0 0.0
  %1751 = vmatprep.subr.mxu0 0.0
  %1752 = vmatpush1.msra.mxu0 0.0
  %1753 = vmatprep.subr.mxu0 0.0
  %1754 = vmatpush1.msra.mxu0 0.0
  %1755 = vmatprep.subr.mxu0 0.0
  %1756 = vmatpush1.msra.mxu0 0.0
  %1757 = vmatprep.mubr.f32.mxu0 0.0
  %1758 = vmatmul.mubr.f32.gmra.mrb[0].mxu0 %v1613
  %v1759 = vpop.f32.mrb[0].mxu0
  %v1760 = vadd.f32 0.0, %v1759
  %v1761 = vpop.f32.mrb[0].mxu0
  %1762 = vmatprep.mubr.f32.mxu0 0.0
  %1763 = vmatmul.mubr.f32.gmra.mrb[0].mxu0 %v1616
  %v1764 = vpop.f32.mrb[0].mxu0
  %v1765 = vadd.f32 0.0, %v1764
  %v1766 = vpop.f32.mrb[0].mxu0
  %1767 = vdwg.mxu0
  %v1768 = vmul.f32 %v1760, 2.0
  %v1769 = vmul.f32 %v1765, 2.0
  %v1770 = vsub.f32 %v1768, %v1607
  %v1771 = vsub.f32 %v1769, %v1609
  %1774 = vrot.lane.b32.xlu0 %v1007, 64
  %v1775 = vpop.permute.xlu0 %1774
  %1776 = vrot.lane.b32.xlu0 %v1008, 64
  %v1777 = vpop.permute.xlu0 %1776
  %v1781 = vsel %vm1106, %v1601, 0
  %v1784 = vsel %vm1106, %v1603, 0
  %1786 = vmatprep.subr.mxu0 0.0
  %1787 = vmatpush1.msra.mxu0 %v1775
  %1788 = vmatprep.subr.mxu0 0.0
  %1789 = vmatpush1.msra.mxu0 %v1777
  %1790 = vmatprep.subr.mxu0 0.0
  %1791 = vmatpush1.msra.mxu0 0.0
  %1792 = vmatprep.subr.mxu0 0.0
  %1793 = vmatpush1.msra.mxu0 0.0
  %1794 = vmatprep.subr.mxu0 0.0
  %1795 = vmatpush1.msra.mxu0 0.0
  %1796 = vmatprep.subr.mxu0 0.0
  %1797 = vmatpush1.msra.mxu0 0.0
  %1798 = vmatprep.subr.mxu0 0.0
  %1799 = vmatpush1.msra.mxu0 0.0
  %1800 = vmatprep.subr.mxu0 0.0
  %1801 = vmatpush1.msra.mxu0 0.0
  %1802 = vmatprep.subr.mxu0 0.0
  %1803 = vmatpush1.msra.mxu0 0.0
  %1804 = vmatprep.subr.mxu0 0.0
  %1805 = vmatpush1.msra.mxu0 0.0
  %1806 = vmatprep.subr.mxu0 0.0
  %1807 = vmatpush1.msra.mxu0 0.0
  %1808 = vmatprep.subr.mxu0 0.0
  %1809 = vmatpush1.msra.mxu0 0.0
  %1810 = vmatprep.subr.mxu0 0.0
  %1811 = vmatpush1.msra.mxu0 0.0
  %1812 = vmatprep.subr.mxu0 0.0
  %1813 = vmatpush1.msra.mxu0 0.0
  %1814 = vmatprep.subr.mxu0 0.0
  %1815 = vmatpush1.msra.mxu0 0.0
  %1816 = vmatprep.subr.mxu0 0.0
  %1817 = vmatpush1.msra.mxu0 0.0
  %1818 = vmatprep.subr.mxu0 0.0
  %1819 = vmatpush1.msra.mxu0 0.0
  %1820 = vmatprep.subr.mxu0 0.0
  %1821 = vmatpush1.msra.mxu0 0.0
  %1822 = vmatprep.subr.mxu0 0.0
  %1823 = vmatpush1.msra.mxu0 0.0
  %1824 = vmatprep.subr.mxu0 0.0
  %1825 = vmatpush1.msra.mxu0 0.0
  %1826 = vmatprep.subr.mxu0 0.0
  %1827 = vmatpush1.msra.mxu0 0.0
  %1828 = vmatprep.subr.mxu0 0.0
  %1829 = vmatpush1.msra.mxu0 0.0
  %1830 = vmatprep.subr.mxu0 0.0
  %1831 = vmatpush1.msra.mxu0 0.0
  %1832 = vmatprep.subr.mxu0 0.0
  %1833 = vmatpush1.msra.mxu0 0.0
  %1834 = vmatprep.subr.mxu0 0.0
  %1835 = vmatpush1.msra.mxu0 0.0
  %1836 = vmatprep.subr.mxu0 0.0
  %1837 = vmatpush1.msra.mxu0 0.0
  %1838 = vmatprep.subr.mxu0 0.0
  %1839 = vmatpush1.msra.mxu0 0.0
  %1840 = vmatprep.subr.mxu0 0.0
  %1841 = vmatpush1.msra.mxu0 0.0
  %1842 = vmatprep.subr.mxu0 0.0
  %1843 = vmatpush1.msra.mxu0 0.0
  %1844 = vmatprep.subr.mxu0 0.0
  %1845 = vmatpush1.msra.mxu0 0.0
  %1846 = vmatprep.subr.mxu0 0.0
  %1847 = vmatpush1.msra.mxu0 0.0
  %1848 = vmatprep.subr.mxu0 0.0
  %1849 = vmatpush1.msra.mxu0 0.0
  %1850 = vmatprep.mubr.f32.mxu0 0.0
  %1851 = vmatmul.mubr.f32.gmra.mrb[0].mxu0 %v1781
  %v1852 = vpop.f32.mrb[0].mxu0
  %v1853 = vadd.f32 0.0, %v1852
  %v1854 = vpop.f32.mrb[0].mxu0
  %1855 = vmatprep.mubr.f32.mxu0 0.0
  %1856 = vmatmul.mubr.f32.gmra.mrb[0].mxu0 %v1784
  %v1857 = vpop.f32.mrb[0].mxu0
  %v1858 = vadd.f32 0.0, %v1857
  %v1859 = vpop.f32.mrb[0].mxu0
  %1860 = vdwg.mxu0
  %1861 = vmatprep.subr.mxu0 0.0
  %1862 = vmatpush1.msra.mxu0 %v1853
  %1863 = vmatprep.subr.mxu0 0.0
  %1864 = vmatpush1.msra.mxu0 %v1858
  %1865 = vmatprep.subr.mxu0 0.0
  %1866 = vmatpush1.msra.mxu0 0.0
  %1867 = vmatprep.subr.mxu0 0.0
  %1868 = vmatpush1.msra.mxu0 0.0
  %1869 = vmatprep.subr.mxu0 0.0
  %1870 = vmatpush1.msra.mxu0 0.0
  %1871 = vmatprep.subr.mxu0 0.0
  %1872 = vmatpush1.msra.mxu0 0.0
  %1873 = vmatprep.subr.mxu0 0.0
  %1874 = vmatpush1.msra.mxu0 0.0
  %1875 = vmatprep.subr.mxu0 0.0
  %1876 = vmatpush1.msra.mxu0 0.0
  %1877 = vmatprep.subr.mxu0 0.0
  %1878 = vmatpush1.msra.mxu0 0.0
  %1879 = vmatprep.subr.mxu0 0.0
  %1880 = vmatpush1.msra.mxu0 0.0
  %1881 = vmatprep.subr.mxu0 0.0
  %1882 = vmatpush1.msra.mxu0 0.0
  %1883 = vmatprep.subr.mxu0 0.0
  %1884 = vmatpush1.msra.mxu0 0.0
  %1885 = vmatprep.subr.mxu0 0.0
  %1886 = vmatpush1.msra.mxu0 0.0
  %1887 = vmatprep.subr.mxu0 0.0
  %1888 = vmatpush1.msra.mxu0 0.0
  %1889 = vmatprep.subr.mxu0 0.0
  %1890 = vmatpush1.msra.mxu0 0.0
  %1891 = vmatprep.subr.mxu0 0.0
  %1892 = vmatpush1.msra.mxu0 0.0
  %1893 = vmatprep.subr.mxu0 0.0
  %1894 = vmatpush1.msra.mxu0 0.0
  %1895 = vmatprep.subr.mxu0 0.0
  %1896 = vmatpush1.msra.mxu0 0.0
  %1897 = vmatprep.subr.mxu0 0.0
  %1898 = vmatpush1.msra.mxu0 0.0
  %1899 = vmatprep.subr.mxu0 0.0
  %1900 = vmatpush1.msra.mxu0 0.0
  %1901 = vmatprep.subr.mxu0 0.0
  %1902 = vmatpush1.msra.mxu0 0.0
  %1903 = vmatprep.subr.mxu0 0.0
  %1904 = vmatpush1.msra.mxu0 0.0
  %1905 = vmatprep.subr.mxu0 0.0
  %1906 = vmatpush1.msra.mxu0 0.0
  %1907 = vmatprep.subr.mxu0 0.0
  %1908 = vmatpush1.msra.mxu0 0.0
  %1909 = vmatprep.subr.mxu0 0.0
  %1910 = vmatpush1.msra.mxu0 0.0
  %1911 = vmatprep.subr.mxu0 0.0
  %1912 = vmatpush1.msra.mxu0 0.0
  %1913 = vmatprep.subr.mxu0 0.0
  %1914 = vmatpush1.msra.mxu0 0.0
  %1915 = vmatprep.subr.mxu0 0.0
  %1916 = vmatpush1.msra.mxu0 0.0
  %1917 = vmatprep.subr.mxu0 0.0
  %1918 = vmatpush1.msra.mxu0 0.0
  %1919 = vmatprep.subr.mxu0 0.0
  %1920 = vmatpush1.msra.mxu0 0.0
  %1921 = vmatprep.subr.mxu0 0.0
  %1922 = vmatpush1.msra.mxu0 0.0
  %1923 = vmatprep.subr.mxu0 0.0
  %1924 = vmatpush1.msra.mxu0 0.0
  %1925 = vmatprep.mubr.f32.mxu0 0.0
  %1926 = vmatmul.mubr.f32.gmra.mrb[0].mxu0 %v1781
  %v1927 = vpop.f32.mrb[0].mxu0
  %v1928 = vadd.f32 0.0, %v1927
  %v1929 = vpop.f32.mrb[0].mxu0
  %1930 = vmatprep.mubr.f32.mxu0 0.0
  %1931 = vmatmul.mubr.f32.gmra.mrb[0].mxu0 %v1784
  %v1932 = vpop.f32.mrb[0].mxu0
  %v1933 = vadd.f32 0.0, %v1932
  %v1934 = vpop.f32.mrb[0].mxu0
  %1935 = vdwg.mxu0
  %v1936 = vmul.f32 %v1928, 2.0
  %v1937 = vmul.f32 %v1933, 2.0
  %v1938 = vsub.f32 %v1936, %v1775
  %v1939 = vsub.f32 %v1937, %v1777
  %1942 = vrot.lane.b32.xlu0 %v785, 96
  %v1943 = vpop.permute.xlu0 %1942
  %1944 = vrot.lane.b32.xlu0 %v786, 96
  %v1945 = vpop.permute.xlu0 %1944
  %v1947 = vsel %vm475, %v601, 0
  %v1950 = vsel %vm475, %v602, 0
  %v1952 = vsel %vm475, %v1943, 0
  %v1954 = vsel %vm475, %v1945, 0
  %1956 = vmatprep.subr.mxu0 0.0
  %1957 = vmatpush1.xpose.msra.mxu0 %v1952
  %1958 = vmatprep.subr.mxu0 0.0
  %1959 = vmatpush1.xpose.msra.mxu0 %v1954
  %1960 = vmatprep.subr.mxu0 0.0
  %1961 = vmatpush1.xpose.msra.mxu0 0.0
  %1962 = vmatprep.subr.mxu0 0.0
  %1963 = vmatpush1.xpose.msra.mxu0 0.0
  %1964 = vmatprep.subr.mxu0 0.0
  %1965 = vmatpush1.xpose.msra.mxu0 0.0
  %1966 = vmatprep.subr.mxu0 0.0
  %1967 = vmatpush1.xpose.msra.mxu0 0.0
  %1968 = vmatprep.subr.mxu0 0.0
  %1969 = vmatpush1.xpose.msra.mxu0 0.0
  %1970 = vmatprep.subr.mxu0 0.0
  %1971 = vmatpush1.xpose.msra.mxu0 0.0
  %1972 = vmatprep.subr.mxu0 0.0
  %1973 = vmatpush1.xpose.msra.mxu0 0.0
  %1974 = vmatprep.subr.mxu0 0.0
  %1975 = vmatpush1.xpose.msra.mxu0 0.0
  %1976 = vmatprep.subr.mxu0 0.0
  %1977 = vmatpush1.xpose.msra.mxu0 0.0
  %1978 = vmatprep.subr.mxu0 0.0
  %1979 = vmatpush1.xpose.msra.mxu0 0.0
  %1980 = vmatprep.subr.mxu0 0.0
  %1981 = vmatpush1.xpose.msra.mxu0 0.0
  %1982 = vmatprep.subr.mxu0 0.0
  %1983 = vmatpush1.xpose.msra.mxu0 0.0
  %1984 = vmatprep.subr.mxu0 0.0
  %1985 = vmatpush1.xpose.msra.mxu0 0.0
  %1986 = vmatprep.subr.mxu0 0.0
  %1987 = vmatpush1.xpose.msra.mxu0 0.0
  %1988 = vmatprep.subr.mxu0 0.0
  %1989 = vmatpush1.xpose.msra.mxu0 0.0
  %1990 = vmatprep.subr.mxu0 0.0
  %1991 = vmatpush1.xpose.msra.mxu0 0.0
  %1992 = vmatprep.subr.mxu0 0.0
  %1993 = vmatpush1.xpose.msra.mxu0 0.0
  %1994 = vmatprep.subr.mxu0 0.0
  %1995 = vmatpush1.xpose.msra.mxu0 0.0
  %1996 = vmatprep.subr.mxu0 0.0
  %1997 = vmatpush1.xpose.msra.mxu0 0.0
  %1998 = vmatprep.subr.mxu0 0.0
  %1999 = vmatpush1.xpose.msra.mxu0 0.0
  %2000 = vmatprep.subr.mxu0 0.0
  %2001 = vmatpush1.xpose.msra.mxu0 0.0
  %2002 = vmatprep.subr.mxu0 0.0
  %2003 = vmatpush1.xpose.msra.mxu0 0.0
  %2004 = vmatprep.subr.mxu0 0.0
  %2005 = vmatpush1.xpose.msra.mxu0 0.0
  %2006 = vmatprep.subr.mxu0 0.0
  %2007 = vmatpush1.xpose.msra.mxu0 0.0
  %2008 = vmatprep.subr.mxu0 0.0
  %2009 = vmatpush1.xpose.msra.mxu0 0.0
  %2010 = vmatprep.subr.mxu0 0.0
  %2011 = vmatpush1.xpose.msra.mxu0 0.0
  %2012 = vmatprep.subr.mxu0 0.0
  %2013 = vmatpush1.xpose.msra.mxu0 0.0
  %2014 = vmatprep.subr.mxu0 0.0
  %2015 = vmatpush1.xpose.msra.mxu0 0.0
  %2016 = vmatprep.subr.mxu0 0.0
  %2017 = vmatpush1.xpose.msra.mxu0 0.0
  %2018 = vmatprep.subr.mxu0 0.0
  %2019 = vmatpush1.xpose.msra.mxu0 0.0
  %2020 = vmatprep.mubr.f32.mxu0 0.0
  %2021 = vmatmul.mubr.f32.gmra.mrb[0].mxu0 %v1947
  %v2022 = vpop.f32.mrb[0].mxu0
  %v2023 = vadd.f32 0.0, %v2022
  %v2024 = vpop.f32.mrb[0].mxu0
  %2025 = vmatprep.mubr.f32.mxu0 0.0
  %2026 = vmatmul.mubr.f32.gmra.mrb[0].mxu0 %v1950
  %v2027 = vpop.f32.mrb[0].mxu0
  %v2028 = vadd.f32 0.0, %v2027
  %v2029 = vpop.f32.mrb[0].mxu0
  %2030 = vdwg.mxu0
  %v2031 = vmul.f32 %v2023, 0.25
  %v2032 = vmul.f32 %v2028, 0.25
  %v2033 = vsel %vm1106, %v2031, -inf
  %2034 = vmax.xlane.f32.xlu0 %v2033
  %v2035 = vpop.xlane.xlu0 %2034
  %v2036 = vsel %vm1106, %v2032, -inf
  %2037 = vmax.xlane.f32.xlu0 %v2036
  %v2038 = vpop.xlane.xlu0 %2037
  %v2039 = vsub.f32 %v2031, %v2035
  %v2040 = vsub.f32 %v2032, %v2038
  %v2041 = vmul.f32 %v2039, 1.442695
  %v2042 = vpow.pop %v2041
  %v2043 = vmul.f32 %v2040, 1.442695
  %v2044 = vpow.pop %v2043
  %v2045 = vrcp.pop %v2042
  %v2046 = vrcp.pop %v2044
  %v2047 = vsel %vm1106, %v2042, 0.0
  %2048 = vadd.xlane.f32.xlu0 %v2047
  %v2049 = vpop.xlane.xlu0 %2048
  %v2050 = vsel %vm1106, %v2044, 0.0
  %2051 = vadd.xlane.f32.xlu0 %v2050
  %v2052 = vpop.xlane.xlu0 %2051
  %v2053 = vrcp.pop %v2049
  %v2054 = vmul.f32 %v2042, %v2053
  %v2055 = vrcp.pop %v2052
  %v2056 = vmul.f32 %v2044, %v2055
  %v2057 = vsel %vm1106, %v2045, 0.0
  %2058 = vadd.xlane.f32.xlu0 %v2057
  %v2059 = vpop.xlane.xlu0 %2058
  %v2060 = vsel %vm1106, %v2046, 0.0
  %2061 = vadd.xlane.f32.xlu0 %v2060
  %v2062 = vpop.xlane.xlu0 %2061
  %v2063 = vrcp.pop %v2059
  %v2064 = vmul.f32 %v2045, %v2063
  %v2065 = vrcp.pop %v2062
  %v2066 = vmul.f32 %v2046, %v2065
  %2069 = vrot.lane.b32.xlu0 %v961, 64
  %v2070 = vpop.permute.xlu0 %2069
  %2071 = vrot.lane.b32.xlu0 %v962, 64
  %v2072 = vpop.permute.xlu0 %2071
  %v2076 = vsel %vm1106, %v2054, 0
  %v2079 = vsel %vm1106, %v2056, 0
  %2081 = vmatprep.subr.mxu0 0.0
  %2082 = vmatpush1.msra.mxu0 %v2070
  %2083 = vmatprep.subr.mxu0 0.0
  %2084 = vmatpush1.msra.mxu0 %v2072
  %2085 = vmatprep.subr.mxu0 0.0
  %2086 = vmatpush1.msra.mxu0 0.0
  %2087 = vmatprep.subr.mxu0 0.0
  %2088 = vmatpush1.msra.mxu0 0.0
  %2089 = vmatprep.subr.mxu0 0.0
  %2090 = vmatpush1.msra.mxu0 0.0
  %2091 = vmatprep.subr.mxu0 0.0
  %2092 = vmatpush1.msra.mxu0 0.0
  %2093 = vmatprep.subr.mxu0 0.0
  %2094 = vmatpush1.msra.mxu0 0.0
  %2095 = vmatprep.subr.mxu0 0.0
  %2096 = vmatpush1.msra.mxu0 0.0
  %2097 = vmatprep.subr.mxu0 0.0
  %2098 = vmatpush1.msra.mxu0 0.0
  %2099 = vmatprep.subr.mxu0 0.0
  %2100 = vmatpush1.msra.mxu0 0.0
  %2101 = vmatprep.subr.mxu0 0.0
  %2102 = vmatpush1.msra.mxu0 0.0
  %2103 = vmatprep.subr.mxu0 0.0
  %2104 = vmatpush1.msra.mxu0 0.0
  %2105 = vmatprep.subr.mxu0 0.0
  %2106 = vmatpush1.msra.mxu0 0.0
  %2107 = vmatprep.subr.mxu0 0.0
  %2108 = vmatpush1.msra.mxu0 0.0
  %2109 = vmatprep.subr.mxu0 0.0
  %2110 = vmatpush1.msra.mxu0 0.0
  %2111 = vmatprep.subr.mxu0 0.0
  %2112 = vmatpush1.msra.mxu0 0.0
  %2113 = vmatprep.subr.mxu0 0.0
  %2114 = vmatpush1.msra.mxu0 0.0
  %2115 = vmatprep.subr.mxu0 0.0
  %2116 = vmatpush1.msra.mxu0 0.0
  %2117 = vmatprep.subr.mxu0 0.0
  %2118 = vmatpush1.msra.mxu0 0.0
  %2119 = vmatprep.subr.mxu0 0.0
  %2120 = vmatpush1.msra.mxu0 0.0
  %2121 = vmatprep.subr.mxu0 0.0
  %2122 = vmatpush1.msra.mxu0 0.0
  %2123 = vmatprep.subr.mxu0 0.0
  %2124 = vmatpush1.msra.mxu0 0.0
  %2125 = vmatprep.subr.mxu0 0.0
  %2126 = vmatpush1.msra.mxu0 0.0
  %2127 = vmatprep.subr.mxu0 0.0
  %2128 = vmatpush1.msra.mxu0 0.0
  %2129 = vmatprep.subr.mxu0 0.0
  %2130 = vmatpush1.msra.mxu0 0.0
  %2131 = vmatprep.subr.mxu0 0.0
  %2132 = vmatpush1.msra.mxu0 0.0
  %2133 = vmatprep.subr.mxu0 0.0
  %2134 = vmatpush1.msra.mxu0 0.0
  %2135 = vmatprep.subr.mxu0 0.0
  %2136 = vmatpush1.msra.mxu0 0.0
  %2137 = vmatprep.subr.mxu0 0.0
  %2138 = vmatpush1.msra.mxu0 0.0
  %2139 = vmatprep.subr.mxu0 0.0
  %2140 = vmatpush1.msra.mxu0 0.0
  %2141 = vmatprep.subr.mxu0 0.0
  %2142 = vmatpush1.msra.mxu0 0.0
  %2143 = vmatprep.subr.mxu0 0.0
  %2144 = vmatpush1.msra.mxu0 0.0
  %2145 = vmatprep.mubr.f32.mxu0 0.0
  %2146 = vmatmul.mubr.f32.gmra.mrb[0].mxu0 %v2076
  %v2147 = vpop.f32.mrb[0].mxu0
  %v2148 = vadd.f32 0.0, %v2147
  %v2149 = vpop.f32.mrb[0].mxu0
  %2150 = vmatprep.mubr.f32.mxu0 0.0
  %2151 = vmatmul.mubr.f32.gmra.mrb[0].mxu0 %v2079
  %v2152 = vpop.f32.mrb[0].mxu0
  %v2153 = vadd.f32 0.0, %v2152
  %v2154 = vpop.f32.mrb[0].mxu0
  %2155 = vdwg.mxu0
  %2156 = vmatprep.subr.mxu0 0.0
  %2157 = vmatpush1.msra.mxu0 %v2148
  %2158 = vmatprep.subr.mxu0 0.0
  %2159 = vmatpush1.msra.mxu0 %v2153
  %2160 = vmatprep.subr.mxu0 0.0
  %2161 = vmatpush1.msra.mxu0 0.0
  %2162 = vmatprep.subr.mxu0 0.0
  %2163 = vmatpush1.msra.mxu0 0.0
  %2164 = vmatprep.subr.mxu0 0.0
  %2165 = vmatpush1.msra.mxu0 0.0
  %2166 = vmatprep.subr.mxu0 0.0
  %2167 = vmatpush1.msra.mxu0 0.0
  %2168 = vmatprep.subr.mxu0 0.0
  %2169 = vmatpush1.msra.mxu0 0.0
  %2170 = vmatprep.subr.mxu0 0.0
  %2171 = vmatpush1.msra.mxu0 0.0
  %2172 = vmatprep.subr.mxu0 0.0
  %2173 = vmatpush1.msra.mxu0 0.0
  %2174 = vmatprep.subr.mxu0 0.0
  %2175 = vmatpush1.msra.mxu0 0.0
  %2176 = vmatprep.subr.mxu0 0.0
  %2177 = vmatpush1.msra.mxu0 0.0
  %2178 = vmatprep.subr.mxu0 0.0
  %2179 = vmatpush1.msra.mxu0 0.0
  %2180 = vmatprep.subr.mxu0 0.0
  %2181 = vmatpush1.msra.mxu0 0.0
  %2182 = vmatprep.subr.mxu0 0.0
  %2183 = vmatpush1.msra.mxu0 0.0
  %2184 = vmatprep.subr.mxu0 0.0
  %2185 = vmatpush1.msra.mxu0 0.0
  %2186 = vmatprep.subr.mxu0 0.0
  %2187 = vmatpush1.msra.mxu0 0.0
  %2188 = vmatprep.subr.mxu0 0.0
  %2189 = vmatpush1.msra.mxu0 0.0
  %2190 = vmatprep.subr.mxu0 0.0
  %2191 = vmatpush1.msra.mxu0 0.0
  %2192 = vmatprep.subr.mxu0 0.0
  %2193 = vmatpush1.msra.mxu0 0.0
  %2194 = vmatprep.subr.mxu0 0.0
  %2195 = vmatpush1.msra.mxu0 0.0
  %2196 = vmatprep.subr.mxu0 0.0
  %2197 = vmatpush1.msra.mxu0 0.0
  %2198 = vmatprep.subr.mxu0 0.0
  %2199 = vmatpush1.msra.mxu0 0.0
  %2200 = vmatprep.subr.mxu0 0.0
  %2201 = vmatpush1.msra.mxu0 0.0
  %2202 = vmatprep.subr.mxu0 0.0
  %2203 = vmatpush1.msra.mxu0 0.0
  %2204 = vmatprep.subr.mxu0 0.0
  %2205 = vmatpush1.msra.mxu0 0.0
  %2206 = vmatprep.subr.mxu0 0.0
  %2207 = vmatpush1.msra.mxu0 0.0
  %2208 = vmatprep.subr.mxu0 0.0
  %2209 = vmatpush1.msra.mxu0 0.0
  %2210 = vmatprep.subr.mxu0 0.0
  %2211 = vmatpush1.msra.mxu0 0.0
  %2212 = vmatprep.subr.mxu0 0.0
  %2213 = vmatpush1.msra.mxu0 0.0
  %2214 = vmatprep.subr.mxu0 0.0
  %2215 = vmatpush1.msra.mxu0 0.0
  %2216 = vmatprep.subr.mxu0 0.0
  %2217 = vmatpush1.msra.mxu0 0.0
  %2218 = vmatprep.subr.mxu0 0.0
  %2219 = vmatpush1.msra.mxu0 0.0
  %2220 = vmatprep.mubr.f32.mxu0 0.0
  %2221 = vmatmul.mubr.f32.gmra.mrb[0].mxu0 %v2076
  %v2222 = vpop.f32.mrb[0].mxu0
  %v2223 = vadd.f32 0.0, %v2222
  %v2224 = vpop.f32.mrb[0].mxu0
  %2225 = vmatprep.mubr.f32.mxu0 0.0
  %2226 = vmatmul.mubr.f32.gmra.mrb[0].mxu0 %v2079
  %v2227 = vpop.f32.mrb[0].mxu0
  %v2228 = vadd.f32 0.0, %v2227
  %v2229 = vpop.f32.mrb[0].mxu0
  %2230 = vdwg.mxu0
  %v2231 = vmul.f32 %v2223, 2.0
  %v2232 = vmul.f32 %v2228, 2.0
  %v2233 = vsub.f32 %v2231, %v2070
  %v2234 = vsub.f32 %v2232, %v2072
  %2237 = vrot.lane.b32.xlu0 %v1009, 64
  %v2238 = vpop.permute.xlu0 %2237
  %2239 = vrot.lane.b32.xlu0 %v1010, 64
  %v2240 = vpop.permute.xlu0 %2239
  %v2244 = vsel %vm1106, %v2064, 0
  %v2247 = vsel %vm1106, %v2066, 0
  %2249 = vmatprep.subr.mxu0 0.0
  %2250 = vmatpush1.msra.mxu0 %v2238
  %2251 = vmatprep.subr.mxu0 0.0
  %2252 = vmatpush1.msra.mxu0 %v2240
  %2253 = vmatprep.subr.mxu0 0.0
  %2254 = vmatpush1.msra.mxu0 0.0
  %2255 = vmatprep.subr.mxu0 0.0
  %2256 = vmatpush1.msra.mxu0 0.0
  %2257 = vmatprep.subr.mxu0 0.0
  %2258 = vmatpush1.msra.mxu0 0.0
  %2259 = vmatprep.subr.mxu0 0.0
  %2260 = vmatpush1.msra.mxu0 0.0
  %2261 = vmatprep.subr.mxu0 0.0
  %2262 = vmatpush1.msra.mxu0 0.0
  %2263 = vmatprep.subr.mxu0 0.0
  %2264 = vmatpush1.msra.mxu0 0.0
  %2265 = vmatprep.subr.mxu0 0.0
  %2266 = vmatpush1.msra.mxu0 0.0
  %2267 = vmatprep.subr.mxu0 0.0
  %2268 = vmatpush1.msra.mxu0 0.0
  %2269 = vmatprep.subr.mxu0 0.0
  %2270 = vmatpush1.msra.mxu0 0.0
  %2271 = vmatprep.subr.mxu0 0.0
  %2272 = vmatpush1.msra.mxu0 0.0
  %2273 = vmatprep.subr.mxu0 0.0
  %2274 = vmatpush1.msra.mxu0 0.0
  %2275 = vmatprep.subr.mxu0 0.0
  %2276 = vmatpush1.msra.mxu0 0.0
  %2277 = vmatprep.subr.mxu0 0.0
  %2278 = vmatpush1.msra.mxu0 0.0
  %2279 = vmatprep.subr.mxu0 0.0
  %2280 = vmatpush1.msra.mxu0 0.0
  %2281 = vmatprep.subr.mxu0 0.0
  %2282 = vmatpush1.msra.mxu0 0.0
  %2283 = vmatprep.subr.mxu0 0.0
  %2284 = vmatpush1.msra.mxu0 0.0
  %2285 = vmatprep.subr.mxu0 0.0
  %2286 = vmatpush1.msra.mxu0 0.0
  %2287 = vmatprep.subr.mxu0 0.0
  %2288 = vmatpush1.msra.mxu0 0.0
  %2289 = vmatprep.subr.mxu0 0.0
  %2290 = vmatpush1.msra.mxu0 0.0
  %2291 = vmatprep.subr.mxu0 0.0
  %2292 = vmatpush1.msra.mxu0 0.0
  %2293 = vmatprep.subr.mxu0 0.0
  %2294 = vmatpush1.msra.mxu0 0.0
  %2295 = vmatprep.subr.mxu0 0.0
  %2296 = vmatpush1.msra.mxu0 0.0
  %2297 = vmatprep.subr.mxu0 0.0
  %2298 = vmatpush1.msra.mxu0 0.0
  %2299 = vmatprep.subr.mxu0 0.0
  %2300 = vmatpush1.msra.mxu0 0.0
  %2301 = vmatprep.subr.mxu0 0.0
  %2302 = vmatpush1.msra.mxu0 0.0
  %2303 = vmatprep.subr.mxu0 0.0
  %2304 = vmatpush1.msra.mxu0 0.0
  %2305 = vmatprep.subr.mxu0 0.0
  %2306 = vmatpush1.msra.mxu0 0.0
  %2307 = vmatprep.subr.mxu0 0.0
  %2308 = vmatpush1.msra.mxu0 0.0
  %2309 = vmatprep.subr.mxu0 0.0
  %2310 = vmatpush1.msra.mxu0 0.0
  %2311 = vmatprep.subr.mxu0 0.0
  %2312 = vmatpush1.msra.mxu0 0.0
  %2313 = vmatprep.mubr.f32.mxu0 0.0
  %2314 = vmatmul.mubr.f32.gmra.mrb[0].mxu0 %v2244
  %v2315 = vpop.f32.mrb[0].mxu0
  %v2316 = vadd.f32 0.0, %v2315
  %v2317 = vpop.f32.mrb[0].mxu0
  %2318 = vmatprep.mubr.f32.mxu0 0.0
  %2319 = vmatmul.mubr.f32.gmra.mrb[0].mxu0 %v2247
  %v2320 = vpop.f32.mrb[0].mxu0
  %v2321 = vadd.f32 0.0, %v2320
  %v2322 = vpop.f32.mrb[0].mxu0
  %2323 = vdwg.mxu0
  %2324 = vmatprep.subr.mxu0 0.0
  %2325 = vmatpush1.msra.mxu0 %v2316
  %2326 = vmatprep.subr.mxu0 0.0
  %2327 = vmatpush1.msra.mxu0 %v2321
  %2328 = vmatprep.subr.mxu0 0.0
  %2329 = vmatpush1.msra.mxu0 0.0
  %2330 = vmatprep.subr.mxu0 0.0
  %2331 = vmatpush1.msra.mxu0 0.0
  %2332 = vmatprep.subr.mxu0 0.0
  %2333 = vmatpush1.msra.mxu0 0.0
  %2334 = vmatprep.subr.mxu0 0.0
  %2335 = vmatpush1.msra.mxu0 0.0
  %2336 = vmatprep.subr.mxu0 0.0
  %2337 = vmatpush1.msra.mxu0 0.0
  %2338 = vmatprep.subr.mxu0 0.0
  %2339 = vmatpush1.msra.mxu0 0.0
  %2340 = vmatprep.subr.mxu0 0.0
  %2341 = vmatpush1.msra.mxu0 0.0
  %2342 = vmatprep.subr.mxu0 0.0
  %2343 = vmatpush1.msra.mxu0 0.0
  %2344 = vmatprep.subr.mxu0 0.0
  %2345 = vmatpush1.msra.mxu0 0.0
  %2346 = vmatprep.subr.mxu0 0.0
  %2347 = vmatpush1.msra.mxu0 0.0
  %2348 = vmatprep.subr.mxu0 0.0
  %2349 = vmatpush1.msra.mxu0 0.0
  %2350 = vmatprep.subr.mxu0 0.0
  %2351 = vmatpush1.msra.mxu0 0.0
  %2352 = vmatprep.subr.mxu0 0.0
  %2353 = vmatpush1.msra.mxu0 0.0
  %2354 = vmatprep.subr.mxu0 0.0
  %2355 = vmatpush1.msra.mxu0 0.0
  %2356 = vmatprep.subr.mxu0 0.0
  %2357 = vmatpush1.msra.mxu0 0.0
  %2358 = vmatprep.subr.mxu0 0.0
  %2359 = vmatpush1.msra.mxu0 0.0
  %2360 = vmatprep.subr.mxu0 0.0
  %2361 = vmatpush1.msra.mxu0 0.0
  %2362 = vmatprep.subr.mxu0 0.0
  %2363 = vmatpush1.msra.mxu0 0.0
  %2364 = vmatprep.subr.mxu0 0.0
  %2365 = vmatpush1.msra.mxu0 0.0
  %2366 = vmatprep.subr.mxu0 0.0
  %2367 = vmatpush1.msra.mxu0 0.0
  %2368 = vmatprep.subr.mxu0 0.0
  %2369 = vmatpush1.msra.mxu0 0.0
  %2370 = vmatprep.subr.mxu0 0.0
  %2371 = vmatpush1.msra.mxu0 0.0
  %2372 = vmatprep.subr.mxu0 0.0
  %2373 = vmatpush1.msra.mxu0 0.0
  %2374 = vmatprep.subr.mxu0 0.0
  %2375 = vmatpush1.msra.mxu0 0.0
  %2376 = vmatprep.subr.mxu0 0.0
  %2377 = vmatpush1.msra.mxu0 0.0
  %2378 = vmatprep.subr.mxu0 0.0
  %2379 = vmatpush1.msra.mxu0 0.0
  %2380 = vmatprep.subr.mxu0 0.0
  %2381 = vmatpush1.msra.mxu0 0.0
  %2382 = vmatprep.subr.mxu0 0.0
  %2383 = vmatpush1.msra.mxu0 0.0
  %2384 = vmatprep.subr.mxu0 0.0
  %2385 = vmatpush1.msra.mxu0 0.0
  %2386 = vmatprep.subr.mxu0 0.0
  %2387 = vmatpush1.msra.mxu0 0.0
  %2388 = vmatprep.mubr.f32.mxu0 0.0
  %2389 = vmatmul.mubr.f32.gmra.mrb[0].mxu0 %v2244
  %v2390 = vpop.f32.mrb[0].mxu0
  %v2391 = vadd.f32 0.0, %v2390
  %v2392 = vpop.f32.mrb[0].mxu0
  %2393 = vmatprep.mubr.f32.mxu0 0.0
  %2394 = vmatmul.mubr.f32.gmra.mrb[0].mxu0 %v2247
  %v2395 = vpop.f32.mrb[0].mxu0
  %v2396 = vadd.f32 0.0, %v2395
  %v2397 = vpop.f32.mrb[0].mxu0
  %2398 = vdwg.mxu0
  %v2399 = vmul.f32 %v2391, 2.0
  %v2400 = vmul.f32 %v2396, 2.0
  %v2401 = vsub.f32 %v2399, %v2238
  %v2402 = vsub.f32 %v2400, %v2240
  %2405 = vrot.lane.b32.xlu0 %v787, 96
  %v2406 = vpop.permute.xlu0 %2405
  %2407 = vrot.lane.b32.xlu0 %v788, 96
  %v2408 = vpop.permute.xlu0 %2407
  %v2410 = vsel %vm475, %v603, 0
  %v2413 = vsel %vm475, %v604, 0
  %v2415 = vsel %vm475, %v2406, 0
  %v2417 = vsel %vm475, %v2408, 0
  %2419 = vmatprep.subr.mxu0 0.0
  %2420 = vmatpush1.xpose.msra.mxu0 %v2415
  %2421 = vmatprep.subr.mxu0 0.0
  %2422 = vmatpush1.xpose.msra.mxu0 %v2417
  %2423 = vmatprep.subr.mxu0 0.0
  %2424 = vmatpush1.xpose.msra.mxu0 0.0
  %2425 = vmatprep.subr.mxu0 0.0
  %2426 = vmatpush1.xpose.msra.mxu0 0.0
  %2427 = vmatprep.subr.mxu0 0.0
  %2428 = vmatpush1.xpose.msra.mxu0 0.0
  %2429 = vmatprep.subr.mxu0 0.0
  %2430 = vmatpush1.xpose.msra.mxu0 0.0
  %2431 = vmatprep.subr.mxu0 0.0
  %2432 = vmatpush1.xpose.msra.mxu0 0.0
  %2433 = vmatprep.subr.mxu0 0.0
  %2434 = vmatpush1.xpose.msra.mxu0 0.0
  %2435 = vmatprep.subr.mxu0 0.0
  %2436 = vmatpush1.xpose.msra.mxu0 0.0
  %2437 = vmatprep.subr.mxu0 0.0
  %2438 = vmatpush1.xpose.msra.mxu0 0.0
  %2439 = vmatprep.subr.mxu0 0.0
  %2440 = vmatpush1.xpose.msra.mxu0 0.0
  %2441 = vmatprep.subr.mxu0 0.0
  %2442 = vmatpush1.xpose.msra.mxu0 0.0
  %2443 = vmatprep.subr.mxu0 0.0
  %2444 = vmatpush1.xpose.msra.mxu0 0.0
  %2445 = vmatprep.subr.mxu0 0.0
  %2446 = vmatpush1.xpose.msra.mxu0 0.0
  %2447 = vmatprep.subr.mxu0 0.0
  %2448 = vmatpush1.xpose.msra.mxu0 0.0
  %2449 = vmatprep.subr.mxu0 0.0
  %2450 = vmatpush1.xpose.msra.mxu0 0.0
  %2451 = vmatprep.subr.mxu0 0.0
  %2452 = vmatpush1.xpose.msra.mxu0 0.0
  %2453 = vmatprep.subr.mxu0 0.0
  %2454 = vmatpush1.xpose.msra.mxu0 0.0
  %2455 = vmatprep.subr.mxu0 0.0
  %2456 = vmatpush1.xpose.msra.mxu0 0.0
  %2457 = vmatprep.subr.mxu0 0.0
  %2458 = vmatpush1.xpose.msra.mxu0 0.0
  %2459 = vmatprep.subr.mxu0 0.0
  %2460 = vmatpush1.xpose.msra.mxu0 0.0
  %2461 = vmatprep.subr.mxu0 0.0
  %2462 = vmatpush1.xpose.msra.mxu0 0.0
  %2463 = vmatprep.subr.mxu0 0.0
  %2464 = vmatpush1.xpose.msra.mxu0 0.0
  %2465 = vmatprep.subr.mxu0 0.0
  %2466 = vmatpush1.xpose.msra.mxu0 0.0
  %2467 = vmatprep.subr.mxu0 0.0
  %2468 = vmatpush1.xpose.msra.mxu0 0.0
  %2469 = vmatprep.subr.mxu0 0.0
  %2470 = vmatpush1.xpose.msra.mxu0 0.0
  %2471 = vmatprep.subr.mxu0 0.0
  %2472 = vmatpush1.xpose.msra.mxu0 0.0
  %2473 = vmatprep.subr.mxu0 0.0
  %2474 = vmatpush1.xpose.msra.mxu0 0.0
  %2475 = vmatprep.subr.mxu0 0.0
  %2476 = vmatpush1.xpose.msra.mxu0 0.0
  %2477 = vmatprep.subr.mxu0 0.0
  %2478 = vmatpush1.xpose.msra.mxu0 0.0
  %2479 = vmatprep.subr.mxu0 0.0
  %2480 = vmatpush1.xpose.msra.mxu0 0.0
  %2481 = vmatprep.subr.mxu0 0.0
  %2482 = vmatpush1.xpose.msra.mxu0 0.0
  %2483 = vmatprep.mubr.f32.mxu0 0.0
  %2484 = vmatmul.mubr.f32.gmra.mrb[0].mxu0 %v2410
  %v2485 = vpop.f32.mrb[0].mxu0
  %v2486 = vadd.f32 0.0, %v2485
  %v2487 = vpop.f32.mrb[0].mxu0
  %2488 = vmatprep.mubr.f32.mxu0 0.0
  %2489 = vmatmul.mubr.f32.gmra.mrb[0].mxu0 %v2413
  %v2490 = vpop.f32.mrb[0].mxu0
  %v2491 = vadd.f32 0.0, %v2490
  %v2492 = vpop.f32.mrb[0].mxu0
  %2493 = vdwg.mxu0
  %v2494 = vmul.f32 %v2486, 0.25
  %v2495 = vmul.f32 %v2491, 0.25
  %v2496 = vsel %vm1106, %v2494, -inf
  %2497 = vmax.xlane.f32.xlu0 %v2496
  %v2498 = vpop.xlane.xlu0 %2497
  %v2499 = vsel %vm1106, %v2495, -inf
  %2500 = vmax.xlane.f32.xlu0 %v2499
  %v2501 = vpop.xlane.xlu0 %2500
  %v2502 = vsub.f32 %v2494, %v2498
  %v2503 = vsub.f32 %v2495, %v2501
  %v2504 = vmul.f32 %v2502, 1.442695
  %v2505 = vpow.pop %v2504
  %v2506 = vmul.f32 %v2503, 1.442695
  %v2507 = vpow.pop %v2506
  %v2508 = vrcp.pop %v2505
  %v2509 = vrcp.pop %v2507
  %v2510 = vsel %vm1106, %v2505, 0.0
  %2511 = vadd.xlane.f32.xlu0 %v2510
  %v2512 = vpop.xlane.xlu0 %2511
  %v2513 = vsel %vm1106, %v2507, 0.0
  %2514 = vadd.xlane.f32.xlu0 %v2513
  %v2515 = vpop.xlane.xlu0 %2514
  %v2516 = vrcp.pop %v2512
  %v2517 = vmul.f32 %v2505, %v2516
  %v2518 = vrcp.pop %v2515
  %v2519 = vmul.f32 %v2507, %v2518
  %v2520 = vsel %vm1106, %v2508, 0.0
  %2521 = vadd.xlane.f32.xlu0 %v2520
  %v2522 = vpop.xlane.xlu0 %2521
  %v2523 = vsel %vm1106, %v2509, 0.0
  %2524 = vadd.xlane.f32.xlu0 %v2523
  %v2525 = vpop.xlane.xlu0 %2524
  %v2526 = vrcp.pop %v2522
  %v2527 = vmul.f32 %v2508, %v2526
  %v2528 = vrcp.pop %v2525
  %v2529 = vmul.f32 %v2509, %v2528
  %2532 = vrot.lane.b32.xlu0 %v963, 64
  %v2533 = vpop.permute.xlu0 %2532
  %2534 = vrot.lane.b32.xlu0 %v964, 64
  %v2535 = vpop.permute.xlu0 %2534
  %v2539 = vsel %vm1106, %v2517, 0
  %v2542 = vsel %vm1106, %v2519, 0
  %2544 = vmatprep.subr.mxu0 0.0
  %2545 = vmatpush1.msra.mxu0 %v2533
  %2546 = vmatprep.subr.mxu0 0.0
  %2547 = vmatpush1.msra.mxu0 %v2535
  %2548 = vmatprep.subr.mxu0 0.0
  %2549 = vmatpush1.msra.mxu0 0.0
  %2550 = vmatprep.subr.mxu0 0.0
  %2551 = vmatpush1.msra.mxu0 0.0
  %2552 = vmatprep.subr.mxu0 0.0
  %2553 = vmatpush1.msra.mxu0 0.0
  %2554 = vmatprep.subr.mxu0 0.0
  %2555 = vmatpush1.msra.mxu0 0.0
  %2556 = vmatprep.subr.mxu0 0.0
  %2557 = vmatpush1.msra.mxu0 0.0
  %2558 = vmatprep.subr.mxu0 0.0
  %2559 = vmatpush1.msra.mxu0 0.0
  %2560 = vmatprep.subr.mxu0 0.0
  %2561 = vmatpush1.msra.mxu0 0.0
  %2562 = vmatprep.subr.mxu0 0.0
  %2563 = vmatpush1.msra.mxu0 0.0
  %2564 = vmatprep.subr.mxu0 0.0
  %2565 = vmatpush1.msra.mxu0 0.0
  %2566 = vmatprep.subr.mxu0 0.0
  %2567 = vmatpush1.msra.mxu0 0.0
  %2568 = vmatprep.subr.mxu0 0.0
  %2569 = vmatpush1.msra.mxu0 0.0
  %2570 = vmatprep.subr.mxu0 0.0
  %2571 = vmatpush1.msra.mxu0 0.0
  %2572 = vmatprep.subr.mxu0 0.0
  %2573 = vmatpush1.msra.mxu0 0.0
  %2574 = vmatprep.subr.mxu0 0.0
  %2575 = vmatpush1.msra.mxu0 0.0
  %2576 = vmatprep.subr.mxu0 0.0
  %2577 = vmatpush1.msra.mxu0 0.0
  %2578 = vmatprep.subr.mxu0 0.0
  %2579 = vmatpush1.msra.mxu0 0.0
  %2580 = vmatprep.subr.mxu0 0.0
  %2581 = vmatpush1.msra.mxu0 0.0
  %2582 = vmatprep.subr.mxu0 0.0
  %2583 = vmatpush1.msra.mxu0 0.0
  %2584 = vmatprep.subr.mxu0 0.0
  %2585 = vmatpush1.msra.mxu0 0.0
  %2586 = vmatprep.subr.mxu0 0.0
  %2587 = vmatpush1.msra.mxu0 0.0
  %2588 = vmatprep.subr.mxu0 0.0
  %2589 = vmatpush1.msra.mxu0 0.0
  %2590 = vmatprep.subr.mxu0 0.0
  %2591 = vmatpush1.msra.mxu0 0.0
  %2592 = vmatprep.subr.mxu0 0.0
  %2593 = vmatpush1.msra.mxu0 0.0
  %2594 = vmatprep.subr.mxu0 0.0
  %2595 = vmatpush1.msra.mxu0 0.0
  %2596 = vmatprep.subr.mxu0 0.0
  %2597 = vmatpush1.msra.mxu0 0.0
  %2598 = vmatprep.subr.mxu0 0.0
  %2599 = vmatpush1.msra.mxu0 0.0
  %2600 = vmatprep.subr.mxu0 0.0
  %2601 = vmatpush1.msra.mxu0 0.0
  %2602 = vmatprep.subr.mxu0 0.0
  %2603 = vmatpush1.msra.mxu0 0.0
  %2604 = vmatprep.subr.mxu0 0.0
  %2605 = vmatpush1.msra.mxu0 0.0
  %2606 = vmatprep.subr.mxu0 0.0
  %2607 = vmatpush1.msra.mxu0 0.0
  %2608 = vmatprep.mubr.f32.mxu0 0.0
  %2609 = vmatmul.mubr.f32.gmra.mrb[0].mxu0 %v2539
  %v2610 = vpop.f32.mrb[0].mxu0
  %v2611 = vadd.f32 0.0, %v2610
  %v2612 = vpop.f32.mrb[0].mxu0
  %2613 = vmatprep.mubr.f32.mxu0 0.0
  %2614 = vmatmul.mubr.f32.gmra.mrb[0].mxu0 %v2542
  %v2615 = vpop.f32.mrb[0].mxu0
  %v2616 = vadd.f32 0.0, %v2615
  %v2617 = vpop.f32.mrb[0].mxu0
  %2618 = vdwg.mxu0
  %2619 = vmatprep.subr.mxu0 0.0
  %2620 = vmatpush1.msra.mxu0 %v2611
  %2621 = vmatprep.subr.mxu0 0.0
  %2622 = vmatpush1.msra.mxu0 %v2616
  %2623 = vmatprep.subr.mxu0 0.0
  %2624 = vmatpush1.msra.mxu0 0.0
  %2625 = vmatprep.subr.mxu0 0.0
  %2626 = vmatpush1.msra.mxu0 0.0
  %2627 = vmatprep.subr.mxu0 0.0
  %2628 = vmatpush1.msra.mxu0 0.0
  %2629 = vmatprep.subr.mxu0 0.0
  %2630 = vmatpush1.msra.mxu0 0.0
  %2631 = vmatprep.subr.mxu0 0.0
  %2632 = vmatpush1.msra.mxu0 0.0
  %2633 = vmatprep.subr.mxu0 0.0
  %2634 = vmatpush1.msra.mxu0 0.0
  %2635 = vmatprep.subr.mxu0 0.0
  %2636 = vmatpush1.msra.mxu0 0.0
  %2637 = vmatprep.subr.mxu0 0.0
  %2638 = vmatpush1.msra.mxu0 0.0
  %2639 = vmatprep.subr.mxu0 0.0
  %2640 = vmatpush1.msra.mxu0 0.0
  %2641 = vmatprep.subr.mxu0 0.0
  %2642 = vmatpush1.msra.mxu0 0.0
  %2643 = vmatprep.subr.mxu0 0.0
  %2644 = vmatpush1.msra.mxu0 0.0
  %2645 = vmatprep.subr.mxu0 0.0
  %2646 = vmatpush1.msra.mxu0 0.0
  %2647 = vmatprep.subr.mxu0 0.0
  %2648 = vmatpush1.msra.mxu0 0.0
  %2649 = vmatprep.subr.mxu0 0.0
  %2650 = vmatpush1.msra.mxu0 0.0
  %2651 = vmatprep.subr.mxu0 0.0
  %2652 = vmatpush1.msra.mxu0 0.0
  %2653 = vmatprep.subr.mxu0 0.0
  %2654 = vmatpush1.msra.mxu0 0.0
  %2655 = vmatprep.subr.mxu0 0.0
  %2656 = vmatpush1.msra.mxu0 0.0
  %2657 = vmatprep.subr.mxu0 0.0
  %2658 = vmatpush1.msra.mxu0 0.0
  %2659 = vmatprep.subr.mxu0 0.0
  %2660 = vmatpush1.msra.mxu0 0.0
  %2661 = vmatprep.subr.mxu0 0.0
  %2662 = vmatpush1.msra.mxu0 0.0
  %2663 = vmatprep.subr.mxu0 0.0
  %2664 = vmatpush1.msra.mxu0 0.0
  %2665 = vmatprep.subr.mxu0 0.0
  %2666 = vmatpush1.msra.mxu0 0.0
  %2667 = vmatprep.subr.mxu0 0.0
  %2668 = vmatpush1.msra.mxu0 0.0
  %2669 = vmatprep.subr.mxu0 0.0
  %2670 = vmatpush1.msra.mxu0 0.0
  %2671 = vmatprep.subr.mxu0 0.0
  %2672 = vmatpush1.msra.mxu0 0.0
  %2673 = vmatprep.subr.mxu0 0.0
  %2674 = vmatpush1.msra.mxu0 0.0
  %2675 = vmatprep.subr.mxu0 0.0
  %2676 = vmatpush1.msra.mxu0 0.0
  %2677 = vmatprep.subr.mxu0 0.0
  %2678 = vmatpush1.msra.mxu0 0.0
  %2679 = vmatprep.subr.mxu0 0.0
  %2680 = vmatpush1.msra.mxu0 0.0
  %2681 = vmatprep.subr.mxu0 0.0
  %2682 = vmatpush1.msra.mxu0 0.0
  %2683 = vmatprep.mubr.f32.mxu0 0.0
  %2684 = vmatmul.mubr.f32.gmra.mrb[0].mxu0 %v2539
  %v2685 = vpop.f32.mrb[0].mxu0
  %v2686 = vadd.f32 0.0, %v2685
  %v2687 = vpop.f32.mrb[0].mxu0
  %2688 = vmatprep.mubr.f32.mxu0 0.0
  %2689 = vmatmul.mubr.f32.gmra.mrb[0].mxu0 %v2542
  %v2690 = vpop.f32.mrb[0].mxu0
  %v2691 = vadd.f32 0.0, %v2690
  %v2692 = vpop.f32.mrb[0].mxu0
  %2693 = vdwg.mxu0
  %v2694 = vmul.f32 %v2686, 2.0
  %v2695 = vmul.f32 %v2691, 2.0
  %v2696 = vsub.f32 %v2694, %v2533
  %v2697 = vsub.f32 %v2695, %v2535
  %2700 = vrot.lane.b32.xlu0 %v1011, 64
  %v2701 = vpop.permute.xlu0 %2700
  %2702 = vrot.lane.b32.xlu0 %v1012, 64
  %v2703 = vpop.permute.xlu0 %2702
  %v2707 = vsel %vm1106, %v2527, 0
  %v2710 = vsel %vm1106, %v2529, 0
  %2712 = vmatprep.subr.mxu0 0.0
  %2713 = vmatpush1.msra.mxu0 %v2701
  %2714 = vmatprep.subr.mxu0 0.0
  %2715 = vmatpush1.msra.mxu0 %v2703
  %2716 = vmatprep.subr.mxu0 0.0
  %2717 = vmatpush1.msra.mxu0 0.0
  %2718 = vmatprep.subr.mxu0 0.0
  %2719 = vmatpush1.msra.mxu0 0.0
  %2720 = vmatprep.subr.mxu0 0.0
  %2721 = vmatpush1.msra.mxu0 0.0
  %2722 = vmatprep.subr.mxu0 0.0
  %2723 = vmatpush1.msra.mxu0 0.0
  %2724 = vmatprep.subr.mxu0 0.0
  %2725 = vmatpush1.msra.mxu0 0.0
  %2726 = vmatprep.subr.mxu0 0.0
  %2727 = vmatpush1.msra.mxu0 0.0
  %2728 = vmatprep.subr.mxu0 0.0
  %2729 = vmatpush1.msra.mxu0 0.0
  %2730 = vmatprep.subr.mxu0 0.0
  %2731 = vmatpush1.msra.mxu0 0.0
  %2732 = vmatprep.subr.mxu0 0.0
  %2733 = vmatpush1.msra.mxu0 0.0
  %2734 = vmatprep.subr.mxu0 0.0
  %2735 = vmatpush1.msra.mxu0 0.0
  %2736 = vmatprep.subr.mxu0 0.0
  %2737 = vmatpush1.msra.mxu0 0.0
  %2738 = vmatprep.subr.mxu0 0.0
  %2739 = vmatpush1.msra.mxu0 0.0
  %2740 = vmatprep.subr.mxu0 0.0
  %2741 = vmatpush1.msra.mxu0 0.0
  %2742 = vmatprep.subr.mxu0 0.0
  %2743 = vmatpush1.msra.mxu0 0.0
  %2744 = vmatprep.subr.mxu0 0.0
  %2745 = vmatpush1.msra.mxu0 0.0
  %2746 = vmatprep.subr.mxu0 0.0
  %2747 = vmatpush1.msra.mxu0 0.0
  %2748 = vmatprep.subr.mxu0 0.0
  %2749 = vmatpush1.msra.mxu0 0.0
  %2750 = vmatprep.subr.mxu0 0.0
  %2751 = vmatpush1.msra.mxu0 0.0
  %2752 = vmatprep.subr.mxu0 0.0
  %2753 = vmatpush1.msra.mxu0 0.0
  %2754 = vmatprep.subr.mxu0 0.0
  %2755 = vmatpush1.msra.mxu0 0.0
  %2756 = vmatprep.subr.mxu0 0.0
  %2757 = vmatpush1.msra.mxu0 0.0
  %2758 = vmatprep.subr.mxu0 0.0
  %2759 = vmatpush1.msra.mxu0 0.0
  %2760 = vmatprep.subr.mxu0 0.0
  %2761 = vmatpush1.msra.mxu0 0.0
  %2762 = vmatprep.subr.mxu0 0.0
  %2763 = vmatpush1.msra.mxu0 0.0
  %2764 = vmatprep.subr.mxu0 0.0
  %2765 = vmatpush1.msra.mxu0 0.0
  %2766 = vmatprep.subr.mxu0 0.0
  %2767 = vmatpush1.msra.mxu0 0.0
  %2768 = vmatprep.subr.mxu0 0.0
  %2769 = vmatpush1.msra.mxu0 0.0
  %2770 = vmatprep.subr.mxu0 0.0
  %2771 = vmatpush1.msra.mxu0 0.0
  %2772 = vmatprep.subr.mxu0 0.0
  %2773 = vmatpush1.msra.mxu0 0.0
  %2774 = vmatprep.subr.mxu0 0.0
  %2775 = vmatpush1.msra.mxu0 0.0
  %2776 = vmatprep.mubr.f32.mxu0 0.0
  %2777 = vmatmul.mubr.f32.gmra.mrb[0].mxu0 %v2707
  %v2778 = vpop.f32.mrb[0].mxu0
  %v2779 = vadd.f32 0.0, %v2778
  %v2780 = vpop.f32.mrb[0].mxu0
  %2781 = vmatprep.mubr.f32.mxu0 0.0
  %2782 = vmatmul.mubr.f32.gmra.mrb[0].mxu0 %v2710
  %v2783 = vpop.f32.mrb[0].mxu0
  %v2784 = vadd.f32 0.0, %v2783
  %v2785 = vpop.f32.mrb[0].mxu0
  %2786 = vdwg.mxu0
  %2787 = vmatprep.subr.mxu0 0.0
  %2788 = vmatpush1.msra.mxu0 %v2779
  %2789 = vmatprep.subr.mxu0 0.0
  %2790 = vmatpush1.msra.mxu0 %v2784
  %2791 = vmatprep.subr.mxu0 0.0
  %2792 = vmatpush1.msra.mxu0 0.0
  %2793 = vmatprep.subr.mxu0 0.0
  %2794 = vmatpush1.msra.mxu0 0.0
  %2795 = vmatprep.subr.mxu0 0.0
  %2796 = vmatpush1.msra.mxu0 0.0
  %2797 = vmatprep.subr.mxu0 0.0
  %2798 = vmatpush1.msra.mxu0 0.0
  %2799 = vmatprep.subr.mxu0 0.0
  %2800 = vmatpush1.msra.mxu0 0.0
  %2801 = vmatprep.subr.mxu0 0.0
  %2802 = vmatpush1.msra.mxu0 0.0
  %2803 = vmatprep.subr.mxu0 0.0
  %2804 = vmatpush1.msra.mxu0 0.0
  %2805 = vmatprep.subr.mxu0 0.0
  %2806 = vmatpush1.msra.mxu0 0.0
  %2807 = vmatprep.subr.mxu0 0.0
  %2808 = vmatpush1.msra.mxu0 0.0
  %2809 = vmatprep.subr.mxu0 0.0
  %2810 = vmatpush1.msra.mxu0 0.0
  %2811 = vmatprep.subr.mxu0 0.0
  %2812 = vmatpush1.msra.mxu0 0.0
  %2813 = vmatprep.subr.mxu0 0.0
  %2814 = vmatpush1.msra.mxu0 0.0
  %2815 = vmatprep.subr.mxu0 0.0
  %2816 = vmatpush1.msra.mxu0 0.0
  %2817 = vmatprep.subr.mxu0 0.0
  %2818 = vmatpush1.msra.mxu0 0.0
  %2819 = vmatprep.subr.mxu0 0.0
  %2820 = vmatpush1.msra.mxu0 0.0
  %2821 = vmatprep.subr.mxu0 0.0
  %2822 = vmatpush1.msra.mxu0 0.0
  %2823 = vmatprep.subr.mxu0 0.0
  %2824 = vmatpush1.msra.mxu0 0.0
  %2825 = vmatprep.subr.mxu0 0.0
  %2826 = vmatpush1.msra.mxu0 0.0
  %2827 = vmatprep.subr.mxu0 0.0
  %2828 = vmatpush1.msra.mxu0 0.0
  %2829 = vmatprep.subr.mxu0 0.0
  %2830 = vmatpush1.msra.mxu0 0.0
  %2831 = vmatprep.subr.mxu0 0.0
  %2832 = vmatpush1.msra.mxu0 0.0
  %2833 = vmatprep.subr.mxu0 0.0
  %2834 = vmatpush1.msra.mxu0 0.0
  %2835 = vmatprep.subr.mxu0 0.0
  %2836 = vmatpush1.msra.mxu0 0.0
  %2837 = vmatprep.subr.mxu0 0.0
  %2838 = vmatpush1.msra.mxu0 0.0
  %2839 = vmatprep.subr.mxu0 0.0
  %2840 = vmatpush1.msra.mxu0 0.0
  %2841 = vmatprep.subr.mxu0 0.0
  %2842 = vmatpush1.msra.mxu0 0.0
  %2843 = vmatprep.subr.mxu0 0.0
  %2844 = vmatpush1.msra.mxu0 0.0
  %2845 = vmatprep.subr.mxu0 0.0
  %2846 = vmatpush1.msra.mxu0 0.0
  %2847 = vmatprep.subr.mxu0 0.0
  %2848 = vmatpush1.msra.mxu0 0.0
  %2849 = vmatprep.subr.mxu0 0.0
  %2850 = vmatpush1.msra.mxu0 0.0
  %2851 = vmatprep.mubr.f32.mxu0 0.0
  %2852 = vmatmul.mubr.f32.gmra.mrb[0].mxu0 %v2707
  %v2853 = vpop.f32.mrb[0].mxu0
  %v2854 = vadd.f32 0.0, %v2853
  %v2855 = vpop.f32.mrb[0].mxu0
  %2856 = vmatprep.mubr.f32.mxu0 0.0
  %2857 = vmatmul.mubr.f32.gmra.mrb[0].mxu0 %v2710
  %v2858 = vpop.f32.mrb[0].mxu0
  %v2859 = vadd.f32 0.0, %v2858
  %v2860 = vpop.f32.mrb[0].mxu0
  %2861 = vdwg.mxu0
  %v2862 = vmul.f32 %v2854, 2.0
  %v2863 = vmul.f32 %v2859, 2.0
  %v2864 = vsub.f32 %v2862, %v2701
  %v2865 = vsub.f32 %v2863, %v2703
  %v2866 = vld [vmem:[%s5] sm:$0xff]
  %v2867 = vld [vmem:[%s5 + $0x8] sm:$0xff]
  %v2868 = vld [vmem:[%s5 + $0x10] sm:$0xff]
  %v2869 = vld [vmem:[%s5 + $0x18] sm:$0xff]
  %v2870 = vld [vmem:[%s5 + $0x20] sm:$0xff]
  %v2871 = vld [vmem:[%s5 + $0x28] sm:$0xff]
  %v2872 = vld [vmem:[%s5 + $0x30] sm:$0xff]
  %v2873 = vld [vmem:[%s5 + $0x38] sm:$0xff]
  %v2874 = vld [vmem:[%s5 + $0x40] sm:$0xff]
  %v2875 = vld [vmem:[%s5 + $0x48] sm:$0xff]
  %v2876 = vld [vmem:[%s5 + $0x50] sm:$0xff]
  %v2877 = vld [vmem:[%s5 + $0x58] sm:$0xff]
  %v2878 = vld [vmem:[%s5 + $0x60] sm:$0x1]
  %v2879 = vsel %vm475, %v1312, 0
  %v2881 = vsel %vm475, %v1314, 0
  %v2883 = vsel %vm475, %v1775, 0
  %v2885 = vsel %vm475, %v1777, 0
  %v2887 = vsel %vm475, %v2238, 0
  %v2889 = vsel %vm475, %v2240, 0
  %v2891 = vsel %vm475, %v2701, 0
  %v2893 = vsel %vm475, %v2703, 0
  %v2895 = vsel %vm475, %v1144, 0
  %v2897 = vsel %vm475, %v1146, 0
  %v2899 = vsel %vm475, %v1607, 0
  %v2901 = vsel %vm475, %v1609, 0
  %v2903 = vsel %vm475, %v2070, 0
  %v2905 = vsel %vm475, %v2072, 0
  %v2907 = vsel %vm475, %v2533, 0
  %v2909 = vsel %vm475, %v2535, 0
  %2911 = vmatprep.subr.mxu0 0.0
  %2912 = vmatpush1.msra.mxu0 %v2866
  %2913 = vmatprep.subr.mxu0 0.0
  %2914 = vmatpush1.msra.mxu0 %v2867
  %2915 = vmatprep.subr.mxu0 0.0
  %2916 = vmatpush1.msra.mxu0 %v2868
  %2917 = vmatprep.subr.mxu0 0.0
  %2918 = vmatpush1.msra.mxu0 %v2869
  %2919 = vmatprep.subr.mxu0 0.0
  %2920 = vmatpush1.msra.mxu0 0.0
  %2921 = vmatprep.subr.mxu0 0.0
  %2922 = vmatpush1.msra.mxu0 0.0
  %2923 = vmatprep.subr.mxu0 0.0
  %2924 = vmatpush1.msra.mxu0 0.0
  %2925 = vmatprep.subr.mxu0 0.0
  %2926 = vmatpush1.msra.mxu0 0.0
  %2927 = vmatprep.subr.mxu0 0.0
  %2928 = vmatpush1.msra.mxu0 0.0
  %2929 = vmatprep.subr.mxu0 0.0
  %2930 = vmatpush1.msra.mxu0 0.0
  %2931 = vmatprep.subr.mxu0 0.0
  %2932 = vmatpush1.msra.mxu0 0.0
  %2933 = vmatprep.subr.mxu0 0.0
  %2934 = vmatpush1.msra.mxu0 0.0
  %2935 = vmatprep.subr.mxu0 0.0
  %2936 = vmatpush1.msra.mxu0 0.0
  %2937 = vmatprep.subr.mxu0 0.0
  %2938 = vmatpush1.msra.mxu0 0.0
  %2939 = vmatprep.subr.mxu0 0.0
  %2940 = vmatpush1.msra.mxu0 0.0
  %2941 = vmatprep.subr.mxu0 0.0
  %2942 = vmatpush1.msra.mxu0 0.0
  %2943 = vmatprep.subr.mxu0 0.0
  %2944 = vmatpush1.msra.mxu0 0.0
  %2945 = vmatprep.subr.mxu0 0.0
  %2946 = vmatpush1.msra.mxu0 0.0
  %2947 = vmatprep.subr.mxu0 0.0
  %2948 = vmatpush1.msra.mxu0 0.0
  %2949 = vmatprep.subr.mxu0 0.0
  %2950 = vmatpush1.msra.mxu0 0.0
  %2951 = vmatprep.subr.mxu0 0.0
  %2952 = vmatpush1.msra.mxu0 0.0
  %2953 = vmatprep.subr.mxu0 0.0
  %2954 = vmatpush1.msra.mxu0 0.0
  %2955 = vmatprep.subr.mxu0 0.0
  %2956 = vmatpush1.msra.mxu0 0.0
  %2957 = vmatprep.subr.mxu0 0.0
  %2958 = vmatpush1.msra.mxu0 0.0
  %2959 = vmatprep.subr.mxu0 0.0
  %2960 = vmatpush1.msra.mxu0 0.0
  %2961 = vmatprep.subr.mxu0 0.0
  %2962 = vmatpush1.msra.mxu0 0.0
  %2963 = vmatprep.subr.mxu0 0.0
  %2964 = vmatpush1.msra.mxu0 0.0
  %2965 = vmatprep.subr.mxu0 0.0
  %2966 = vmatpush1.msra.mxu0 0.0
  %2967 = vmatprep.subr.mxu0 0.0
  %2968 = vmatpush1.msra.mxu0 0.0
  %2969 = vmatprep.subr.mxu0 0.0
  %2970 = vmatpush1.msra.mxu0 0.0
  %2971 = vmatprep.subr.mxu0 0.0
  %2972 = vmatpush1.msra.mxu0 0.0
  %2973 = vmatprep.subr.mxu0 0.0
  %2974 = vmatpush1.msra.mxu0 0.0
  %2975 = vmatprep.mubr.f32.mxu0 0.0
  %2976 = vmatmul.mubr.f32.gmra.mrb[0].mxu0 %v2879
  %v2977 = vpop.f32.mrb[0].mxu0
  %v2978 = vadd.f32 0.0, %v2977
  %v2979 = vpop.f32.mrb[0].mxu0
  %2980 = vmatprep.mubr.f32.mxu0 0.0
  %2981 = vmatmul.mubr.f32.gmra.mrb[0].mxu0 %v2881
  %v2982 = vpop.f32.mrb[0].mxu0
  %v2983 = vadd.f32 0.0, %v2982
  %v2984 = vpop.f32.mrb[0].mxu0
  %2985 = vmatprep.mubr.f32.mxu0 0.0
  %2986 = vmatmul.mubr.f32.gmra.mrb[0].mxu0 %v2883
  %v2987 = vpop.f32.mrb[0].mxu0
  %v2988 = vadd.f32 0.0, %v2987
  %v2989 = vpop.f32.mrb[0].mxu0
  %2990 = vmatprep.mubr.f32.mxu0 0.0
  %2991 = vmatmul.mubr.f32.gmra.mrb[0].mxu0 %v2885
  %v2992 = vpop.f32.mrb[0].mxu0
  %v2993 = vadd.f32 0.0, %v2992
  %v2994 = vpop.f32.mrb[0].mxu0
  %2995 = vmatprep.mubr.f32.mxu0 0.0
  %2996 = vmatmul.mubr.f32.gmra.mrb[0].mxu0 %v2887
  %v2997 = vpop.f32.mrb[0].mxu0
  %v2998 = vadd.f32 0.0, %v2997
  %v2999 = vpop.f32.mrb[0].mxu0
  %3000 = vmatprep.mubr.f32.mxu0 0.0
  %3001 = vmatmul.mubr.f32.gmra.mrb[0].mxu0 %v2889
  %v3002 = vpop.f32.mrb[0].mxu0
  %v3003 = vadd.f32 0.0, %v3002
  %v3004 = vpop.f32.mrb[0].mxu0
  %3005 = vmatprep.mubr.f32.mxu0 0.0
  %3006 = vmatmul.mubr.f32.gmra.mrb[0].mxu0 %v2891
  %v3007 = vpop.f32.mrb[0].mxu0
  %v3008 = vadd.f32 0.0, %v3007
  %v3009 = vpop.f32.mrb[0].mxu0
  %3010 = vmatprep.mubr.f32.mxu0 0.0
  %3011 = vmatmul.mubr.f32.gmra.mrb[0].mxu0 %v2893
  %v3012 = vpop.f32.mrb[0].mxu0
  %v3013 = vadd.f32 0.0, %v3012
  %v3014 = vpop.f32.mrb[0].mxu0
  %3015 = vmatprep.mubr.f32.mxu0 0.0
  %3016 = vmatmul.mubr.f32.gmra.mrb[0].mxu0 %v2895
  %v3017 = vpop.f32.mrb[0].mxu0
  %v3018 = vadd.f32 0.0, %v3017
  %v3019 = vpop.f32.mrb[0].mxu0
  %3020 = vmatprep.mubr.f32.mxu0 0.0
  %3021 = vmatmul.mubr.f32.gmra.mrb[0].mxu0 %v2897
  %v3022 = vpop.f32.mrb[0].mxu0
  %v3023 = vadd.f32 0.0, %v3022
  %v3024 = vpop.f32.mrb[0].mxu0
  %3025 = vmatprep.mubr.f32.mxu0 0.0
  %3026 = vmatmul.mubr.f32.gmra.mrb[0].mxu0 %v2899
  %v3027 = vpop.f32.mrb[0].mxu0
  %v3028 = vadd.f32 0.0, %v3027
  %v3029 = vpop.f32.mrb[0].mxu0
  %3030 = vmatprep.mubr.f32.mxu0 0.0
  %3031 = vmatmul.mubr.f32.gmra.mrb[0].mxu0 %v2901
  %v3032 = vpop.f32.mrb[0].mxu0
  %v3033 = vadd.f32 0.0, %v3032
  %v3034 = vpop.f32.mrb[0].mxu0
  %3035 = vmatprep.mubr.f32.mxu0 0.0
  %3036 = vmatmul.mubr.f32.gmra.mrb[0].mxu0 %v2903
  %v3037 = vpop.f32.mrb[0].mxu0
  %v3038 = vadd.f32 0.0, %v3037
  %v3039 = vpop.f32.mrb[0].mxu0
  %3040 = vmatprep.mubr.f32.mxu0 0.0
  %3041 = vmatmul.mubr.f32.gmra.mrb[0].mxu0 %v2905
  %v3042 = vpop.f32.mrb[0].mxu0
  %v3043 = vadd.f32 0.0, %v3042
  %v3044 = vpop.f32.mrb[0].mxu0
  %3045 = vmatprep.mubr.f32.mxu0 0.0
  %3046 = vmatmul.mubr.f32.gmra.mrb[0].mxu0 %v2907
  %v3047 = vpop.f32.mrb[0].mxu0
  %v3048 = vadd.f32 0.0, %v3047
  %v3049 = vpop.f32.mrb[0].mxu0
  %3050 = vmatprep.mubr.f32.mxu0 0.0
  %3051 = vmatmul.mubr.f32.gmra.mrb[0].mxu0 %v2909
  %v3052 = vpop.f32.mrb[0].mxu0
  %v3053 = vadd.f32 0.0, %v3052
  %v3054 = vpop.f32.mrb[0].mxu0
  %3055 = vdwg.mxu0
  %v3056 = vlaneseq
  %v3057 = vshrl.u32 %v3056, 7
  %v3058 = vsub.s32 0, %v3057
  %v3059 = vrot.slane %v2878, %v3058
  %v3060 = vadd.f32 %v3059, %v2978
  %v3061 = vadd.f32 %v3059, %v2983
  %v3062 = vadd.f32 %v3059, %v2988
  %v3063 = vadd.f32 %v3059, %v2993
  %v3064 = vadd.f32 %v3059, %v2998
  %v3065 = vadd.f32 %v3059, %v3003
  %v3066 = vadd.f32 %v3059, %v3008
  %v3067 = vadd.f32 %v3059, %v3013
  %v3068 = vadd.f32 %v3059, %v3018
  %v3069 = vadd.f32 %v3059, %v3023
  %v3070 = vadd.f32 %v3059, %v3028
  %v3071 = vadd.f32 %v3059, %v3033
  %v3072 = vadd.f32 %v3059, %v3038
  %v3073 = vadd.f32 %v3059, %v3043
  %v3074 = vadd.f32 %v3059, %v3048
  %v3075 = vadd.f32 %v3059, %v3053
  %v3077 = vsel %vm475, %v1390, 0
  %v3080 = vsel %vm475, %v1395, 0
  %v3083 = vsel %vm475, %v1853, 0
  %v3086 = vsel %vm475, %v1858, 0
  %v3089 = vsel %vm475, %v2316, 0
  %v3092 = vsel %vm475, %v2321, 0
  %v3095 = vsel %vm475, %v2779, 0
  %v3098 = vsel %vm475, %v2784, 0
  %v3101 = vsel %vm475, %v1222, 0
  %v3104 = vsel %vm475, %v1227, 0
  %v3107 = vsel %vm475, %v1685, 0
  %v3110 = vsel %vm475, %v1690, 0
  %v3113 = vsel %vm475, %v2148, 0
  %v3116 = vsel %vm475, %v2153, 0
  %v3119 = vsel %vm475, %v2611, 0
  %v3122 = vsel %vm475, %v2616, 0
  %3124 = vmatprep.subr.mxu0 0.0
  %3125 = vmatpush1.msra.mxu0 %v2870
  %3126 = vmatprep.subr.mxu0 0.0
  %3127 = vmatpush1.msra.mxu0 %v2871
  %3128 = vmatprep.subr.mxu0 0.0
  %3129 = vmatpush1.msra.mxu0 %v2872
  %3130 = vmatprep.subr.mxu0 0.0
  %3131 = vmatpush1.msra.mxu0 %v2873
  %3132 = vmatprep.subr.mxu0 0.0
  %3133 = vmatpush1.msra.mxu0 0.0
  %3134 = vmatprep.subr.mxu0 0.0
  %3135 = vmatpush1.msra.mxu0 0.0
  %3136 = vmatprep.subr.mxu0 0.0
  %3137 = vmatpush1.msra.mxu0 0.0
  %3138 = vmatprep.subr.mxu0 0.0
  %3139 = vmatpush1.msra.mxu0 0.0
  %3140 = vmatprep.subr.mxu0 0.0
  %3141 = vmatpush1.msra.mxu0 0.0
  %3142 = vmatprep.subr.mxu0 0.0
  %3143 = vmatpush1.msra.mxu0 0.0
  %3144 = vmatprep.subr.mxu0 0.0
  %3145 = vmatpush1.msra.mxu0 0.0
  %3146 = vmatprep.subr.mxu0 0.0
  %3147 = vmatpush1.msra.mxu0 0.0
  %3148 = vmatprep.subr.mxu0 0.0
  %3149 = vmatpush1.msra.mxu0 0.0
  %3150 = vmatprep.subr.mxu0 0.0
  %3151 = vmatpush1.msra.mxu0 0.0
  %3152 = vmatprep.subr.mxu0 0.0
  %3153 = vmatpush1.msra.mxu0 0.0
  %3154 = vmatprep.subr.mxu0 0.0
  %3155 = vmatpush1.msra.mxu0 0.0
  %3156 = vmatprep.subr.mxu0 0.0
  %3157 = vmatpush1.msra.mxu0 0.0
  %3158 = vmatprep.subr.mxu0 0.0
  %3159 = vmatpush1.msra.mxu0 0.0
  %3160 = vmatprep.subr.mxu0 0.0
  %3161 = vmatpush1.msra.mxu0 0.0
  %3162 = vmatprep.subr.mxu0 0.0
  %3163 = vmatpush1.msra.mxu0 0.0
  %3164 = vmatprep.subr.mxu0 0.0
  %3165 = vmatpush1.msra.mxu0 0.0
  %3166 = vmatprep.subr.mxu0 0.0
  %3167 = vmatpush1.msra.mxu0 0.0
  %3168 = vmatprep.subr.mxu0 0.0
  %3169 = vmatpush1.msra.mxu0 0.0
  %3170 = vmatprep.subr.mxu0 0.0
  %3171 = vmatpush1.msra.mxu0 0.0
  %3172 = vmatprep.subr.mxu0 0.0
  %3173 = vmatpush1.msra.mxu0 0.0
  %3174 = vmatprep.subr.mxu0 0.0
  %3175 = vmatpush1.msra.mxu0 0.0
  %3176 = vmatprep.subr.mxu0 0.0
  %3177 = vmatpush1.msra.mxu0 0.0
  %3178 = vmatprep.subr.mxu0 0.0
  %3179 = vmatpush1.msra.mxu0 0.0
  %3180 = vmatprep.subr.mxu0 0.0
  %3181 = vmatpush1.msra.mxu0 0.0
  %3182 = vmatprep.subr.mxu0 0.0
  %3183 = vmatpush1.msra.mxu0 0.0
  %3184 = vmatprep.subr.mxu0 0.0
  %3185 = vmatpush1.msra.mxu0 0.0
  %3186 = vmatprep.subr.mxu0 0.0
  %3187 = vmatpush1.msra.mxu0 0.0
  %3188 = vmatprep.mubr.f32.mxu0 0.0
  %3189 = vmatmul.mubr.f32.gmra.mrb[0].mxu0 %v3077
  %v3190 = vpop.f32.mrb[0].mxu0
  %v3191 = vadd.f32 0.0, %v3190
  %v3192 = vpop.f32.mrb[0].mxu0
  %3193 = vmatprep.mubr.f32.mxu0 0.0
  %3194 = vmatmul.mubr.f32.gmra.mrb[0].mxu0 %v3080
  %v3195 = vpop.f32.mrb[0].mxu0
  %v3196 = vadd.f32 0.0, %v3195
  %v3197 = vpop.f32.mrb[0].mxu0
  %3198 = vmatprep.mubr.f32.mxu0 0.0
  %3199 = vmatmul.mubr.f32.gmra.mrb[0].mxu0 %v3083
  %v3200 = vpop.f32.mrb[0].mxu0
  %v3201 = vadd.f32 0.0, %v3200
  %v3202 = vpop.f32.mrb[0].mxu0
  %3203 = vmatprep.mubr.f32.mxu0 0.0
  %3204 = vmatmul.mubr.f32.gmra.mrb[0].mxu0 %v3086
  %v3205 = vpop.f32.mrb[0].mxu0
  %v3206 = vadd.f32 0.0, %v3205
  %v3207 = vpop.f32.mrb[0].mxu0
  %3208 = vmatprep.mubr.f32.mxu0 0.0
  %3209 = vmatmul.mubr.f32.gmra.mrb[0].mxu0 %v3089
  %v3210 = vpop.f32.mrb[0].mxu0
  %v3211 = vadd.f32 0.0, %v3210
  %v3212 = vpop.f32.mrb[0].mxu0
  %3213 = vmatprep.mubr.f32.mxu0 0.0
  %3214 = vmatmul.mubr.f32.gmra.mrb[0].mxu0 %v3092
  %v3215 = vpop.f32.mrb[0].mxu0
  %v3216 = vadd.f32 0.0, %v3215
  %v3217 = vpop.f32.mrb[0].mxu0
  %3218 = vmatprep.mubr.f32.mxu0 0.0
  %3219 = vmatmul.mubr.f32.gmra.mrb[0].mxu0 %v3095
  %v3220 = vpop.f32.mrb[0].mxu0
  %v3221 = vadd.f32 0.0, %v3220
  %v3222 = vpop.f32.mrb[0].mxu0
  %3223 = vmatprep.mubr.f32.mxu0 0.0
  %3224 = vmatmul.mubr.f32.gmra.mrb[0].mxu0 %v3098
  %v3225 = vpop.f32.mrb[0].mxu0
  %v3226 = vadd.f32 0.0, %v3225
  %v3227 = vpop.f32.mrb[0].mxu0
  %3228 = vmatprep.mubr.f32.mxu0 0.0
  %3229 = vmatmul.mubr.f32.gmra.mrb[0].mxu0 %v3101
  %v3230 = vpop.f32.mrb[0].mxu0
  %v3231 = vadd.f32 0.0, %v3230
  %v3232 = vpop.f32.mrb[0].mxu0
  %3233 = vmatprep.mubr.f32.mxu0 0.0
  %3234 = vmatmul.mubr.f32.gmra.mrb[0].mxu0 %v3104
  %v3235 = vpop.f32.mrb[0].mxu0
  %v3236 = vadd.f32 0.0, %v3235
  %v3237 = vpop.f32.mrb[0].mxu0
  %3238 = vmatprep.mubr.f32.mxu0 0.0
  %3239 = vmatmul.mubr.f32.gmra.mrb[0].mxu0 %v3107
  %v3240 = vpop.f32.mrb[0].mxu0
  %v3241 = vadd.f32 0.0, %v3240
  %v3242 = vpop.f32.mrb[0].mxu0
  %3243 = vmatprep.mubr.f32.mxu0 0.0
  %3244 = vmatmul.mubr.f32.gmra.mrb[0].mxu0 %v3110
  %v3245 = vpop.f32.mrb[0].mxu0
  %v3246 = vadd.f32 0.0, %v3245
  %v3247 = vpop.f32.mrb[0].mxu0
  %3248 = vmatprep.mubr.f32.mxu0 0.0
  %3249 = vmatmul.mubr.f32.gmra.mrb[0].mxu0 %v3113
  %v3250 = vpop.f32.mrb[0].mxu0
  %v3251 = vadd.f32 0.0, %v3250
  %v3252 = vpop.f32.mrb[0].mxu0
  %3253 = vmatprep.mubr.f32.mxu0 0.0
  %3254 = vmatmul.mubr.f32.gmra.mrb[0].mxu0 %v3116
  %v3255 = vpop.f32.mrb[0].mxu0
  %v3256 = vadd.f32 0.0, %v3255
  %v3257 = vpop.f32.mrb[0].mxu0
  %3258 = vmatprep.mubr.f32.mxu0 0.0
  %3259 = vmatmul.mubr.f32.gmra.mrb[0].mxu0 %v3119
  %v3260 = vpop.f32.mrb[0].mxu0
  %v3261 = vadd.f32 0.0, %v3260
  %v3262 = vpop.f32.mrb[0].mxu0
  %3263 = vmatprep.mubr.f32.mxu0 0.0
  %3264 = vmatmul.mubr.f32.gmra.mrb[0].mxu0 %v3122
  %v3265 = vpop.f32.mrb[0].mxu0
  %v3266 = vadd.f32 0.0, %v3265
  %v3267 = vpop.f32.mrb[0].mxu0
  %3268 = vdwg.mxu0
  %v3269 = vadd.f32 %v3060, %v3191
  %v3270 = vadd.f32 %v3061, %v3196
  %v3271 = vadd.f32 %v3062, %v3201
  %v3272 = vadd.f32 %v3063, %v3206
  %v3273 = vadd.f32 %v3064, %v3211
  %v3274 = vadd.f32 %v3065, %v3216
  %v3275 = vadd.f32 %v3066, %v3221
  %v3276 = vadd.f32 %v3067, %v3226
  %v3277 = vadd.f32 %v3068, %v3231
  %v3278 = vadd.f32 %v3069, %v3236
  %v3279 = vadd.f32 %v3070, %v3241
  %v3280 = vadd.f32 %v3071, %v3246
  %v3281 = vadd.f32 %v3072, %v3251
  %v3282 = vadd.f32 %v3073, %v3256
  %v3283 = vadd.f32 %v3074, %v3261
  %v3284 = vadd.f32 %v3075, %v3266
  %v3286 = vsel %vm475, %v1475, 0
  %v3289 = vsel %vm475, %v1476, 0
  %v3292 = vsel %vm475, %v1938, 0
  %v3295 = vsel %vm475, %v1939, 0
  %v3298 = vsel %vm475, %v2401, 0
  %v3301 = vsel %vm475, %v2402, 0
  %v3304 = vsel %vm475, %v2864, 0
  %v3307 = vsel %vm475, %v2865, 0
  %v3310 = vsel %vm475, %v1307, 0
  %v3313 = vsel %vm475, %v1308, 0
  %v3316 = vsel %vm475, %v1770, 0
  %v3319 = vsel %vm475, %v1771, 0
  %v3322 = vsel %vm475, %v2233, 0
  %v3325 = vsel %vm475, %v2234, 0
  %v3328 = vsel %vm475, %v2696, 0
  %v3331 = vsel %vm475, %v2697, 0
  %3333 = vmatprep.subr.mxu0 0.0
  %3334 = vmatpush1.msra.mxu0 %v2874
  %3335 = vmatprep.subr.mxu0 0.0
  %3336 = vmatpush1.msra.mxu0 %v2875
  %3337 = vmatprep.subr.mxu0 0.0
  %3338 = vmatpush1.msra.mxu0 %v2876
  %3339 = vmatprep.subr.mxu0 0.0
  %3340 = vmatpush1.msra.mxu0 %v2877
  %3341 = vmatprep.subr.mxu0 0.0
  %3342 = vmatpush1.msra.mxu0 0.0
  %3343 = vmatprep.subr.mxu0 0.0
  %3344 = vmatpush1.msra.mxu0 0.0
  %3345 = vmatprep.subr.mxu0 0.0
  %3346 = vmatpush1.msra.mxu0 0.0
  %3347 = vmatprep.subr.mxu0 0.0
  %3348 = vmatpush1.msra.mxu0 0.0
  %3349 = vmatprep.subr.mxu0 0.0
  %3350 = vmatpush1.msra.mxu0 0.0
  %3351 = vmatprep.subr.mxu0 0.0
  %3352 = vmatpush1.msra.mxu0 0.0
  %3353 = vmatprep.subr.mxu0 0.0
  %3354 = vmatpush1.msra.mxu0 0.0
  %3355 = vmatprep.subr.mxu0 0.0
  %3356 = vmatpush1.msra.mxu0 0.0
  %3357 = vmatprep.subr.mxu0 0.0
  %3358 = vmatpush1.msra.mxu0 0.0
  %3359 = vmatprep.subr.mxu0 0.0
  %3360 = vmatpush1.msra.mxu0 0.0
  %3361 = vmatprep.subr.mxu0 0.0
  %3362 = vmatpush1.msra.mxu0 0.0
  %3363 = vmatprep.subr.mxu0 0.0
  %3364 = vmatpush1.msra.mxu0 0.0
  %3365 = vmatprep.subr.mxu0 0.0
  %3366 = vmatpush1.msra.mxu0 0.0
  %3367 = vmatprep.subr.mxu0 0.0
  %3368 = vmatpush1.msra.mxu0 0.0
  %3369 = vmatprep.subr.mxu0 0.0
  %3370 = vmatpush1.msra.mxu0 0.0
  %3371 = vmatprep.subr.mxu0 0.0
  %3372 = vmatpush1.msra.mxu0 0.0
  %3373 = vmatprep.subr.mxu0 0.0
  %3374 = vmatpush1.msra.mxu0 0.0
  %3375 = vmatprep.subr.mxu0 0.0
  %3376 = vmatpush1.msra.mxu0 0.0
  %3377 = vmatprep.subr.mxu0 0.0
  %3378 = vmatpush1.msra.mxu0 0.0
  %3379 = vmatprep.subr.mxu0 0.0
  %3380 = vmatpush1.msra.mxu0 0.0
  %3381 = vmatprep.subr.mxu0 0.0
  %3382 = vmatpush1.msra.mxu0 0.0
  %3383 = vmatprep.subr.mxu0 0.0
  %3384 = vmatpush1.msra.mxu0 0.0
  %3385 = vmatprep.subr.mxu0 0.0
  %3386 = vmatpush1.msra.mxu0 0.0
  %3387 = vmatprep.subr.mxu0 0.0
  %3388 = vmatpush1.msra.mxu0 0.0
  %3389 = vmatprep.subr.mxu0 0.0
  %3390 = vmatpush1.msra.mxu0 0.0
  %3391 = vmatprep.subr.mxu0 0.0
  %3392 = vmatpush1.msra.mxu0 0.0
  %3393 = vmatprep.subr.mxu0 0.0
  %3394 = vmatpush1.msra.mxu0 0.0
  %3395 = vmatprep.subr.mxu0 0.0
  %3396 = vmatpush1.msra.mxu0 0.0
  %3397 = vmatprep.mubr.f32.mxu0 0.0
  %3398 = vmatmul.mubr.f32.gmra.mrb[0].mxu0 %v3286
  %v3399 = vpop.f32.mrb[0].mxu0
  %v3400 = vadd.f32 0.0, %v3399
  %v3401 = vpop.f32.mrb[0].mxu0
  %3402 = vmatprep.mubr.f32.mxu0 0.0
  %3403 = vmatmul.mubr.f32.gmra.mrb[0].mxu0 %v3289
  %v3404 = vpop.f32.mrb[0].mxu0
  %v3405 = vadd.f32 0.0, %v3404
  %v3406 = vpop.f32.mrb[0].mxu0
  %3407 = vmatprep.mubr.f32.mxu0 0.0
  %3408 = vmatmul.mubr.f32.gmra.mrb[0].mxu0 %v3292
  %v3409 = vpop.f32.mrb[0].mxu0
  %v3410 = vadd.f32 0.0, %v3409
  %v3411 = vpop.f32.mrb[0].mxu0
  %3412 = vmatprep.mubr.f32.mxu0 0.0
  %3413 = vmatmul.mubr.f32.gmra.mrb[0].mxu0 %v3295
  %v3414 = vpop.f32.mrb[0].mxu0
  %v3415 = vadd.f32 0.0, %v3414
  %v3416 = vpop.f32.mrb[0].mxu0
  %3417 = vmatprep.mubr.f32.mxu0 0.0
  %3418 = vmatmul.mubr.f32.gmra.mrb[0].mxu0 %v3298
  %v3419 = vpop.f32.mrb[0].mxu0
  %v3420 = vadd.f32 0.0, %v3419
  %v3421 = vpop.f32.mrb[0].mxu0
  %3422 = vmatprep.mubr.f32.mxu0 0.0
  %3423 = vmatmul.mubr.f32.gmra.mrb[0].mxu0 %v3301
  %v3424 = vpop.f32.mrb[0].mxu0
  %v3425 = vadd.f32 0.0, %v3424
  %v3426 = vpop.f32.mrb[0].mxu0
  %3427 = vmatprep.mubr.f32.mxu0 0.0
  %3428 = vmatmul.mubr.f32.gmra.mrb[0].mxu0 %v3304
  %v3429 = vpop.f32.mrb[0].mxu0
  %v3430 = vadd.f32 0.0, %v3429
  %v3431 = vpop.f32.mrb[0].mxu0
  %3432 = vmatprep.mubr.f32.mxu0 0.0
  %3433 = vmatmul.mubr.f32.gmra.mrb[0].mxu0 %v3307
  %v3434 = vpop.f32.mrb[0].mxu0
  %v3435 = vadd.f32 0.0, %v3434
  %v3436 = vpop.f32.mrb[0].mxu0
  %3437 = vmatprep.mubr.f32.mxu0 0.0
  %3438 = vmatmul.mubr.f32.gmra.mrb[0].mxu0 %v3310
  %v3439 = vpop.f32.mrb[0].mxu0
  %v3440 = vadd.f32 0.0, %v3439
  %v3441 = vpop.f32.mrb[0].mxu0
  %3442 = vmatprep.mubr.f32.mxu0 0.0
  %3443 = vmatmul.mubr.f32.gmra.mrb[0].mxu0 %v3313
  %v3444 = vpop.f32.mrb[0].mxu0
  %v3445 = vadd.f32 0.0, %v3444
  %v3446 = vpop.f32.mrb[0].mxu0
  %3447 = vmatprep.mubr.f32.mxu0 0.0
  %3448 = vmatmul.mubr.f32.gmra.mrb[0].mxu0 %v3316
  %v3449 = vpop.f32.mrb[0].mxu0
  %v3450 = vadd.f32 0.0, %v3449
  %v3451 = vpop.f32.mrb[0].mxu0
  %3452 = vmatprep.mubr.f32.mxu0 0.0
  %3453 = vmatmul.mubr.f32.gmra.mrb[0].mxu0 %v3319
  %v3454 = vpop.f32.mrb[0].mxu0
  %v3455 = vadd.f32 0.0, %v3454
  %v3456 = vpop.f32.mrb[0].mxu0
  %3457 = vmatprep.mubr.f32.mxu0 0.0
  %3458 = vmatmul.mubr.f32.gmra.mrb[0].mxu0 %v3322
  %v3459 = vpop.f32.mrb[0].mxu0
  %v3460 = vadd.f32 0.0, %v3459
  %v3461 = vpop.f32.mrb[0].mxu0
  %3462 = vmatprep.mubr.f32.mxu0 0.0
  %3463 = vmatmul.mubr.f32.gmra.mrb[0].mxu0 %v3325
  %v3464 = vpop.f32.mrb[0].mxu0
  %v3465 = vadd.f32 0.0, %v3464
  %v3466 = vpop.f32.mrb[0].mxu0
  %3467 = vmatprep.mubr.f32.mxu0 0.0
  %3468 = vmatmul.mubr.f32.gmra.mrb[0].mxu0 %v3328
  %v3469 = vpop.f32.mrb[0].mxu0
  %v3470 = vadd.f32 0.0, %v3469
  %v3471 = vpop.f32.mrb[0].mxu0
  %3472 = vmatprep.mubr.f32.mxu0 0.0
  %3473 = vmatmul.mubr.f32.gmra.mrb[0].mxu0 %v3331
  %v3474 = vpop.f32.mrb[0].mxu0
  %v3475 = vadd.f32 0.0, %v3474
  %v3476 = vpop.f32.mrb[0].mxu0
  %3477 = vdwg.mxu0
  %v3478 = vadd.f32 %v3269, %v3400
  %v3479 = vadd.f32 %v3270, %v3405
  %v3480 = vadd.f32 %v3271, %v3410
  %v3481 = vadd.f32 %v3272, %v3415
  %v3482 = vadd.f32 %v3273, %v3420
  %v3483 = vadd.f32 %v3274, %v3425
  %v3484 = vadd.f32 %v3275, %v3430
  %v3485 = vadd.f32 %v3276, %v3435
  %v3486 = vadd.f32 %v3277, %v3440
  %v3487 = vadd.f32 %v3278, %v3445
  %v3488 = vadd.f32 %v3279, %v3450
  %v3489 = vadd.f32 %v3280, %v3455
  %v3490 = vadd.f32 %v3281, %v3460
  %v3491 = vadd.f32 %v3282, %v3465
  %v3492 = vadd.f32 %v3283, %v3470
  %v3493 = vadd.f32 %v3284, %v3475
  %3494 = vst.msk [vmem:[%s6] sm:$0xff] %vm1106, %v3478
  %3495 = vst.msk [vmem:[%s6 + $0x8] sm:$0xff] %vm1106, %v3479
  %3498 = vrot.lane.b32.xlu0 %v3480, 16
  %v3499 = vpop.permute.xlu0 %3498
  %3500 = vrot.lane.b32.xlu0 %v3481, 16
  %v3501 = vpop.permute.xlu0 %3500
  %vm3504 = vcmask 261248
  %3505 = vst.msk [vmem:[%s6] sm:$0xff] %vm3504, %v3499
  %3506 = vst.msk [vmem:[%s6 + $0x8] sm:$0xff] %vm3504, %v3501
  %3509 = vrot.lane.b32.xlu0 %v3482, 32
  %v3510 = vpop.permute.xlu0 %3509
  %3511 = vrot.lane.b32.xlu0 %v3483, 32
  %v3512 = vpop.permute.xlu0 %3511
  %vm3515 = vcmask 392448
  %3516 = vst.msk [vmem:[%s6] sm:$0xff] %vm3515, %v3510
  %3517 = vst.msk [vmem:[%s6 + $0x8] sm:$0xff] %vm3515, %v3512
  %3520 = vrot.lane.b32.xlu0 %v3484, 48
  %v3521 = vpop.permute.xlu0 %3520
  %3522 = vrot.lane.b32.xlu0 %v3485, 48
  %v3523 = vpop.permute.xlu0 %3522
  %vm3526 = vcmask 523648
  %3527 = vst.msk [vmem:[%s6] sm:$0xff] %vm3526, %v3521
  %3528 = vst.msk [vmem:[%s6 + $0x8] sm:$0xff] %vm3526, %v3523
  %3531 = vrot.lane.b32.xlu0 %v3486, 64
  %v3532 = vpop.permute.xlu0 %3531
  %3533 = vrot.lane.b32.xlu0 %v3487, 64
  %v3534 = vpop.permute.xlu0 %3533
  %vm3537 = vcmask 654848
  %3538 = vst.msk [vmem:[%s6] sm:$0xff] %vm3537, %v3532
  %3539 = vst.msk [vmem:[%s6 + $0x8] sm:$0xff] %vm3537, %v3534
  %3542 = vrot.lane.b32.xlu0 %v3488, 80
  %v3543 = vpop.permute.xlu0 %3542
  %3544 = vrot.lane.b32.xlu0 %v3489, 80
  %v3545 = vpop.permute.xlu0 %3544
  %vm3548 = vcmask 786048
  %3549 = vst.msk [vmem:[%s6] sm:$0xff] %vm3548, %v3543
  %3550 = vst.msk [vmem:[%s6 + $0x8] sm:$0xff] %vm3548, %v3545
  %3553 = vrot.lane.b32.xlu0 %v3490, 96
  %v3554 = vpop.permute.xlu0 %3553
  %3555 = vrot.lane.b32.xlu0 %v3491, 96
  %v3556 = vpop.permute.xlu0 %3555
  %vm3559 = vcmask 917248
  %3560 = vst.msk [vmem:[%s6] sm:$0xff] %vm3559, %v3554
  %3561 = vst.msk [vmem:[%s6 + $0x8] sm:$0xff] %vm3559, %v3556
  %3564 = vrot.lane.b32.xlu0 %v3492, 112
  %v3565 = vpop.permute.xlu0 %3564
  %3566 = vrot.lane.b32.xlu0 %v3493, 112
  %v3567 = vpop.permute.xlu0 %3566
  %vm3570 = vcmask 1048448
  %3571 = vst.msk [vmem:[%s6] sm:$0xff] %vm3570, %v3565
  %3572 = vst.msk [vmem:[%s6 + $0x8] sm:$0xff] %vm3570, %v3567
  // Predicated region
  $region26: #{relational_ml_forward.1} parent=0 // pred_check
    _
  $region27: #{relational_ml_forward.1} parent=0 // pred_check_branch
    %3574 = sbr.rel (0) target = $region29
  $region28: #{relational_ml_forward.1} parent=0 // pred_region
    _
  $region29: #{relational_ml_forward.1} parent=0 // pred_fallthru
    _
  // Predicated region
  $region30: #{relational_ml_forward.1} parent=0 // pred_check
    _
  $region31: #{relational_ml_forward.1} parent=0 // pred_check_branch
    %3576 = sbr.rel (0) target = $region33
  $region32: #{relational_ml_forward.1} parent=0 // pred_region
    _
  $region33: #{relational_ml_forward.1} parent=0 // pred_fallthru
    _

</llo_original>
